<compile_context>
chip_gen: v6e
topology: v6e:2x2x1
jax: 0.10.0
libtpu: 0.0.40
codegen_flags: <defaults>
</compile_context>

<pallas_src>
import functools

import jax
import jax.numpy as jnp
from jax import lax
from jax.experimental import pallas as pl
from jax.experimental.pallas import tpu as pltpu

N_LOGITS = 6          # fc(2048 -> 6)
LOGIT_PAD = 128       # zero-padded logits width for a lane-dense store

# torchvision inception_v3(transform_input=True) per-channel affine, folded into the stem conv.
_INPUT_SCALE = (0.229 / 0.5, 0.224 / 0.5, 0.225 / 0.5)
_INPUT_SHIFT = ((0.485 - 0.5) / 0.5, (0.456 - 0.5) / 0.5, (0.406 - 0.5) / 0.5)


def _round_up(x, m):
    return ((x + m - 1) // m) * m


def _pick_spatial_tile(s):
    """Spatial (row) tile. Footprint ~TS*8 KiB -> TS=1024 fits all generations easily."""
    return min(_round_up(s, 8), 1024)


# ----------------------------------------------------------------------------
# Fused kernel
#   grid = (B, S_pad // TS); per step:
#     h1 = relu(patches_tile @ w1' + b1')          stem conv-as-matmul   (MXU, bf16 operands)
#     h2 = relu(h1 @ w2' + b2')                    1x1 conv to 2048 ch   (MXU, bf16 operands)
#     acc(8, 2048) += row-group sums of h2         dense VALU accumulation (mask tail tile only)
#   Finalize (last spatial step):
#     pooled = sum(acc) / S ; z = pooled @ wfc_pad + bfc ; sigmoid/exp/identity -> o_ref
# ----------------------------------------------------------------------------
def _fused_kernel(p_ref, w1_ref, b1_ref, w2_ref, b2_ref, wfc_ref, bfc_ref,
                  o_ref, acc_ref, *, ts, s_real, n_steps):
    s_idx = pl.program_id(1)

    @pl.when(s_idx == 0)
    def _():
        acc_ref[...] = jnp.zeros_like(acc_ref)

    patches = p_ref[0]                                                        # (TS, K) bf16
    h1 = jnp.dot(patches, w1_ref[...], preferred_element_type=jnp.float32)    # (TS, 32) f32
    h1 = jnp.maximum(h1 + b1_ref[...], 0.0)
    h2 = jnp.dot(h1.astype(jnp.bfloat16), w2_ref[...],
                 preferred_element_type=jnp.float32)                          # (TS, 2048) f32
    h2 = jnp.maximum(h2 + b2_ref[...], 0.0)

    def _accumulate(vals):
        # (TS, N2) -> (TS/8, 8, N2) row groups: dense full-vreg VALU adds, no per-step XLU.
        acc_ref[...] += jnp.sum(vals.reshape(ts // 8, 8, -1), axis=0)

    if s_real % ts == 0:
        # No padded rows anywhere: no masking at all.
        _accumulate(h2)
    else:
        if n_steps > 1:
            @pl.when(s_idx < n_steps - 1)
            def _():
                _accumulate(h2)

        @pl.when(s_idx == n_steps - 1)
        def _():
            tail = s_real - (n_steps - 1) * ts            # static
            row = lax.broadcasted_iota(jnp.int32, (ts, 1), 0)
            _accumulate(jnp.where(row < tail, h2, 0.0))

    @pl.when(s_idx == n_steps - 1)
    def _():
        pooled = jnp.sum(acc_ref[...], axis=0, keepdims=True) * (1.0 / s_real)   # (1, N2) f32
        z = jnp.dot(pooled.astype(jnp.bfloat16), wfc_ref[...],
                    preferred_element_type=jnp.float32) + bfc_ref[...]           # (1, 128) f32
        col = lax.broadcasted_iota(jnp.int32, z.shape, 1)
        y = jnp.where(col < 2, jax.nn.sigmoid(z), jnp.where(col < 4, jnp.exp(z), z))
        o_ref[...] = y.reshape(1, 1, -1)


def fused_backbone_head(patches, w1f, b1f, w2f, b2f, wfc_pad, bfc_pad, *, spatial_tile=None):
    """patches: [B, S, K] bf16 -> padded logits [B, LOGIT_PAD] f32 (sigmoid/exp already applied)."""
    b, s, k = patches.shape
    n1 = w1f.shape[1]
    n2 = w2f.shape[1]
    nl = wfc_pad.shape[1]

    ts = spatial_tile if spatial_tile is not None else _pick_spatial_tile(s)
    assert ts % 8 == 0
    s_pad = _round_up(s, ts)
    if s_pad != s:
        patches = jnp.pad(patches, ((0, 0), (0, s_pad - s), (0, 0)))
    n_steps = s_pad // ts

    kernel = functools.partial(_fused_kernel, ts=ts, s_real=s, n_steps=n_steps)
    logits = pl.pallas_call(
        kernel,
        out_shape=jax.ShapeDtypeStruct((b, 1, nl), jnp.float32),
        grid=(b, n_steps),
        in_specs=[
            pl.BlockSpec((1, ts, k), lambda i, j: (i, j, 0)),   # patches tile
            pl.BlockSpec((k, n1), lambda i, j: (0, 0)),         # w1 folded (resident)
            pl.BlockSpec((1, n1), lambda i, j: (0, 0)),         # b1 folded
            pl.BlockSpec((n1, n2), lambda i, j: (0, 0)),        # w2 folded (resident)
            pl.BlockSpec((1, n2), lambda i, j: (0, 0)),         # b2 folded
            pl.BlockSpec((n2, nl), lambda i, j: (0, 0)),        # fc weight, 128-lane padded
            pl.BlockSpec((1, nl), lambda i, j: (0, 0)),         # fc bias, 128-lane padded
        ],
        out_specs=pl.BlockSpec((1, 1, nl), lambda i, j: (i, 0, 0)),
        scratch_shapes=[pltpu.VMEM((8, n2), jnp.float32)],       # pooling accumulator
        compiler_params=pltpu.CompilerParams(
            dimension_semantics=("parallel", "arbitrary"),
            vmem_limit_bytes=32 * 1024 * 1024),
    )(patches, w1f, b1f, w2f, b2f, wfc_pad, bfc_pad)
    return logits[:, 0, :]                                       # [B, LOGIT_PAD]


# ----------------------------------------------------------------------------
# Plain-JAX glue
# ----------------------------------------------------------------------------
def im2col(x_nhwc, k, stride):
    """Extract k x k patches with given stride, VALID padding -> [B, Ho, Wo, k*k*C]."""
    b, h, w, c = x_nhwc.shape
    ho = (h - k) // stride + 1
    wo = (w - k) // stride + 1
    taps = []
    for dh in range(k):
        for dw in range(k):
            taps.append(x_nhwc[:, dh:dh + stride * ho:stride, dw:dw + stride * wo:stride, :])
    return jnp.concatenate(taps, axis=-1), ho, wo


def init_params(key):
    ks = jax.random.split(key, 8)
    p = {}
    p["w1"] = jax.random.normal(ks[0], (27, 32), jnp.float32) * 0.1          # stem 3x3x3 -> 32
    p["scale1"] = 1.0 + 0.05 * jax.random.normal(ks[1], (1, 32), jnp.float32)
    p["shift1"] = 0.05 * jax.random.normal(ks[2], (1, 32), jnp.float32)
    p["w2"] = jax.random.normal(ks[3], (32, 2048), jnp.float32) * 0.1        # 1x1 conv 32 -> 2048
    p["scale2"] = 1.0 + 0.05 * jax.random.normal(ks[4], (1, 2048), jnp.float32)
    p["shift2"] = 0.05 * jax.random.normal(ks[5], (1, 2048), jnp.float32)
    p["wfc"] = jax.random.normal(ks[6], (2048, 6), jnp.float32) * 0.02       # fc 2048 -> 6
    p["bfc"] = 0.01 * jax.random.normal(ks[7], (1, 6), jnp.float32)
    return p


def fold_params(p):
    """Fold BN scales and the transform_input per-channel affine into the matmul weights (f32),
    then cast MXU operands to bf16. im2col column order is tap*3 + channel."""
    a = jnp.tile(jnp.array(_INPUT_SCALE, jnp.float32), 9)        # (27,)
    c = jnp.tile(jnp.array(_INPUT_SHIFT, jnp.float32), 9)        # (27,)
    w1f = (a[:, None] * p["w1"]) * p["scale1"]                   # (27, 32)
    b1f = (c @ p["w1"]) * p["scale1"] + p["shift1"]              # (1, 32)
    w2f = p["w2"] * p["scale2"]                                  # (32, 2048)
    b2f = p["shift2"]                                            # (1, 2048)
    wfc_pad = jnp.zeros((p["wfc"].shape[0], LOGIT_PAD), jnp.float32)
    wfc_pad = wfc_pad.at[:, :N_LOGITS].set(p["wfc"])
    bfc_pad = jnp.zeros((1, LOGIT_PAD), jnp.float32).at[:, :N_LOGITS].set(p["bfc"])
    return dict(w1=w1f.astype(jnp.bfloat16), b1=b1f,
                w2=w2f.astype(jnp.bfloat16), b2=b2f,
                wfc=wfc_pad.astype(jnp.bfloat16), bfc=bfc_pad)


def transfer_inception_v3_forward(x_nchw, p):
    # transform_input's per-channel affine is folded into w1/b1 (see fold_params), so the raw
    # image (bf16, channels-last) goes straight to im2col.
    x = jnp.transpose(x_nchw.astype(jnp.float32), (0, 2, 3, 1)).astype(jnp.bfloat16)
    b = x.shape[0]

    # TODO(synk): im2col patches are still materialized in HBM by XLA before the kernel; a
    # halo-DMA lowering of the stem conv inside the fused kernel would avoid that extra traffic.
    patches, ho, wo = im2col(x, k=3, stride=2)                   # [B, Ho, Wo, 27] bf16
    patches = patches.reshape(b, ho * wo, patches.shape[-1])

    fp = fold_params(p)
    y = fused_backbone_head(patches, fp["w1"], fp["b1"], fp["w2"], fp["b2"],
                            fp["wfc"], fp["bfc"])[:, :N_LOGITS]  # [B, 6]

    bbox = y[:, :4]                                              # [sigmoid(x,y), exp(w,h)]
    x_class = y[:, 4:]
    return bbox, x_class


def reference_forward(x_nchw, p):
    """Pure-JAX reference using the identical folded bf16 operands, for correctness checking."""
    x = jnp.transpose(x_nchw.astype(jnp.float32), (0, 2, 3, 1)).astype(jnp.bfloat16)
    b = x.shape[0]
    patches, ho, wo = im2col(x, 3, 2)
    a = patches.reshape(b * ho * wo, -1)
    fp = fold_params(p)
    h1 = jnp.maximum(jnp.dot(a, fp["w1"], preferred_element_type=jnp.float32) + fp["b1"], 0.0)
    h2 = jnp.maximum(jnp.dot(h1.astype(jnp.bfloat16), fp["w2"],
                             preferred_element_type=jnp.float32) + fp["b2"], 0.0)
    pooled = h2.reshape(b, ho * wo, -1).mean(axis=1)
    z = jnp.dot(pooled.astype(jnp.bfloat16), fp["wfc"],
                preferred_element_type=jnp.float32) + fp["bfc"]
    z = z[:, :N_LOGITS]
    bbox = jnp.concatenate([jax.nn.sigmoid(z[:, :2]), jnp.exp(z[:, 2:4])], axis=1)
    return bbox, z[:, 4:]


if __name__ == "__main__":
    key = jax.random.PRNGKey(0)
    k_param, k_in = jax.random.split(key)
    params = init_params(k_param)

    # Small input consistent with the module's NCHW image input (real model uses 299x299).
    x = jax.random.uniform(k_in, (2, 3, 16, 16), jnp.float32)

    bbox, x_class = jax.jit(transfer_inception_v3_forward)(x, params)
    bbox, x_class = jax.block_until_ready((bbox, x_class))

    ref_bbox, ref_cls = reference_forward(x, params)
    assert bbox.shape == (2, 4) and x_class.shape == (2, 2)
    assert jnp.allclose(bbox, ref_bbox, rtol=5e-3, atol=5e-3)
    assert jnp.allclose(x_class, ref_cls, rtol=5e-3, atol=5e-3)

    print("KERNEL_OK")
</pallas_src>

<mosaic_0001>
module attributes {stable_mosaic.version = 11 : i64} {
  func.func @_fused_kernel(%arg0: i32, %arg1: i32, %arg2: memref<1x56x27xbf16, #tpu.memory_space<vmem>>, %arg3: memref<27x32xbf16, #tpu.memory_space<vmem>>, %arg4: memref<1x32xf32, #tpu.memory_space<vmem>>, %arg5: memref<32x2048xbf16, #tpu.memory_space<vmem>>, %arg6: memref<1x2048xf32, #tpu.memory_space<vmem>>, %arg7: memref<2048x128xbf16, #tpu.memory_space<vmem>>, %arg8: memref<1x128xf32, #tpu.memory_space<vmem>>, %arg9: memref<1x1x128xf32, #tpu.memory_space<vmem>>, %arg10: memref<8x2048xf32, #tpu.memory_space<vmem>>) attributes {dimension_semantics = [#tpu.dimension_semantics<parallel>, #tpu.dimension_semantics<arbitrary>], iteration_bounds = array<i64: 2, 1>, scalar_prefetch = 0 : i64, scratch_operands = 1 : i64, tpu.core_type = #tpu.core_type<tc>, window_params = [{transform_indices = @transform_0, window_bounds = array<i64: 1, 56, 27>}, {pipeline_mode = #tpu.pipeline_mode<synchronous>, transform_indices = @transform_1, window_bounds = array<i64: 27, 32>}, {pipeline_mode = #tpu.pipeline_mode<synchronous>, transform_indices = @transform_2, window_bounds = array<i64: 1, 32>}, {pipeline_mode = #tpu.pipeline_mode<synchronous>, transform_indices = @transform_3, window_bounds = array<i64: 32, 2048>}, {pipeline_mode = #tpu.pipeline_mode<synchronous>, transform_indices = @transform_4, window_bounds = array<i64: 1, 2048>}, {pipeline_mode = #tpu.pipeline_mode<synchronous>, transform_indices = @transform_5, window_bounds = array<i64: 2048, 128>}, {pipeline_mode = #tpu.pipeline_mode<synchronous>, transform_indices = @transform_6, window_bounds = array<i64: 1, 128>}, {transform_indices = @transform_7, window_bounds = array<i64: 1, 1, 128>}]} {
    %c0_i32 = arith.constant 0 : i32
    %0 = arith.cmpi eq, %arg1, %c0_i32 : i32
    %1 = arith.extui %0 : i1 to i32
    %c0_i32_0 = arith.constant 0 : i32
    %2 = arith.cmpi ne, %1, %c0_i32_0 : i32
    scf.if %2 {
      %cst_18 = arith.constant 0.000000e+00 : f32
      %26 = vector.broadcast %cst_18 : f32 to vector<8x2048xf32>
      %c0_19 = arith.constant 0 : index
      %c0_20 = arith.constant 0 : index
      %27 = vector.load %arg10[%c0_19, %c0_20] : memref<8x2048xf32, #tpu.memory_space<vmem>>, vector<8x2048xf32>
      tpu.vector_store %arg10[%c0_19, %c0_20], %26 {strides = array<i32>} : memref<8x2048xf32, #tpu.memory_space<vmem>>, vector<8x2048xf32>,
    } else {
    }
    %c0 = arith.constant 0 : index
    %c0_1 = arith.constant 0 : index
    %c0_2 = arith.constant 0 : index
    %3 = vector.load %arg2[%c0, %c0_1, %c0_2] : memref<1x56x27xbf16, #tpu.memory_space<vmem>>, vector<1x56x27xbf16>
    %4 = vector.shape_cast %3 : vector<1x56x27xbf16> to vector<56x27xbf16>
    %c0_3 = arith.constant 0 : index
    %c0_4 = arith.constant 0 : index
    %5 = vector.load %arg3[%c0_3, %c0_4] : memref<27x32xbf16, #tpu.memory_space<vmem>>, vector<27x32xbf16>
    %cst = arith.constant dense<0.000000e+00> : vector<56x32xf32>
    %6 = tpu.matmul %4, %5, %cst {dimension_numbers = #tpu.dot_dimension_numbers<[1], [0], [0], [1], [0, 0, 1, 1], [], []>} : vector<56x27xbf16>, vector<27x32xbf16>, vector<56x32xf32> -> vector<56x32xf32>
    %c0_5 = arith.constant 0 : index
    %c0_6 = arith.constant 0 : index
    %7 = vector.load %arg4[%c0_5, %c0_6] : memref<1x32xf32, #tpu.memory_space<vmem>>, vector<1x32xf32>
    %8 = vector.broadcast %7 : vector<1x32xf32> to vector<56x32xf32>
    %9 = arith.addf %6, %8 : vector<56x32xf32>
    %cst_7 = arith.constant 0.000000e+00 : f32
    %10 = vector.broadcast %cst_7 : f32 to vector<56x32xf32>
    %11 = arith.maximumf %9, %10 : vector<56x32xf32>
    %12 = arith.truncf %11 : vector<56x32xf32> to vector<56x32xbf16>
    %c0_8 = arith.constant 0 : index
    %c0_9 = arith.constant 0 : index
    %13 = vector.load %arg5[%c0_8, %c0_9] : memref<32x2048xbf16, #tpu.memory_space<vmem>>, vector<32x2048xbf16>
    %cst_10 = arith.constant dense<0.000000e+00> : vector<56x2048xf32>
    %14 = tpu.matmul %12, %13, %cst_10 {dimension_numbers = #tpu.dot_dimension_numbers<[1], [0], [0], [1], [0, 0, 1, 1], [], []>} : vector<56x32xbf16>, vector<32x2048xbf16>, vector<56x2048xf32> -> vector<56x2048xf32>
    %c0_11 = arith.constant 0 : index
    %c0_12 = arith.constant 0 : index
    %15 = vector.load %arg6[%c0_11, %c0_12] : memref<1x2048xf32, #tpu.memory_space<vmem>>, vector<1x2048xf32>
    %16 = vector.broadcast %15 : vector<1x2048xf32> to vector<56x2048xf32>
    %17 = arith.addf %14, %16 : vector<56x2048xf32>
    %cst_13 = arith.constant 0.000000e+00 : f32
    %18 = vector.broadcast %cst_13 : f32 to vector<56x2048xf32>
    %19 = arith.maximumf %17, %18 : vector<56x2048xf32>
    %c0_i32_14 = arith.constant 0 : i32
    %20 = arith.cmpi eq, %arg1, %c0_i32_14 : i32
    %21 = arith.extui %20 : i1 to i32
    %c0_i32_15 = arith.constant 0 : i32
    %22 = arith.cmpi ne, %21, %c0_i32_15 : i32
    scf.if %22 {
      %26 = tpu.iota {dimensions = array<i32: 0>} : vector<56x1xi32>
      %c49_i32 = arith.constant 49 : i32
      %27 = vector.broadcast %c49_i32 : i32 to vector<56x1xi32>
      %28 = arith.cmpi slt, %26, %27 : vector<56x1xi32>
      %cst_18 = arith.constant 0.000000e+00 : f32
      %29 = vector.shape_cast %28 : vector<56x1xi1> to vector<56x1xi1>
      %30 = vector.broadcast %29 : vector<56x1xi1> to vector<56x2048xi1>
      %31 = vector.broadcast %cst_18 : f32 to vector<56x2048xf32>
      %32 = arith.select %30, %19, %31 : vector<56x2048xi1>, vector<56x2048xf32>
      %c0_19 = arith.constant 0 : index
      %c0_20 = arith.constant 0 : index
      %33 = vector.load %arg10[%c0_19, %c0_20] : memref<8x2048xf32, #tpu.memory_space<vmem>>, vector<8x2048xf32>
      %34 = vector.shape_cast %32 : vector<56x2048xf32> to vector<7x8x2048xf32>
      %cst_21 = arith.constant dense<0.000000e+00> : vector<8x2048xf32>
      %35 = vector.multi_reduction <add>, %34, %cst_21 [0] : vector<7x8x2048xf32> to vector<8x2048xf32>
      %36 = arith.addf %33, %35 : vector<8x2048xf32>
      %c0_22 = arith.constant 0 : index
      %c0_23 = arith.constant 0 : index
      %37 = vector.load %arg10[%c0_22, %c0_23] : memref<8x2048xf32, #tpu.memory_space<vmem>>, vector<8x2048xf32>
      tpu.vector_store %arg10[%c0_22, %c0_23], %36 {strides = array<i32>} : memref<8x2048xf32, #tpu.memory_space<vmem>>, vector<8x2048xf32>,
    } else {
    }
    %c0_i32_16 = arith.constant 0 : i32
    %23 = arith.cmpi eq, %arg1, %c0_i32_16 : i32
    %24 = arith.extui %23 : i1 to i32
    %c0_i32_17 = arith.constant 0 : i32
    %25 = arith.cmpi ne, %24, %c0_i32_17 : i32
    scf.if %25 {
      %c0_18 = arith.constant 0 : index
      %c0_19 = arith.constant 0 : index
      %26 = vector.load %arg10[%c0_18, %c0_19] : memref<8x2048xf32, #tpu.memory_space<vmem>>, vector<8x2048xf32>
      %cst_20 = arith.constant dense<0.000000e+00> : vector<2048xf32>
      %27 = vector.multi_reduction <add>, %26, %cst_20 [0] : vector<8x2048xf32> to vector<2048xf32>
      %28 = vector.shape_cast %27 : vector<2048xf32> to vector<1x2048xf32>
      %cst_21 = arith.constant 0.0204081628 : f32
      %29 = vector.broadcast %cst_21 : f32 to vector<1x2048xf32>
      %30 = arith.mulf %28, %29 : vector<1x2048xf32>
      %31 = arith.truncf %30 : vector<1x2048xf32> to vector<1x2048xbf16>
      %c0_22 = arith.constant 0 : index
      %c0_23 = arith.constant 0 : index
      %32 = vector.load %arg7[%c0_22, %c0_23] : memref<2048x128xbf16, #tpu.memory_space<vmem>>, vector<2048x128xbf16>
      %cst_24 = arith.constant dense<0.000000e+00> : vector<1x128xf32>
      %33 = tpu.matmul %31, %32, %cst_24 {dimension_numbers = #tpu.dot_dimension_numbers<[1], [0], [0], [1], [0, 0, 1, 1], [], []>} : vector<1x2048xbf16>, vector<2048x128xbf16>, vector<1x128xf32> -> vector<1x128xf32>
      %c0_25 = arith.constant 0 : index
      %c0_26 = arith.constant 0 : index
      %34 = vector.load %arg8[%c0_25, %c0_26] : memref<1x128xf32, #tpu.memory_space<vmem>>, vector<1x128xf32>
      %35 = arith.addf %33, %34 : vector<1x128xf32>
      %36 = tpu.iota {dimensions = array<i32: 1>} : vector<1x128xi32>
      %c2_i32 = arith.constant 2 : i32
      %37 = vector.broadcast %c2_i32 : i32 to vector<1x128xi32>
      %38 = arith.cmpi slt, %36, %37 : vector<1x128xi32>
      %39 = arith.negf %35 : vector<1x128xf32>
      %40 = math.exp %39 : vector<1x128xf32>
      %cst_27 = arith.constant 1.000000e+00 : f32
      %41 = vector.broadcast %cst_27 : f32 to vector<1x128xf32>
      %42 = arith.addf %41, %40 : vector<1x128xf32>
      %43 = arith.divf %41, %42 : vector<1x128xf32>
      %c4_i32 = arith.constant 4 : i32
      %44 = vector.broadcast %c4_i32 : i32 to vector<1x128xi32>
      %45 = arith.cmpi slt, %36, %44 : vector<1x128xi32>
      %46 = math.exp %35 : vector<1x128xf32>
      %47 = arith.select %45, %46, %35 : vector<1x128xi1>, vector<1x128xf32>
      %48 = arith.select %38, %43, %47 : vector<1x128xi1>, vector<1x128xf32>
      %49 = vector.shape_cast %48 : vector<1x128xf32> to vector<1x1x128xf32>
      %c0_28 = arith.constant 0 : index
      %c0_29 = arith.constant 0 : index
      %c0_30 = arith.constant 0 : index
      %50 = vector.load %arg9[%c0_28, %c0_29, %c0_30] : memref<1x1x128xf32, #tpu.memory_space<vmem>>, vector<1x1x128xf32>
      tpu.vector_store %arg9[%c0_28, %c0_29, %c0_30], %49 {strides = array<i32>} : memref<1x1x128xf32, #tpu.memory_space<vmem>>, vector<1x1x128xf32>,
    } else {
    }
    return
  }
  func.func @transform_0(%arg0: i32, %arg1: i32) -> (i32, i32, i32) {
    %c0_i32 = arith.constant 0 : i32
    %c0_i32_0 = arith.constant 0 : i32
    return %arg0, %arg1, %c0_i32 : i32, i32, i32
  }
  func.func @transform_1(%arg0: i32, %arg1: i32) -> (i32, i32) {
    %c0_i32 = arith.constant 0 : i32
    %c0_i32_0 = arith.constant 0 : i32
    %c0_i32_1 = arith.constant 0 : i32
    return %c0_i32, %c0_i32_0 : i32, i32
  }
  func.func @transform_2(%arg0: i32, %arg1: i32) -> (i32, i32) {
    %c0_i32 = arith.constant 0 : i32
    %c0_i32_0 = arith.constant 0 : i32
    %c0_i32_1 = arith.constant 0 : i32
    return %c0_i32, %c0_i32_0 : i32, i32
  }
  func.func @transform_3(%arg0: i32, %arg1: i32) -> (i32, i32) {
    %c0_i32 = arith.constant 0 : i32
    %c0_i32_0 = arith.constant 0 : i32
    %c0_i32_1 = arith.constant 0 : i32
    return %c0_i32, %c0_i32_0 : i32, i32
  }
  func.func @transform_4(%arg0: i32, %arg1: i32) -> (i32, i32) {
    %c0_i32 = arith.constant 0 : i32
    %c0_i32_0 = arith.constant 0 : i32
    %c0_i32_1 = arith.constant 0 : i32
    return %c0_i32, %c0_i32_0 : i32, i32
  }
  func.func @transform_5(%arg0: i32, %arg1: i32) -> (i32, i32) {
    %c0_i32 = arith.constant 0 : i32
    %c0_i32_0 = arith.constant 0 : i32
    %c0_i32_1 = arith.constant 0 : i32
    return %c0_i32, %c0_i32_0 : i32, i32
  }
  func.func @transform_6(%arg0: i32, %arg1: i32) -> (i32, i32) {
    %c0_i32 = arith.constant 0 : i32
    %c0_i32_0 = arith.constant 0 : i32
    %c0_i32_1 = arith.constant 0 : i32
    return %c0_i32, %c0_i32_0 : i32, i32
  }
  func.func @transform_7(%arg0: i32, %arg1: i32) -> (i32, i32, i32) {
    %c0_i32 = arith.constant 0 : i32
    %c0_i32_0 = arith.constant 0 : i32
    %c0_i32_1 = arith.constant 0 : i32
    return %arg0, %c0_i32, %c0_i32_0 : i32, i32, i32
  }
}

</mosaic_0001>

<llo_original>
// kernel: tile.10
$region0: #{tile.10}
  #allocation0 [shape = 's32[1]{0}', space=sflag, size = 0x4, scoped, tag = 'scoped memory for tile.10']
  %s0 = inlined_call_operand.vmem [shape: f32[3], index: 0, kind: input, shape index: {}]
  %s1 = inlined_call_operand.vmem [shape: f32[9,3], index: 1, kind: output, shape index: {}]
  // Predicated region
  $region2: #{tile.10} parent=0 // pred_check
    _
  $region3: #{tile.10} parent=0 // pred_check_branch
    %3 = sbr.rel (0) target = $region5
  $region4: #{tile.10} parent=0 // pred_region
    _
  $region5: #{tile.10} parent=0 // pred_fallthru
    _
  %v4 = vld [vmem:[%s0] ss:$0 sm:$0xff]
  %5 = vst [vmem:[%s1] sm:$0xff] %v4
  %s6 = scalar_lea.vmem %s1, 8
  %7 = vst [vmem:[%s6] sm:$0xff] %v4

// kernel: mul.14
$region0: #{mul.14}
  %s0 = inlined_call_operand.vmem [shape: f32[9,3], index: 0, kind: input, shape index: {}]
  %s1 = inlined_call_operand.vmem [shape: f32[27], index: 1, kind: output, shape index: {}]
  $region1: #{mul.14} parent=0
    #allocation0 [shape = 'u8[4096]{0}', space=vmem, size = 0x1000, scoped, tag = 'scoped mem for output reshape']
    %v2 = vld [vmem:[%s0] sm:$0x1]
    %vm3 = vcmask 23552
    %4 = vst.msk [vmem:[#allocation0] sm:$0x1] %vm3, %v2
    %s5 = scalar_lea.vmem %s0, 8
    %v6 = vld [vmem:[%s5] sm:$0x1]
    %7 = vrot.lane.b32.xlu0 %v6, 24
    %v8 = vpop.permute.xlu0 %7
    %vm9 = vcmask 220352
    %10 = vst.msk [vmem:[#allocation0] sm:$0x1] %vm9, %v8
    %s11 = scalar_lea.vmem %s0, 7
    %v12 = vld [vmem:[%s11] sm:$0x1]
    %13 = vrot.lane.b32.xlu0 %v12, 21
    %v14 = vpop.permute.xlu0 %13
    %vm15 = vcmask 195752
    %16 = vst.msk [vmem:[#allocation0] sm:$0x1] %vm15, %v14
    %s17 = scalar_lea.vmem %s0, 6
    %v18 = vld [vmem:[%s17] sm:$0x1]
    %19 = vrot.lane.b32.xlu0 %v18, 18
    %v20 = vpop.permute.xlu0 %19
    %vm21 = vcmask 171152
    %22 = vst.msk [vmem:[#allocation0] sm:$0x1] %vm21, %v20
    %s23 = scalar_lea.vmem %s0, 5
    %v24 = vld [vmem:[%s23] sm:$0x1]
    %25 = vrot.lane.b32.xlu0 %v24, 15
    %v26 = vpop.permute.xlu0 %25
    %vm27 = vcmask 146552
    %28 = vst.msk [vmem:[#allocation0] sm:$0x1] %vm27, %v26
    %s29 = scalar_lea.vmem %s0, 4
    %v30 = vld [vmem:[%s29] sm:$0x1]
    %31 = vrot.lane.b32.xlu0 %v30, 12
    %v32 = vpop.permute.xlu0 %31
    %vm33 = vcmask 121952
    %34 = vst.msk [vmem:[#allocation0] sm:$0x1] %vm33, %v32
    %s35 = scalar_lea.vmem %s0, 3
    %v36 = vld [vmem:[%s35] sm:$0x1]
    %37 = vrot.lane.b32.xlu0 %v36, 9
    %v38 = vpop.permute.xlu0 %37
    %vm39 = vcmask 97352
    %40 = vst.msk [vmem:[#allocation0] sm:$0x1] %vm39, %v38
    %s41 = scalar_lea.vmem %s0, 2
    %v42 = vld [vmem:[%s41] sm:$0x1]
    %43 = vrot.lane.b32.xlu0 %v42, 6
    %v44 = vpop.permute.xlu0 %43
    %vm45 = vcmask 72752
    %46 = vst.msk [vmem:[#allocation0] sm:$0x1] %vm45, %v44
    %s47 = scalar_lea.vmem %s0, 1
    %v48 = vld [vmem:[%s47] sm:$0x1]
    %49 = vrot.lane.b32.xlu0 %v48, 3
    %v50 = vpop.permute.xlu0 %49
    %vm51 = vcmask 48152
    %52 = vst.msk [vmem:[#allocation0] sm:$0x1] %vm51, %v50
    %s54 = sshll.u32 1, 1
    %s55 = ssub.s32 %s54, 1
    %v57 = vld [vmem:[#allocation0] sm:%s55]
    %s58 = sshll.u32 1, 1
    %s59 = ssub.s32 %s58, 1
    %60 = vst [vmem:[%s1] sm:%s59] %v57

// kernel: transfer_inception_v3_forward.1
$region0: #{transfer_inception_v3_forward.1}
  #allocation0 [shape = 'u32[]', space=smem, size = 0x4, offset = 0x4, fixed_abs, tag = 'smem constant byte address 0x4 - core index']
  #allocation1 [shape = 'u32[144,128]{1,0:T(1,128)}', space=vmem, size = 0x12000, scoped, tag = 'internal scratch']
  #allocation2 [shape = 'f32[8,2048]{1,0:T(8,128)}', space=vmem, size = 0x10000, scoped, tag = 'scratch operand']
  %s0 = inlined_call_operand.vmem [shape: bf16[2,56,27], index: 0, kind: input, shape index: {}]
  %s1 = inlined_call_operand.vmem [shape: bf16[27,32], index: 1, kind: input, shape index: {}]
  %s2 = inlined_call_operand.vmem [shape: f32[1,32], index: 2, kind: input, shape index: {}]
  %s3 = inlined_call_operand.vmem [shape: bf16[32,2048], index: 3, kind: input, shape index: {}]
  %s4 = inlined_call_operand.vmem [shape: f32[1,2048], index: 4, kind: input, shape index: {}]
  %s5 = inlined_call_operand.vmem [shape: bf16[2048,128], index: 5, kind: input, shape index: {}]
  %s6 = inlined_call_operand.vmem [shape: f32[1,128], index: 6, kind: input, shape index: {}]
  %s7 = inlined_call_operand.vmem [shape: f32[2,1,128], index: 7, kind: output, shape index: {}]
  %s8 = sld [smem:[#allocation0]]
  $region69: #{transfer_inception_v3_forward.1} parent=0
    _
  %s10 = ssub.s32 1, %s8
  %s11 = scalar_select 0, %s10, %s8
  loop: start=0, step=1, limit=4
  $region2: #{transfer_inception_v3_forward.1} parent=0 // loop_pre_header
    _
  $region3: #{transfer_inception_v3_forward.1} parent=0 // loop_header
    %s13 = sphi 0, %s17
    %p14 = scmp.ge.s32.totalorder %s13, 4
    %s20 = sphi 0, %s32
    %s21 = sphi 0, %s28
    %s22 = sphi 0, %s20
    %s23 = sphi 0, %s21
    %s24 = sphi 0, %s22
    %s25 = sphi 0, %s23
    %s37 = sphi 0, %s39
    %s40 = sphi 0, %s37
    %s41 = sphi 0, %s40
    %s57 = sphi 0, %s41
    %s61 = sphi 0, %s61
    %s63 = sphi 0, %s61
    %s64 = sphi 0, %s63
    %s78 = sphi 0, %s64
    %s82 = sphi 0, %s82
    %s84 = sphi 0, %s82
    %s85 = sphi 0, %s84
    %s99 = sphi 0, %s85
    %s103 = sphi 0, %s103
    %s105 = sphi 0, %s103
    %s106 = sphi 0, %s105
    %s120 = sphi 0, %s106
    %s124 = sphi 0, %s124
    %s126 = sphi 0, %s124
    %s127 = sphi 0, %s126
    %s141 = sphi 0, %s127
    %s145 = sphi 0, %s145
    %s147 = sphi 0, %s145
    %s148 = sphi 0, %s147
    %s162 = sphi 0, %s148
    %s166 = sphi 0, %s166
    %s168 = sphi 0, %s166
    %s169 = sphi 0, %s168
    %s183 = sphi 0, %s169
    %s189 = sphi 0, %s191
    %s192 = sphi 0, %s189
    %s193 = sphi 0, %s192
    %s209 = sphi 0, %s193
  $region4: #{transfer_inception_v3_forward.1} parent=0 // loop_header_branch
    %16 = sbr.rel (%p14) target = $region8
  $region5: #{transfer_inception_v3_forward.1} parent=0 // loop_body
    %s18 = ssub.s32 %s13, 1
    %s19 = ssub.s32 %s13, 2
    %s26 = sadd.s32 1, %s21
    %p27 = scmp.ge.s32.totalorder %s26, 1
    %s28 = scalar_select %p27, 0, %s26
    %s29 = sadd.s32 1, %s20
    %s30 = scalar_select %p27, %s29, %s20
    %p31 = scmp.ge.s32.totalorder %s30, 2
    %s32 = scalar_select %p31, 0, %s30
    %s33 = ssub.s32 %s20, %s32
    %s34 = ssub.s32 %s21, %s28
    %s35 = sor.u32 %s33, %s34
    %p36 = scmp.eq.s32.totalorder %s35, 0
    %s38 = sadd.s32 %s37, 1
    %s39 = scalar_select %p36, %s37, %s38
    %p42 = pneg %p36
    %p43 = scmp.eq.s32.totalorder %s13, 1
    %p44 = por %p42, %p43
    %p45 = scmp.ne.s32.totalorder %s37, %s40
    %p46 = scmp.eq.s32.totalorder %s13, 0
    %p47 = por %p45, %p46
    %p48 = scmp.ne.s32.totalorder %s37, %s40
    %p49 = scmp.eq.s32.totalorder %s18, 1
    %p50 = por %p48, %p49
    %p51 = scmp.ne.s32.totalorder %s40, %s41
    %p52 = scmp.eq.s32.totalorder %s18, 0
    %p53 = por %p51, %p52
    %p54 = scmp.ne.s32.totalorder %s40, %s41
    %p55 = scmp.eq.s32.totalorder %s19, 1
    %p56 = por %p54, %p55
    %p58 = scmp.ne.s32.totalorder %s41, %s57
    %p59 = scmp.eq.s32.totalorder %s19, 0
    %p60 = por %p58, %p59
    %s62 = sadd.s32 %s61, 1
    %p65 = scmp.eq.s32.totalorder %s13, 1
    %p66 = scmp.ne.s32.totalorder %s61, %s63
    %p67 = scmp.eq.s32.totalorder %s13, 0
    %p68 = por %p66, %p67
    %p69 = scmp.ne.s32.totalorder %s61, %s63
    %p70 = scmp.eq.s32.totalorder %s18, 1
    %p71 = por %p69, %p70
    %p72 = scmp.ne.s32.totalorder %s63, %s64
    %p73 = scmp.eq.s32.totalorder %s18, 0
    %p74 = por %p72, %p73
    %p75 = scmp.ne.s32.totalorder %s63, %s64
    %p76 = scmp.eq.s32.totalorder %s19, 1
    %p77 = por %p75, %p76
    %p79 = scmp.ne.s32.totalorder %s64, %s78
    %p80 = scmp.eq.s32.totalorder %s19, 0
    %p81 = por %p79, %p80
    %s83 = sadd.s32 %s82, 1
    %p86 = scmp.eq.s32.totalorder %s13, 1
    %p87 = scmp.ne.s32.totalorder %s82, %s84
    %p88 = scmp.eq.s32.totalorder %s13, 0
    %p89 = por %p87, %p88
    %p90 = scmp.ne.s32.totalorder %s82, %s84
    %p91 = scmp.eq.s32.totalorder %s18, 1
    %p92 = por %p90, %p91
    %p93 = scmp.ne.s32.totalorder %s84, %s85
    %p94 = scmp.eq.s32.totalorder %s18, 0
    %p95 = por %p93, %p94
    %p96 = scmp.ne.s32.totalorder %s84, %s85
    %p97 = scmp.eq.s32.totalorder %s19, 1
    %p98 = por %p96, %p97
    %p100 = scmp.ne.s32.totalorder %s85, %s99
    %p101 = scmp.eq.s32.totalorder %s19, 0
    %p102 = por %p100, %p101
    %s104 = sadd.s32 %s103, 1
    %p107 = scmp.eq.s32.totalorder %s13, 1
    %p108 = scmp.ne.s32.totalorder %s103, %s105
    %p109 = scmp.eq.s32.totalorder %s13, 0
    %p110 = por %p108, %p109
    %p111 = scmp.ne.s32.totalorder %s103, %s105
    %p112 = scmp.eq.s32.totalorder %s18, 1
    %p113 = por %p111, %p112
    %p114 = scmp.ne.s32.totalorder %s105, %s106
    %p115 = scmp.eq.s32.totalorder %s18, 0
    %p116 = por %p114, %p115
    %p117 = scmp.ne.s32.totalorder %s105, %s106
    %p118 = scmp.eq.s32.totalorder %s19, 1
    %p119 = por %p117, %p118
    %p121 = scmp.ne.s32.totalorder %s106, %s120
    %p122 = scmp.eq.s32.totalorder %s19, 0
    %p123 = por %p121, %p122
    %s125 = sadd.s32 %s124, 1
    %p128 = scmp.eq.s32.totalorder %s13, 1
    %p129 = scmp.ne.s32.totalorder %s124, %s126
    %p130 = scmp.eq.s32.totalorder %s13, 0
    %p131 = por %p129, %p130
    %p132 = scmp.ne.s32.totalorder %s124, %s126
    %p133 = scmp.eq.s32.totalorder %s18, 1
    %p134 = por %p132, %p133
    %p135 = scmp.ne.s32.totalorder %s126, %s127
    %p136 = scmp.eq.s32.totalorder %s18, 0
    %p137 = por %p135, %p136
    %p138 = scmp.ne.s32.totalorder %s126, %s127
    %p139 = scmp.eq.s32.totalorder %s19, 1
    %p140 = por %p138, %p139
    %p142 = scmp.ne.s32.totalorder %s127, %s141
    %p143 = scmp.eq.s32.totalorder %s19, 0
    %p144 = por %p142, %p143
    %s146 = sadd.s32 %s145, 1
    %p149 = scmp.eq.s32.totalorder %s13, 1
    %p150 = scmp.ne.s32.totalorder %s145, %s147
    %p151 = scmp.eq.s32.totalorder %s13, 0
    %p152 = por %p150, %p151
    %p153 = scmp.ne.s32.totalorder %s145, %s147
    %p154 = scmp.eq.s32.totalorder %s18, 1
    %p155 = por %p153, %p154
    %p156 = scmp.ne.s32.totalorder %s147, %s148
    %p157 = scmp.eq.s32.totalorder %s18, 0
    %p158 = por %p156, %p157
    %p159 = scmp.ne.s32.totalorder %s147, %s148
    %p160 = scmp.eq.s32.totalorder %s19, 1
    %p161 = por %p159, %p160
    %p163 = scmp.ne.s32.totalorder %s148, %s162
    %p164 = scmp.eq.s32.totalorder %s19, 0
    %p165 = por %p163, %p164
    %s167 = sadd.s32 %s166, 1
    %p170 = scmp.eq.s32.totalorder %s13, 1
    %p171 = scmp.ne.s32.totalorder %s166, %s168
    %p172 = scmp.eq.s32.totalorder %s13, 0
    %p173 = por %p171, %p172
    %p174 = scmp.ne.s32.totalorder %s166, %s168
    %p175 = scmp.eq.s32.totalorder %s18, 1
    %p176 = por %p174, %p175
    %p177 = scmp.ne.s32.totalorder %s168, %s169
    %p178 = scmp.eq.s32.totalorder %s18, 0
    %p179 = por %p177, %p178
    %p180 = scmp.ne.s32.totalorder %s168, %s169
    %p181 = scmp.eq.s32.totalorder %s19, 1
    %p182 = por %p180, %p181
    %p184 = scmp.ne.s32.totalorder %s169, %s183
    %p185 = scmp.eq.s32.totalorder %s19, 0
    %p186 = por %p184, %p185
    %s187 = ssub.s32 %s20, %s32
    %p188 = scmp.eq.s32.totalorder %s187, 0
    %s190 = sadd.s32 %s189, 1
    %s191 = scalar_select %p188, %s189, %s190
    %p194 = pneg %p188
    %p195 = scmp.eq.s32.totalorder %s13, 1
    %p196 = por %p194, %p195
    %p197 = scmp.ne.s32.totalorder %s189, %s192
    %p198 = scmp.eq.s32.totalorder %s13, 0
    %p199 = por %p197, %p198
    %p200 = scmp.ne.s32.totalorder %s189, %s192
    %p201 = scmp.eq.s32.totalorder %s18, 1
    %p202 = por %p200, %p201
    %p203 = scmp.ne.s32.totalorder %s192, %s193
    %p204 = scmp.eq.s32.totalorder %s18, 0
    %p205 = por %p203, %p204
    %p206 = scmp.ne.s32.totalorder %s192, %s193
    %p207 = scmp.eq.s32.totalorder %s19, 1
    %p208 = por %p206, %p207
    %p210 = scmp.ne.s32.totalorder %s193, %s209
    %p211 = scmp.eq.s32.totalorder %s19, 0
    %p212 = por %p210, %p211
    %p213 = scmp.le.s32.totalorder 1, %s13
    %p214 = scmp.lt.s32.totalorder %s13, 3
    %p215 = pnand %p213, %p214
    %p216 = pneg %p215
    // Predicated region
    $region9: #{transfer_inception_v3_forward.1} parent=5 // pred_check
      _
    $region10: #{transfer_inception_v3_forward.1} parent=5 // pred_check_branch
      %218 = sbr.rel (%p215) target = $region12
    $region11: #{transfer_inception_v3_forward.1} parent=5 // pred_region
      %s219 = ssub.s32 %s13, 1
      // Predicated region
      $region13: #{transfer_inception_v3_forward.1} parent=11 // pred_check
        %p220 = pneg %p74
      $region14: #{transfer_inception_v3_forward.1} parent=11 // pred_check_branch
        %222 = sbr.rel (%p220) target = $region16
      $region15: #{transfer_inception_v3_forward.1} parent=11 // pred_region
        _
      $region16: #{transfer_inception_v3_forward.1} parent=11 // pred_fallthru
        _
      // Predicated region
      $region17: #{transfer_inception_v3_forward.1} parent=11 // pred_check
        %p223 = pneg %p95
      $region18: #{transfer_inception_v3_forward.1} parent=11 // pred_check_branch
        %225 = sbr.rel (%p223) target = $region20
      $region19: #{transfer_inception_v3_forward.1} parent=11 // pred_region
        _
      $region20: #{transfer_inception_v3_forward.1} parent=11 // pred_fallthru
        _
      // Predicated region
      $region21: #{transfer_inception_v3_forward.1} parent=11 // pred_check
        %p226 = pneg %p116
      $region22: #{transfer_inception_v3_forward.1} parent=11 // pred_check_branch
        %228 = sbr.rel (%p226) target = $region24
      $region23: #{transfer_inception_v3_forward.1} parent=11 // pred_region
        _
      $region24: #{transfer_inception_v3_forward.1} parent=11 // pred_fallthru
        _
      // Predicated region
      $region25: #{transfer_inception_v3_forward.1} parent=11 // pred_check
        %p229 = pneg %p137
      $region26: #{transfer_inception_v3_forward.1} parent=11 // pred_check_branch
        %231 = sbr.rel (%p229) target = $region28
      $region27: #{transfer_inception_v3_forward.1} parent=11 // pred_region
        _
      $region28: #{transfer_inception_v3_forward.1} parent=11 // pred_fallthru
        _
      // Predicated region
      $region29: #{transfer_inception_v3_forward.1} parent=11 // pred_check
        %p232 = pneg %p158
      $region30: #{transfer_inception_v3_forward.1} parent=11 // pred_check_branch
        %234 = sbr.rel (%p232) target = $region32
      $region31: #{transfer_inception_v3_forward.1} parent=11 // pred_region
        _
      $region32: #{transfer_inception_v3_forward.1} parent=11 // pred_fallthru
        _
      // Predicated region
      $region33: #{transfer_inception_v3_forward.1} parent=11 // pred_check
        %p235 = pneg %p179
      $region34: #{transfer_inception_v3_forward.1} parent=11 // pred_check_branch
        %237 = sbr.rel (%p235) target = $region36
      $region35: #{transfer_inception_v3_forward.1} parent=11 // pred_region
        _
      $region36: #{transfer_inception_v3_forward.1} parent=11 // pred_fallthru
        _
    $region12: #{transfer_inception_v3_forward.1} parent=5 // pred_fallthru
      _
    %p238 = scmp.lt.s32.totalorder %s13, 2
    // Predicated region
    $region37: #{transfer_inception_v3_forward.1} parent=5 // pred_check
      %p239 = pneg %p238
    $region38: #{transfer_inception_v3_forward.1} parent=5 // pred_check_branch
      %241 = sbr.rel (%p239) target = $region40
    $region39: #{transfer_inception_v3_forward.1} parent=5 // pred_region
      // Predicated region
      $region41: #{transfer_inception_v3_forward.1} parent=39 // pred_check
        %p242 = pneg %p47
      $region42: #{transfer_inception_v3_forward.1} parent=39 // pred_check_branch
        %244 = sbr.rel (%p242) target = $region44
      $region43: #{transfer_inception_v3_forward.1} parent=39 // pred_region
        %s245 = smul.u32 7, %s21
        %p246 = scmp.lt.s32.totalorder %s20, 1
        %s247 = scalar_select %p246, %s20, 1
        %p248 = scmp.lt.s32.totalorder %s245, 6
        %s249 = scalar_select %p248, %s245, 6
        %s250 = smul.addr %s247, 7
        %s251 = sadd.s32 %s249, %s250
        %s252 = smul.addr %s251, 4
        %s253 = scalar_lea.vmem %s0, %s252
        %s254 = smul.u32 7, %s21
      $region44: #{transfer_inception_v3_forward.1} parent=39 // pred_fallthru
        _
    $region40: #{transfer_inception_v3_forward.1} parent=5 // pred_fallthru
      _
    %p255 = scmp.le.s32.totalorder 1, %s13
    %p256 = scmp.lt.s32.totalorder %s13, 3
    %p257 = pnand %p255, %p256
    %p258 = pneg %p257
    // Predicated region
    $region45: #{transfer_inception_v3_forward.1} parent=5 // pred_check
      _
    $region46: #{transfer_inception_v3_forward.1} parent=5 // pred_check_branch
      %260 = sbr.rel (%p257) target = $region48
    $region47: #{transfer_inception_v3_forward.1} parent=5 // pred_region
      %s261 = ssub.s32 %s13, 1
      %s262 = smul.u32 7, %s23
      %p263 = scmp.lt.s32.totalorder %s22, 1
      %s264 = scalar_select %p263, %s22, 1
      %p265 = scmp.lt.s32.totalorder %s262, 6
      %s266 = scalar_select %p265, %s262, 6
      %s267 = smul.addr %s264, 7
      %s268 = sadd.s32 %s266, %s267
      %s269 = smul.addr %s268, 4
      %s270 = scalar_lea.vmem %s0, %s269
      %p271 = pneg %p53
      %p272 = pneg %p50
      %p273 = pneg %p74
      %p274 = pneg %p71
      %p275 = pneg %p95
      %p276 = pneg %p92
      %p277 = pneg %p116
      %p278 = pneg %p113
      %p279 = pneg %p137
      %p280 = pneg %p134
      %p281 = pneg %p158
      %p282 = pneg %p155
      %p283 = pneg %p179
      %p284 = pneg %p176
      %p285 = pneg %p205
      %p286 = pneg %p202
      %p287 = scmp.lt.s32.totalorder %s22, 1
      %s288 = scalar_select %p287, %s22, 1
      %s289 = scalar_lea.vmem %s7, %s288
      %s290 = smul.u32 7, %s23
      %p291 = scmp.lt.s32.totalorder %s22, 1
      %s292 = scalar_select %p291, %s22, 1
      %p293 = scmp.lt.s32.totalorder %s290, 6
      %s294 = scalar_select %p293, %s290, 6
      %s295 = smul.addr %s292, 7
      %s296 = sadd.s32 %s294, %s295
      %s297 = smul.addr %s296, 4
      %s298 = scalar_lea.vmem %s0, %s297
      %s299 = smul.u32 7, %s23
      %p300 = scmp.lt.s32.totalorder %s22, 1
      %s301 = scalar_select %p300, %s22, 1
      %s302 = scalar_lea.vmem %s7, %s301
      %p304 = scmp.eq.s32.totalorder %s23, 0
      // Predicated region
      $region49: #{transfer_inception_v3_forward.1} parent=47 // pred_check
        %p305 = pneg %p304
      $region50: #{transfer_inception_v3_forward.1} parent=47 // pred_check_branch
        %307 = sbr.rel (%p305) target = $region52
      $region51: #{transfer_inception_v3_forward.1} parent=47 // pred_region
        %308 = vst [vmem:[#allocation2] sm:$0xff] 0.0
        %309 = vst [vmem:[#allocation2 + $0x8] sm:$0xff] 0.0
        %310 = vst [vmem:[#allocation2 + $0x10] sm:$0xff] 0.0
        %311 = vst [vmem:[#allocation2 + $0x18] sm:$0xff] 0.0
        %312 = vst [vmem:[#allocation2 + $0x20] sm:$0xff] 0.0
        %313 = vst [vmem:[#allocation2 + $0x28] sm:$0xff] 0.0
        %314 = vst [vmem:[#allocation2 + $0x30] sm:$0xff] 0.0
        %315 = vst [vmem:[#allocation2 + $0x38] sm:$0xff] 0.0
        %316 = vst [vmem:[#allocation2 + $0x40] sm:$0xff] 0.0
        %317 = vst [vmem:[#allocation2 + $0x48] sm:$0xff] 0.0
        %318 = vst [vmem:[#allocation2 + $0x50] sm:$0xff] 0.0
        %319 = vst [vmem:[#allocation2 + $0x58] sm:$0xff] 0.0
        %320 = vst [vmem:[#allocation2 + $0x60] sm:$0xff] 0.0
        %321 = vst [vmem:[#allocation2 + $0x68] sm:$0xff] 0.0
        %322 = vst [vmem:[#allocation2 + $0x70] sm:$0xff] 0.0
        %323 = vst [vmem:[#allocation2 + $0x78] sm:$0xff] 0.0
      $region52: #{transfer_inception_v3_forward.1} parent=47 // pred_fallthru
        _
      %v324 = vld [vmem:[%s298] sm:$0xf]
      %v325 = vld [vmem:[%s298 + $0x4] sm:$0xf]
      %v326 = vld [vmem:[%s298 + $0x8] sm:$0xf]
      %v327 = vld [vmem:[%s298 + $0xc] sm:$0xf]
      %v328 = vld [vmem:[%s298 + $0x10] sm:$0xf]
      %v329 = vld [vmem:[%s298 + $0x14] sm:$0xf]
      %v330 = vld [vmem:[%s298 + $0x18] sm:$0xf]
      %v331 = vld [vmem:[%s1] sm:$0xf]
      %v332 = vld [vmem:[%s1 + $0x4] sm:$0xf]
      %v333 = vld [vmem:[%s1 + $0x8] sm:$0xf]
      %v334 = vld [vmem:[%s1 + $0xc] sm:$0x3]
      %v335 = vld [vmem:[%s2] sm:$0x1]
      %v337 = vlaneseq
      %v338 = vshrl.u32 %v337, 7
      %v339 = vsub.s32 0, %v338
      %v340 = vrot.slane %v335, %v339
      %v349 = vunpack.c.l.b16 %v324
      %v350 = vunpack.c.l.b16 %v325
      %v351 = vunpack.c.l.b16 %v326
      %v352 = vunpack.c.l.b16 %v327
      %v353 = vunpack.c.l.b16 %v328
      %v354 = vunpack.c.l.b16 %v329
      %v355 = vunpack.c.l.b16 %v330
      %v356 = vpack.c.b16 %v350, %v349
      %v357 = vpack.c.b16 %v352, %v351
      %v358 = vpack.c.b16 %v354, %v353
      %v359 = vpack.c.b16 %v355, %v355
      %v364 = vunpack.c.l.b16 %v331
      %v365 = vunpack.c.l.b16 %v332
      %v366 = vunpack.c.l.b16 %v333
      %v367 = vunpack.c.l.b16 %v334
      %v368 = vpack.c.b16 %v365, %v364
      %v369 = vpack.c.b16 %v367, %v366
      %vm371 = vcmask 220160
      %v373 = vsel %vm371, %v356, 0
      %v376 = vsel %vm371, %v357, 0
      %v379 = vsel %vm371, %v358, 0
      %v382 = vsel %vm371, %v359, 0
      %vm384 = vcmask 1044480
      %vm385 = vcmask 1045504
      %v386 = vsel %vm384, 4294967295, 65535
      %v387 = vsel %vm385, %v386, 0
      %v389 = vand.u32 %v369, %v387
      %391 = vmatprep.subr.bf16.mxu0 0
      %392 = vmatpush1.bf16.msra.mxu0 0
      %393 = vmatprep.subr.bf16.mxu0 0
      %394 = vmatpush1.bf16.msra.mxu0 0
      %395 = vmatprep.subr.bf16.mxu0 0
      %396 = vmatpush1.bf16.msra.mxu0 0
      %397 = vmatprep.subr.bf16.mxu0 0
      %398 = vmatpush1.bf16.msra.mxu0 0
      %399 = vmatprep.subr.bf16.mxu0 0
      %400 = vmatpush1.bf16.msra.mxu0 0
      %401 = vmatprep.subr.bf16.mxu0 0
      %402 = vmatpush1.bf16.msra.mxu0 0
      %403 = vmatprep.subr.bf16.mxu0 0
      %404 = vmatpush1.bf16.msra.mxu0 %v389
      %405 = vmatprep.subr.bf16.mxu0 0
      %406 = vmatpush1.bf16.msra.mxu0 %v368
      %407 = vmatprep.subr.bf16.mxu0 0
      %408 = vmatpush2.bf16.msra.mxu0 0
      %409 = vmatprep.subr.bf16.mxu0 0
      %410 = vmatpush2.bf16.msra.mxu0 0
      %411 = vmatprep.subr.bf16.mxu0 0
      %412 = vmatpush2.bf16.msra.mxu0 0
      %413 = vmatprep.subr.bf16.mxu0 0
      %414 = vmatpush2.bf16.msra.mxu0 0
      %415 = vmatprep.subr.bf16.mxu0 0
      %416 = vmatpush2.bf16.msra.mxu0 0
      %417 = vmatprep.subr.bf16.mxu0 0
      %418 = vmatpush2.bf16.msra.mxu0 0
      %419 = vmatprep.subr.bf16.mxu0 0
      %420 = vmatpush2.bf16.msra.mxu0 0
      %421 = vmatprep.subr.bf16.mxu0 0
      %422 = vmatpush2.bf16.msra.mxu0 0
      %423 = vmatprep.mubr.bf16.mxu0 0
      %424 = vmatmul.mubr.bf16.gmra.mxu0 %v373
      %v425 = vpop.f32.mrf.mxu0
      %v426 = vadd.f32 %v340, %v425
      %v427 = vpop.f32.mrf.mxu0
      %v428 = vpop.f32.mrf.mxu0
      %v429 = vadd.f32 %v340, %v428
      %v430 = vpop.f32.mrf.mxu0
      %431 = vmatprep.mubr.bf16.mxu0 0
      %432 = vmatmul.mubr.bf16.gmra.mxu0 %v376
      %v433 = vpop.f32.mrf.mxu0
      %v434 = vadd.f32 %v340, %v433
      %v435 = vpop.f32.mrf.mxu0
      %v436 = vpop.f32.mrf.mxu0
      %v437 = vadd.f32 %v340, %v436
      %v438 = vpop.f32.mrf.mxu0
      %439 = vmatprep.mubr.bf16.mxu0 0
      %440 = vmatmul.mubr.bf16.gmra.mxu0 %v379
      %v441 = vpop.f32.mrf.mxu0
      %v442 = vadd.f32 %v340, %v441
      %v443 = vpop.f32.mrf.mxu0
      %v444 = vpop.f32.mrf.mxu0
      %v445 = vadd.f32 %v340, %v444
      %v446 = vpop.f32.mrf.mxu0
      %447 = vmatprep.mubr.bf16.mxu0 0
      %448 = vmatmul.mubr.bf16.gmra.mxu0 %v382
      %v449 = vpop.f32.mrf.mxu0
      %v450 = vadd.f32 %v340, %v449
      %v451 = vpop.f32.mrf.mxu0
      %v452 = vpop.f32.mrf.mxu0
      %v453 = vpop.f32.mrf.mxu0
      %454 = vdwg.mxu0
      %v455 = vmax.f32 %v426, 0.0
      %v456 = vmax.f32 %v429, 0.0
      %v457 = vmax.f32 %v434, 0.0
      %v458 = vmax.f32 %v437, 0.0
      %v459 = vmax.f32 %v442, 0.0
      %v460 = vmax.f32 %v445, 0.0
      %v461 = vmax.f32 %v450, 0.0
      %v462 = vpack.c.bf16 %v456, %v455
      %v463 = vpack.c.bf16 %v458, %v457
      %v464 = vpack.c.bf16 %v460, %v459
      %v465 = vpack.c.bf16 %v461, %v461
      %v466 = vld [vmem:[%s3] sm:$0xff]
      %v467 = vld [vmem:[%s3 + $0x8] sm:$0xff]
      %v468 = vld [vmem:[%s3 + $0x10] sm:$0xff]
      %v469 = vld [vmem:[%s3 + $0x18] sm:$0xff]
      %v470 = vld [vmem:[%s3 + $0x20] sm:$0xff]
      %v471 = vld [vmem:[%s3 + $0x28] sm:$0xff]
      %v472 = vld [vmem:[%s3 + $0x30] sm:$0xff]
      %v473 = vld [vmem:[%s3 + $0x38] sm:$0xff]
      %v474 = vld [vmem:[%s3 + $0x40] sm:$0xff]
      %v475 = vld [vmem:[%s3 + $0x48] sm:$0xff]
      %v476 = vld [vmem:[%s3 + $0x50] sm:$0xff]
      %v477 = vld [vmem:[%s3 + $0x58] sm:$0xff]
      %v478 = vld [vmem:[%s3 + $0x60] sm:$0xff]
      %v479 = vld [vmem:[%s3 + $0x68] sm:$0xff]
      %v480 = vld [vmem:[%s3 + $0x70] sm:$0xff]
      %v481 = vld [vmem:[%s3 + $0x78] sm:$0xff]
      %v482 = vld [vmem:[%s3 + $0x80] sm:$0xff]
      %v483 = vld [vmem:[%s3 + $0x88] sm:$0xff]
      %v484 = vld [vmem:[%s3 + $0x90] sm:$0xff]
      %v485 = vld [vmem:[%s3 + $0x98] sm:$0xff]
      %v486 = vld [vmem:[%s3 + $0xa0] sm:$0xff]
      %v487 = vld [vmem:[%s3 + $0xa8] sm:$0xff]
      %v488 = vld [vmem:[%s3 + $0xb0] sm:$0xff]
      %v489 = vld [vmem:[%s3 + $0xb8] sm:$0xff]
      %v490 = vld [vmem:[%s3 + $0xc0] sm:$0xff]
      %v491 = vld [vmem:[%s3 + $0xc8] sm:$0xff]
      %v492 = vld [vmem:[%s3 + $0xd0] sm:$0xff]
      %v493 = vld [vmem:[%s3 + $0xd8] sm:$0xff]
      %v494 = vld [vmem:[%s3 + $0xe0] sm:$0xff]
      %v495 = vld [vmem:[%s3 + $0xe8] sm:$0xff]
      %v496 = vld [vmem:[%s3 + $0xf0] sm:$0xff]
      %v497 = vld [vmem:[%s3 + $0xf8] sm:$0xff]
      %v498 = vld [vmem:[%s4] sm:$0xff]
      %v499 = vld [vmem:[%s4 + $0x8] sm:$0xff]
      %v502 = vlaneseq
      %v503 = vshrl.u32 %v502, 7
      %v504 = vsub.s32 0, %v503
      %v505 = vrot.slane %v498, %v504
      %v506 = vlaneseq
      %v507 = vshrl.u32 %v506, 7
      %v508 = vsub.s32 1, %v507
      %v509 = vrot.slane %v498, %v508
      %v510 = vlaneseq
      %v511 = vshrl.u32 %v510, 7
      %v512 = vsub.s32 2, %v511
      %v513 = vrot.slane %v498, %v512
      %v514 = vlaneseq
      %v515 = vshrl.u32 %v514, 7
      %v516 = vsub.s32 3, %v515
      %v517 = vrot.slane %v498, %v516
      %v518 = vlaneseq
      %v519 = vshrl.u32 %v518, 7
      %v520 = vsub.s32 4, %v519
      %v521 = vrot.slane %v498, %v520
      %v522 = vlaneseq
      %v523 = vshrl.u32 %v522, 7
      %v524 = vsub.s32 5, %v523
      %v525 = vrot.slane %v498, %v524
      %v526 = vlaneseq
      %v527 = vshrl.u32 %v526, 7
      %v528 = vsub.s32 6, %v527
      %v529 = vrot.slane %v498, %v528
      %v530 = vlaneseq
      %v531 = vshrl.u32 %v530, 7
      %v532 = vsub.s32 7, %v531
      %v533 = vrot.slane %v498, %v532
      %v534 = vlaneseq
      %v535 = vshrl.u32 %v534, 7
      %v536 = vsub.s32 0, %v535
      %v537 = vrot.slane %v499, %v536
      %v538 = vlaneseq
      %v539 = vshrl.u32 %v538, 7
      %v540 = vsub.s32 1, %v539
      %v541 = vrot.slane %v499, %v540
      %v542 = vlaneseq
      %v543 = vshrl.u32 %v542, 7
      %v544 = vsub.s32 2, %v543
      %v545 = vrot.slane %v499, %v544
      %v546 = vlaneseq
      %v547 = vshrl.u32 %v546, 7
      %v548 = vsub.s32 3, %v547
      %v549 = vrot.slane %v499, %v548
      %v550 = vlaneseq
      %v551 = vshrl.u32 %v550, 7
      %v552 = vsub.s32 4, %v551
      %v553 = vrot.slane %v499, %v552
      %v554 = vlaneseq
      %v555 = vshrl.u32 %v554, 7
      %v556 = vsub.s32 5, %v555
      %v557 = vrot.slane %v499, %v556
      %v558 = vlaneseq
      %v559 = vshrl.u32 %v558, 7
      %v560 = vsub.s32 6, %v559
      %v561 = vrot.slane %v499, %v560
      %v562 = vlaneseq
      %v563 = vshrl.u32 %v562, 7
      %v564 = vsub.s32 7, %v563
      %v565 = vrot.slane %v499, %v564
      %v614 = vunpack.c.l.b16 %v466
      %v615 = vunpack.c.h.b16 %v466
      %v616 = vunpack.c.l.b16 %v467
      %v617 = vunpack.c.h.b16 %v467
      %v618 = vunpack.c.l.b16 %v468
      %v619 = vunpack.c.h.b16 %v468
      %v620 = vunpack.c.l.b16 %v469
      %v621 = vunpack.c.h.b16 %v469
      %v622 = vunpack.c.l.b16 %v470
      %v623 = vunpack.c.h.b16 %v470
      %v624 = vunpack.c.l.b16 %v471
      %v625 = vunpack.c.h.b16 %v471
      %v626 = vunpack.c.l.b16 %v472
      %v627 = vunpack.c.h.b16 %v472
      %v628 = vunpack.c.l.b16 %v473
      %v629 = vunpack.c.h.b16 %v473
      %v630 = vunpack.c.l.b16 %v474
      %v631 = vunpack.c.h.b16 %v474
      %v632 = vunpack.c.l.b16 %v475
      %v633 = vunpack.c.h.b16 %v475
      %v634 = vunpack.c.l.b16 %v476
      %v635 = vunpack.c.h.b16 %v476
      %v636 = vunpack.c.l.b16 %v477
      %v637 = vunpack.c.h.b16 %v477
      %v638 = vunpack.c.l.b16 %v478
      %v639 = vunpack.c.h.b16 %v478
      %v640 = vunpack.c.l.b16 %v479
      %v641 = vunpack.c.h.b16 %v479
      %v642 = vunpack.c.l.b16 %v480
      %v643 = vunpack.c.h.b16 %v480
      %v644 = vunpack.c.l.b16 %v481
      %v645 = vunpack.c.h.b16 %v481
      %v646 = vunpack.c.l.b16 %v482
      %v647 = vunpack.c.h.b16 %v482
      %v648 = vunpack.c.l.b16 %v483
      %v649 = vunpack.c.h.b16 %v483
      %v650 = vunpack.c.l.b16 %v484
      %v651 = vunpack.c.h.b16 %v484
      %v652 = vunpack.c.l.b16 %v485
      %v653 = vunpack.c.h.b16 %v485
      %v654 = vunpack.c.l.b16 %v486
      %v655 = vunpack.c.h.b16 %v486
      %v656 = vunpack.c.l.b16 %v487
      %v657 = vunpack.c.h.b16 %v487
      %v658 = vunpack.c.l.b16 %v488
      %v659 = vunpack.c.h.b16 %v488
      %v660 = vunpack.c.l.b16 %v489
      %v661 = vunpack.c.h.b16 %v489
      %v662 = vunpack.c.l.b16 %v490
      %v663 = vunpack.c.h.b16 %v490
      %v664 = vunpack.c.l.b16 %v491
      %v665 = vunpack.c.h.b16 %v491
      %v666 = vunpack.c.l.b16 %v492
      %v667 = vunpack.c.h.b16 %v492
      %v668 = vunpack.c.l.b16 %v493
      %v669 = vunpack.c.h.b16 %v493
      %v670 = vunpack.c.l.b16 %v494
      %v671 = vunpack.c.h.b16 %v494
      %v672 = vunpack.c.l.b16 %v495
      %v673 = vunpack.c.h.b16 %v495
      %v674 = vunpack.c.l.b16 %v496
      %v675 = vunpack.c.h.b16 %v496
      %v676 = vunpack.c.l.b16 %v497
      %v677 = vunpack.c.h.b16 %v497
      %v678 = vpack.c.b16 %v630, %v614
      %v679 = vpack.c.b16 %v631, %v615
      %v680 = vpack.c.b16 %v632, %v616
      %v681 = vpack.c.b16 %v633, %v617
      %v682 = vpack.c.b16 %v634, %v618
      %v683 = vpack.c.b16 %v635, %v619
      %v684 = vpack.c.b16 %v636, %v620
      %v685 = vpack.c.b16 %v637, %v621
      %v686 = vpack.c.b16 %v638, %v622
      %v687 = vpack.c.b16 %v639, %v623
      %v688 = vpack.c.b16 %v640, %v624
      %v689 = vpack.c.b16 %v641, %v625
      %v690 = vpack.c.b16 %v642, %v626
      %v691 = vpack.c.b16 %v643, %v627
      %v692 = vpack.c.b16 %v644, %v628
      %v693 = vpack.c.b16 %v645, %v629
      %v694 = vpack.c.b16 %v662, %v646
      %v695 = vpack.c.b16 %v663, %v647
      %v696 = vpack.c.b16 %v664, %v648
      %v697 = vpack.c.b16 %v665, %v649
      %v698 = vpack.c.b16 %v666, %v650
      %v699 = vpack.c.b16 %v667, %v651
      %v700 = vpack.c.b16 %v668, %v652
      %v701 = vpack.c.b16 %v669, %v653
      %v702 = vpack.c.b16 %v670, %v654
      %v703 = vpack.c.b16 %v671, %v655
      %v704 = vpack.c.b16 %v672, %v656
      %v705 = vpack.c.b16 %v673, %v657
      %v706 = vpack.c.b16 %v674, %v658
      %v707 = vpack.c.b16 %v675, %v659
      %v708 = vpack.c.b16 %v676, %v660
      %v709 = vpack.c.b16 %v677, %v661
      %vm742 = vcmask 261120
      %v744 = vsel %vm742, %v462, 0
      %v747 = vsel %vm742, %v463, 0
      %v750 = vsel %vm742, %v464, 0
      %v753 = vsel %vm742, %v465, 0
      %755 = vmatprep.subr.bf16.mxu0 0
      %756 = vmatpush1.bf16.msra.mxu0 0
      %757 = vmatprep.subr.bf16.mxu0 0
      %758 = vmatpush1.bf16.msra.mxu0 0
      %759 = vmatprep.subr.bf16.mxu0 0
      %760 = vmatpush1.bf16.msra.mxu0 0
      %761 = vmatprep.subr.bf16.mxu0 0
      %762 = vmatpush1.bf16.msra.mxu0 0
      %763 = vmatprep.subr.bf16.mxu0 0
      %764 = vmatpush1.bf16.msra.mxu0 0
      %765 = vmatprep.subr.bf16.mxu0 0
      %766 = vmatpush1.bf16.msra.mxu0 0
      %767 = vmatprep.subr.bf16.mxu0 %v695
      %768 = vmatpush1.bf16.msra.mxu0 %v694
      %769 = vmatprep.subr.bf16.mxu0 %v679
      %770 = vmatpush1.bf16.msra.mxu0 %v678
      %771 = vmatprep.subr.bf16.mxu0 0
      %772 = vmatpush2.bf16.msra.mxu0 0
      %773 = vmatprep.subr.bf16.mxu0 0
      %774 = vmatpush2.bf16.msra.mxu0 0
      %775 = vmatprep.subr.bf16.mxu0 0
      %776 = vmatpush2.bf16.msra.mxu0 0
      %777 = vmatprep.subr.bf16.mxu0 0
      %778 = vmatpush2.bf16.msra.mxu0 0
      %779 = vmatprep.subr.bf16.mxu0 0
      %780 = vmatpush2.bf16.msra.mxu0 0
      %781 = vmatprep.subr.bf16.mxu0 0
      %782 = vmatpush2.bf16.msra.mxu0 0
      %783 = vmatprep.subr.bf16.mxu0 0
      %784 = vmatpush2.bf16.msra.mxu0 0
      %785 = vmatprep.subr.bf16.mxu0 0
      %786 = vmatpush2.bf16.msra.mxu0 0
      %787 = vmatprep.mubr.bf16.mxu0 0
      %788 = vmatmul.mubr.bf16.gmra.mxu0 %v744
      %v789 = vpop.f32.mrf.mxu0
      %v790 = vadd.f32 %v505, %v789
      %v791 = vpop.f32.mrf.mxu0
      %v792 = vadd.f32 %v509, %v791
      %v793 = vpop.f32.mrf.mxu0
      %v794 = vadd.f32 %v505, %v793
      %v795 = vpop.f32.mrf.mxu0
      %v796 = vadd.f32 %v509, %v795
      %797 = vmatprep.mubr.bf16.mxu0 0
      %798 = vmatmul.mubr.bf16.gmra.mxu0 %v747
      %v799 = vpop.f32.mrf.mxu0
      %v800 = vadd.f32 %v505, %v799
      %v801 = vpop.f32.mrf.mxu0
      %v802 = vadd.f32 %v509, %v801
      %v803 = vpop.f32.mrf.mxu0
      %v804 = vadd.f32 %v505, %v803
      %v805 = vpop.f32.mrf.mxu0
      %v806 = vadd.f32 %v509, %v805
      %807 = vmatprep.mubr.bf16.mxu0 0
      %808 = vmatmul.mubr.bf16.gmra.mxu0 %v750
      %v809 = vpop.f32.mrf.mxu0
      %v810 = vadd.f32 %v505, %v809
      %v811 = vpop.f32.mrf.mxu0
      %v812 = vadd.f32 %v509, %v811
      %v813 = vpop.f32.mrf.mxu0
      %v814 = vadd.f32 %v505, %v813
      %v815 = vpop.f32.mrf.mxu0
      %v816 = vadd.f32 %v509, %v815
      %817 = vmatprep.mubr.bf16.mxu0 0
      %818 = vmatmul.mubr.bf16.gmra.mxu0 %v753
      %v819 = vpop.f32.mrf.mxu0
      %v820 = vadd.f32 %v505, %v819
      %v821 = vpop.f32.mrf.mxu0
      %v822 = vadd.f32 %v509, %v821
      %v823 = vpop.f32.mrf.mxu0
      %v824 = vpop.f32.mrf.mxu0
      %825 = vdwg.mxu0
      %826 = vmatprep.subr.bf16.mxu0 0
      %827 = vmatpush1.bf16.msra.mxu0 0
      %828 = vmatprep.subr.bf16.mxu0 0
      %829 = vmatpush1.bf16.msra.mxu0 0
      %830 = vmatprep.subr.bf16.mxu0 0
      %831 = vmatpush1.bf16.msra.mxu0 0
      %832 = vmatprep.subr.bf16.mxu0 0
      %833 = vmatpush1.bf16.msra.mxu0 0
      %834 = vmatprep.subr.bf16.mxu0 0
      %835 = vmatpush1.bf16.msra.mxu0 0
      %836 = vmatprep.subr.bf16.mxu0 0
      %837 = vmatpush1.bf16.msra.mxu0 0
      %838 = vmatprep.subr.bf16.mxu0 %v697
      %839 = vmatpush1.bf16.msra.mxu0 %v696
      %840 = vmatprep.subr.bf16.mxu0 %v681
      %841 = vmatpush1.bf16.msra.mxu0 %v680
      %842 = vmatprep.subr.bf16.mxu0 0
      %843 = vmatpush2.bf16.msra.mxu0 0
      %844 = vmatprep.subr.bf16.mxu0 0
      %845 = vmatpush2.bf16.msra.mxu0 0
      %846 = vmatprep.subr.bf16.mxu0 0
      %847 = vmatpush2.bf16.msra.mxu0 0
      %848 = vmatprep.subr.bf16.mxu0 0
      %849 = vmatpush2.bf16.msra.mxu0 0
      %850 = vmatprep.subr.bf16.mxu0 0
      %851 = vmatpush2.bf16.msra.mxu0 0
      %852 = vmatprep.subr.bf16.mxu0 0
      %853 = vmatpush2.bf16.msra.mxu0 0
      %854 = vmatprep.subr.bf16.mxu0 0
      %855 = vmatpush2.bf16.msra.mxu0 0
      %856 = vmatprep.subr.bf16.mxu0 0
      %857 = vmatpush2.bf16.msra.mxu0 0
      %858 = vmatprep.mubr.bf16.mxu0 0
      %859 = vmatmul.mubr.bf16.gmra.mxu0 %v744
      %v860 = vpop.f32.mrf.mxu0
      %v861 = vadd.f32 %v513, %v860
      %v862 = vpop.f32.mrf.mxu0
      %v863 = vadd.f32 %v517, %v862
      %v864 = vpop.f32.mrf.mxu0
      %v865 = vadd.f32 %v513, %v864
      %v866 = vpop.f32.mrf.mxu0
      %v867 = vadd.f32 %v517, %v866
      %868 = vmatprep.mubr.bf16.mxu0 0
      %869 = vmatmul.mubr.bf16.gmra.mxu0 %v747
      %v870 = vpop.f32.mrf.mxu0
      %v871 = vadd.f32 %v513, %v870
      %v872 = vpop.f32.mrf.mxu0
      %v873 = vadd.f32 %v517, %v872
      %v874 = vpop.f32.mrf.mxu0
      %v875 = vadd.f32 %v513, %v874
      %v876 = vpop.f32.mrf.mxu0
      %v877 = vadd.f32 %v517, %v876
      %878 = vmatprep.mubr.bf16.mxu0 0
      %879 = vmatmul.mubr.bf16.gmra.mxu0 %v750
      %v880 = vpop.f32.mrf.mxu0
      %v881 = vadd.f32 %v513, %v880
      %v882 = vpop.f32.mrf.mxu0
      %v883 = vadd.f32 %v517, %v882
      %v884 = vpop.f32.mrf.mxu0
      %v885 = vadd.f32 %v513, %v884
      %v886 = vpop.f32.mrf.mxu0
      %v887 = vadd.f32 %v517, %v886
      %888 = vmatprep.mubr.bf16.mxu0 0
      %889 = vmatmul.mubr.bf16.gmra.mxu0 %v753
      %v890 = vpop.f32.mrf.mxu0
      %v891 = vadd.f32 %v513, %v890
      %v892 = vpop.f32.mrf.mxu0
      %v893 = vadd.f32 %v517, %v892
      %v894 = vpop.f32.mrf.mxu0
      %v895 = vpop.f32.mrf.mxu0
      %896 = vdwg.mxu0
      %897 = vmatprep.subr.bf16.mxu0 0
      %898 = vmatpush1.bf16.msra.mxu0 0
      %899 = vmatprep.subr.bf16.mxu0 0
      %900 = vmatpush1.bf16.msra.mxu0 0
      %901 = vmatprep.subr.bf16.mxu0 0
      %902 = vmatpush1.bf16.msra.mxu0 0
      %903 = vmatprep.subr.bf16.mxu0 0
      %904 = vmatpush1.bf16.msra.mxu0 0
      %905 = vmatprep.subr.bf16.mxu0 0
      %906 = vmatpush1.bf16.msra.mxu0 0
      %907 = vmatprep.subr.bf16.mxu0 0
      %908 = vmatpush1.bf16.msra.mxu0 0
      %909 = vmatprep.subr.bf16.mxu0 %v699
      %910 = vmatpush1.bf16.msra.mxu0 %v698
      %911 = vmatprep.subr.bf16.mxu0 %v683
      %912 = vmatpush1.bf16.msra.mxu0 %v682
      %913 = vmatprep.subr.bf16.mxu0 0
      %914 = vmatpush2.bf16.msra.mxu0 0
      %915 = vmatprep.subr.bf16.mxu0 0
      %916 = vmatpush2.bf16.msra.mxu0 0
      %917 = vmatprep.subr.bf16.mxu0 0
      %918 = vmatpush2.bf16.msra.mxu0 0
      %919 = vmatprep.subr.bf16.mxu0 0
      %920 = vmatpush2.bf16.msra.mxu0 0
      %921 = vmatprep.subr.bf16.mxu0 0
      %922 = vmatpush2.bf16.msra.mxu0 0
      %923 = vmatprep.subr.bf16.mxu0 0
      %924 = vmatpush2.bf16.msra.mxu0 0
      %925 = vmatprep.subr.bf16.mxu0 0
      %926 = vmatpush2.bf16.msra.mxu0 0
      %927 = vmatprep.subr.bf16.mxu0 0
      %928 = vmatpush2.bf16.msra.mxu0 0
      %929 = vmatprep.mubr.bf16.mxu0 0
      %930 = vmatmul.mubr.bf16.gmra.mxu0 %v744
      %v931 = vpop.f32.mrf.mxu0
      %v932 = vadd.f32 %v521, %v931
      %v933 = vpop.f32.mrf.mxu0
      %v934 = vadd.f32 %v525, %v933
      %v935 = vpop.f32.mrf.mxu0
      %v936 = vadd.f32 %v521, %v935
      %v937 = vpop.f32.mrf.mxu0
      %v938 = vadd.f32 %v525, %v937
      %939 = vmatprep.mubr.bf16.mxu0 0
      %940 = vmatmul.mubr.bf16.gmra.mxu0 %v747
      %v941 = vpop.f32.mrf.mxu0
      %v942 = vadd.f32 %v521, %v941
      %v943 = vpop.f32.mrf.mxu0
      %v944 = vadd.f32 %v525, %v943
      %v945 = vpop.f32.mrf.mxu0
      %v946 = vadd.f32 %v521, %v945
      %v947 = vpop.f32.mrf.mxu0
      %v948 = vadd.f32 %v525, %v947
      %949 = vmatprep.mubr.bf16.mxu0 0
      %950 = vmatmul.mubr.bf16.gmra.mxu0 %v750
      %v951 = vpop.f32.mrf.mxu0
      %v952 = vadd.f32 %v521, %v951
      %v953 = vpop.f32.mrf.mxu0
      %v954 = vadd.f32 %v525, %v953
      %v955 = vpop.f32.mrf.mxu0
      %v956 = vadd.f32 %v521, %v955
      %v957 = vpop.f32.mrf.mxu0
      %v958 = vadd.f32 %v525, %v957
      %959 = vmatprep.mubr.bf16.mxu0 0
      %960 = vmatmul.mubr.bf16.gmra.mxu0 %v753
      %v961 = vpop.f32.mrf.mxu0
      %v962 = vadd.f32 %v521, %v961
      %v963 = vpop.f32.mrf.mxu0
      %v964 = vadd.f32 %v525, %v963
      %v965 = vpop.f32.mrf.mxu0
      %v966 = vpop.f32.mrf.mxu0
      %967 = vdwg.mxu0
      %968 = vmatprep.subr.bf16.mxu0 0
      %969 = vmatpush1.bf16.msra.mxu0 0
      %970 = vmatprep.subr.bf16.mxu0 0
      %971 = vmatpush1.bf16.msra.mxu0 0
      %972 = vmatprep.subr.bf16.mxu0 0
      %973 = vmatpush1.bf16.msra.mxu0 0
      %974 = vmatprep.subr.bf16.mxu0 0
      %975 = vmatpush1.bf16.msra.mxu0 0
      %976 = vmatprep.subr.bf16.mxu0 0
      %977 = vmatpush1.bf16.msra.mxu0 0
      %978 = vmatprep.subr.bf16.mxu0 0
      %979 = vmatpush1.bf16.msra.mxu0 0
      %980 = vmatprep.subr.bf16.mxu0 %v701
      %981 = vmatpush1.bf16.msra.mxu0 %v700
      %982 = vmatprep.subr.bf16.mxu0 %v685
      %983 = vmatpush1.bf16.msra.mxu0 %v684
      %984 = vmatprep.subr.bf16.mxu0 0
      %985 = vmatpush2.bf16.msra.mxu0 0
      %986 = vmatprep.subr.bf16.mxu0 0
      %987 = vmatpush2.bf16.msra.mxu0 0
      %988 = vmatprep.subr.bf16.mxu0 0
      %989 = vmatpush2.bf16.msra.mxu0 0
      %990 = vmatprep.subr.bf16.mxu0 0
      %991 = vmatpush2.bf16.msra.mxu0 0
      %992 = vmatprep.subr.bf16.mxu0 0
      %993 = vmatpush2.bf16.msra.mxu0 0
      %994 = vmatprep.subr.bf16.mxu0 0
      %995 = vmatpush2.bf16.msra.mxu0 0
      %996 = vmatprep.subr.bf16.mxu0 0
      %997 = vmatpush2.bf16.msra.mxu0 0
      %998 = vmatprep.subr.bf16.mxu0 0
      %999 = vmatpush2.bf16.msra.mxu0 0
      %1000 = vmatprep.mubr.bf16.mxu0 0
      %1001 = vmatmul.mubr.bf16.gmra.mxu0 %v744
      %v1002 = vpop.f32.mrf.mxu0
      %v1003 = vadd.f32 %v529, %v1002
      %v1004 = vpop.f32.mrf.mxu0
      %v1005 = vadd.f32 %v533, %v1004
      %v1006 = vpop.f32.mrf.mxu0
      %v1007 = vadd.f32 %v529, %v1006
      %v1008 = vpop.f32.mrf.mxu0
      %v1009 = vadd.f32 %v533, %v1008
      %1010 = vmatprep.mubr.bf16.mxu0 0
      %1011 = vmatmul.mubr.bf16.gmra.mxu0 %v747
      %v1012 = vpop.f32.mrf.mxu0
      %v1013 = vadd.f32 %v529, %v1012
      %v1014 = vpop.f32.mrf.mxu0
      %v1015 = vadd.f32 %v533, %v1014
      %v1016 = vpop.f32.mrf.mxu0
      %v1017 = vadd.f32 %v529, %v1016
      %v1018 = vpop.f32.mrf.mxu0
      %v1019 = vadd.f32 %v533, %v1018
      %1020 = vmatprep.mubr.bf16.mxu0 0
      %1021 = vmatmul.mubr.bf16.gmra.mxu0 %v750
      %v1022 = vpop.f32.mrf.mxu0
      %v1023 = vadd.f32 %v529, %v1022
      %v1024 = vpop.f32.mrf.mxu0
      %v1025 = vadd.f32 %v533, %v1024
      %v1026 = vpop.f32.mrf.mxu0
      %v1027 = vadd.f32 %v529, %v1026
      %v1028 = vpop.f32.mrf.mxu0
      %v1029 = vadd.f32 %v533, %v1028
      %1030 = vmatprep.mubr.bf16.mxu0 0
      %1031 = vmatmul.mubr.bf16.gmra.mxu0 %v753
      %v1032 = vpop.f32.mrf.mxu0
      %v1033 = vadd.f32 %v529, %v1032
      %v1034 = vpop.f32.mrf.mxu0
      %v1035 = vadd.f32 %v533, %v1034
      %v1036 = vpop.f32.mrf.mxu0
      %v1037 = vpop.f32.mrf.mxu0
      %1038 = vdwg.mxu0
      %1039 = vmatprep.subr.bf16.mxu0 0
      %1040 = vmatpush1.bf16.msra.mxu0 0
      %1041 = vmatprep.subr.bf16.mxu0 0
      %1042 = vmatpush1.bf16.msra.mxu0 0
      %1043 = vmatprep.subr.bf16.mxu0 0
      %1044 = vmatpush1.bf16.msra.mxu0 0
      %1045 = vmatprep.subr.bf16.mxu0 0
      %1046 = vmatpush1.bf16.msra.mxu0 0
      %1047 = vmatprep.subr.bf16.mxu0 0
      %1048 = vmatpush1.bf16.msra.mxu0 0
      %1049 = vmatprep.subr.bf16.mxu0 0
      %1050 = vmatpush1.bf16.msra.mxu0 0
      %1051 = vmatprep.subr.bf16.mxu0 %v703
      %1052 = vmatpush1.bf16.msra.mxu0 %v702
      %1053 = vmatprep.subr.bf16.mxu0 %v687
      %1054 = vmatpush1.bf16.msra.mxu0 %v686
      %1055 = vmatprep.subr.bf16.mxu0 0
      %1056 = vmatpush2.bf16.msra.mxu0 0
      %1057 = vmatprep.subr.bf16.mxu0 0
      %1058 = vmatpush2.bf16.msra.mxu0 0
      %1059 = vmatprep.subr.bf16.mxu0 0
      %1060 = vmatpush2.bf16.msra.mxu0 0
      %1061 = vmatprep.subr.bf16.mxu0 0
      %1062 = vmatpush2.bf16.msra.mxu0 0
      %1063 = vmatprep.subr.bf16.mxu0 0
      %1064 = vmatpush2.bf16.msra.mxu0 0
      %1065 = vmatprep.subr.bf16.mxu0 0
      %1066 = vmatpush2.bf16.msra.mxu0 0
      %1067 = vmatprep.subr.bf16.mxu0 0
      %1068 = vmatpush2.bf16.msra.mxu0 0
      %1069 = vmatprep.subr.bf16.mxu0 0
      %1070 = vmatpush2.bf16.msra.mxu0 0
      %1071 = vmatprep.mubr.bf16.mxu0 0
      %1072 = vmatmul.mubr.bf16.gmra.mxu0 %v744
      %v1073 = vpop.f32.mrf.mxu0
      %v1074 = vadd.f32 %v537, %v1073
      %v1075 = vpop.f32.mrf.mxu0
      %v1076 = vadd.f32 %v541, %v1075
      %v1077 = vpop.f32.mrf.mxu0
      %v1078 = vadd.f32 %v537, %v1077
      %v1079 = vpop.f32.mrf.mxu0
      %v1080 = vadd.f32 %v541, %v1079
      %1081 = vmatprep.mubr.bf16.mxu0 0
      %1082 = vmatmul.mubr.bf16.gmra.mxu0 %v747
      %v1083 = vpop.f32.mrf.mxu0
      %v1084 = vadd.f32 %v537, %v1083
      %v1085 = vpop.f32.mrf.mxu0
      %v1086 = vadd.f32 %v541, %v1085
      %v1087 = vpop.f32.mrf.mxu0
      %v1088 = vadd.f32 %v537, %v1087
      %v1089 = vpop.f32.mrf.mxu0
      %v1090 = vadd.f32 %v541, %v1089
      %1091 = vmatprep.mubr.bf16.mxu0 0
      %1092 = vmatmul.mubr.bf16.gmra.mxu0 %v750
      %v1093 = vpop.f32.mrf.mxu0
      %v1094 = vadd.f32 %v537, %v1093
      %v1095 = vpop.f32.mrf.mxu0
      %v1096 = vadd.f32 %v541, %v1095
      %v1097 = vpop.f32.mrf.mxu0
      %v1098 = vadd.f32 %v537, %v1097
      %v1099 = vpop.f32.mrf.mxu0
      %v1100 = vadd.f32 %v541, %v1099
      %1101 = vmatprep.mubr.bf16.mxu0 0
      %1102 = vmatmul.mubr.bf16.gmra.mxu0 %v753
      %v1103 = vpop.f32.mrf.mxu0
      %v1104 = vadd.f32 %v537, %v1103
      %v1105 = vpop.f32.mrf.mxu0
      %v1106 = vadd.f32 %v541, %v1105
      %v1107 = vpop.f32.mrf.mxu0
      %v1108 = vpop.f32.mrf.mxu0
      %1109 = vdwg.mxu0
      %1110 = vmatprep.subr.bf16.mxu0 0
      %1111 = vmatpush1.bf16.msra.mxu0 0
      %1112 = vmatprep.subr.bf16.mxu0 0
      %1113 = vmatpush1.bf16.msra.mxu0 0
      %1114 = vmatprep.subr.bf16.mxu0 0
      %1115 = vmatpush1.bf16.msra.mxu0 0
      %1116 = vmatprep.subr.bf16.mxu0 0
      %1117 = vmatpush1.bf16.msra.mxu0 0
      %1118 = vmatprep.subr.bf16.mxu0 0
      %1119 = vmatpush1.bf16.msra.mxu0 0
      %1120 = vmatprep.subr.bf16.mxu0 0
      %1121 = vmatpush1.bf16.msra.mxu0 0
      %1122 = vmatprep.subr.bf16.mxu0 %v705
      %1123 = vmatpush1.bf16.msra.mxu0 %v704
      %1124 = vmatprep.subr.bf16.mxu0 %v689
      %1125 = vmatpush1.bf16.msra.mxu0 %v688
      %1126 = vmatprep.subr.bf16.mxu0 0
      %1127 = vmatpush2.bf16.msra.mxu0 0
      %1128 = vmatprep.subr.bf16.mxu0 0
      %1129 = vmatpush2.bf16.msra.mxu0 0
      %1130 = vmatprep.subr.bf16.mxu0 0
      %1131 = vmatpush2.bf16.msra.mxu0 0
      %1132 = vmatprep.subr.bf16.mxu0 0
      %1133 = vmatpush2.bf16.msra.mxu0 0
      %1134 = vmatprep.subr.bf16.mxu0 0
      %1135 = vmatpush2.bf16.msra.mxu0 0
      %1136 = vmatprep.subr.bf16.mxu0 0
      %1137 = vmatpush2.bf16.msra.mxu0 0
      %1138 = vmatprep.subr.bf16.mxu0 0
      %1139 = vmatpush2.bf16.msra.mxu0 0
      %1140 = vmatprep.subr.bf16.mxu0 0
      %1141 = vmatpush2.bf16.msra.mxu0 0
      %1142 = vmatprep.mubr.bf16.mxu0 0
      %1143 = vmatmul.mubr.bf16.gmra.mxu0 %v744
      %v1144 = vpop.f32.mrf.mxu0
      %v1145 = vadd.f32 %v545, %v1144
      %v1146 = vpop.f32.mrf.mxu0
      %v1147 = vadd.f32 %v549, %v1146
      %v1148 = vpop.f32.mrf.mxu0
      %v1149 = vadd.f32 %v545, %v1148
      %v1150 = vpop.f32.mrf.mxu0
      %v1151 = vadd.f32 %v549, %v1150
      %1152 = vmatprep.mubr.bf16.mxu0 0
      %1153 = vmatmul.mubr.bf16.gmra.mxu0 %v747
      %v1154 = vpop.f32.mrf.mxu0
      %v1155 = vadd.f32 %v545, %v1154
      %v1156 = vpop.f32.mrf.mxu0
      %v1157 = vadd.f32 %v549, %v1156
      %v1158 = vpop.f32.mrf.mxu0
      %v1159 = vadd.f32 %v545, %v1158
      %v1160 = vpop.f32.mrf.mxu0
      %v1161 = vadd.f32 %v549, %v1160
      %1162 = vmatprep.mubr.bf16.mxu0 0
      %1163 = vmatmul.mubr.bf16.gmra.mxu0 %v750
      %v1164 = vpop.f32.mrf.mxu0
      %v1165 = vadd.f32 %v545, %v1164
      %v1166 = vpop.f32.mrf.mxu0
      %v1167 = vadd.f32 %v549, %v1166
      %v1168 = vpop.f32.mrf.mxu0
      %v1169 = vadd.f32 %v545, %v1168
      %v1170 = vpop.f32.mrf.mxu0
      %v1171 = vadd.f32 %v549, %v1170
      %1172 = vmatprep.mubr.bf16.mxu0 0
      %1173 = vmatmul.mubr.bf16.gmra.mxu0 %v753
      %v1174 = vpop.f32.mrf.mxu0
      %v1175 = vadd.f32 %v545, %v1174
      %v1176 = vpop.f32.mrf.mxu0
      %v1177 = vadd.f32 %v549, %v1176
      %v1178 = vpop.f32.mrf.mxu0
      %v1179 = vpop.f32.mrf.mxu0
      %1180 = vdwg.mxu0
      %1181 = vmatprep.subr.bf16.mxu0 0
      %1182 = vmatpush1.bf16.msra.mxu0 0
      %1183 = vmatprep.subr.bf16.mxu0 0
      %1184 = vmatpush1.bf16.msra.mxu0 0
      %1185 = vmatprep.subr.bf16.mxu0 0
      %1186 = vmatpush1.bf16.msra.mxu0 0
      %1187 = vmatprep.subr.bf16.mxu0 0
      %1188 = vmatpush1.bf16.msra.mxu0 0
      %1189 = vmatprep.subr.bf16.mxu0 0
      %1190 = vmatpush1.bf16.msra.mxu0 0
      %1191 = vmatprep.subr.bf16.mxu0 0
      %1192 = vmatpush1.bf16.msra.mxu0 0
      %1193 = vmatprep.subr.bf16.mxu0 %v707
      %1194 = vmatpush1.bf16.msra.mxu0 %v706
      %1195 = vmatprep.subr.bf16.mxu0 %v691
      %1196 = vmatpush1.bf16.msra.mxu0 %v690
      %1197 = vmatprep.subr.bf16.mxu0 0
      %1198 = vmatpush2.bf16.msra.mxu0 0
      %1199 = vmatprep.subr.bf16.mxu0 0
      %1200 = vmatpush2.bf16.msra.mxu0 0
      %1201 = vmatprep.subr.bf16.mxu0 0
      %1202 = vmatpush2.bf16.msra.mxu0 0
      %1203 = vmatprep.subr.bf16.mxu0 0
      %1204 = vmatpush2.bf16.msra.mxu0 0
      %1205 = vmatprep.subr.bf16.mxu0 0
      %1206 = vmatpush2.bf16.msra.mxu0 0
      %1207 = vmatprep.subr.bf16.mxu0 0
      %1208 = vmatpush2.bf16.msra.mxu0 0
      %1209 = vmatprep.subr.bf16.mxu0 0
      %1210 = vmatpush2.bf16.msra.mxu0 0
      %1211 = vmatprep.subr.bf16.mxu0 0
      %1212 = vmatpush2.bf16.msra.mxu0 0
      %1213 = vmatprep.mubr.bf16.mxu0 0
      %1214 = vmatmul.mubr.bf16.gmra.mxu0 %v744
      %v1215 = vpop.f32.mrf.mxu0
      %v1216 = vadd.f32 %v553, %v1215
      %v1217 = vpop.f32.mrf.mxu0
      %v1218 = vadd.f32 %v557, %v1217
      %v1219 = vpop.f32.mrf.mxu0
      %v1220 = vadd.f32 %v553, %v1219
      %v1221 = vpop.f32.mrf.mxu0
      %v1222 = vadd.f32 %v557, %v1221
      %1223 = vmatprep.mubr.bf16.mxu0 0
      %1224 = vmatmul.mubr.bf16.gmra.mxu0 %v747
      %v1225 = vpop.f32.mrf.mxu0
      %v1226 = vadd.f32 %v553, %v1225
      %v1227 = vpop.f32.mrf.mxu0
      %v1228 = vadd.f32 %v557, %v1227
      %v1229 = vpop.f32.mrf.mxu0
      %v1230 = vadd.f32 %v553, %v1229
      %v1231 = vpop.f32.mrf.mxu0
      %v1232 = vadd.f32 %v557, %v1231
      %1233 = vmatprep.mubr.bf16.mxu0 0
      %1234 = vmatmul.mubr.bf16.gmra.mxu0 %v750
      %v1235 = vpop.f32.mrf.mxu0
      %v1236 = vadd.f32 %v553, %v1235
      %v1237 = vpop.f32.mrf.mxu0
      %v1238 = vadd.f32 %v557, %v1237
      %v1239 = vpop.f32.mrf.mxu0
      %v1240 = vadd.f32 %v553, %v1239
      %v1241 = vpop.f32.mrf.mxu0
      %v1242 = vadd.f32 %v557, %v1241
      %1243 = vmatprep.mubr.bf16.mxu0 0
      %1244 = vmatmul.mubr.bf16.gmra.mxu0 %v753
      %v1245 = vpop.f32.mrf.mxu0
      %v1246 = vadd.f32 %v553, %v1245
      %v1247 = vpop.f32.mrf.mxu0
      %v1248 = vadd.f32 %v557, %v1247
      %v1249 = vpop.f32.mrf.mxu0
      %v1250 = vpop.f32.mrf.mxu0
      %1251 = vdwg.mxu0
      %1252 = vmatprep.subr.bf16.mxu0 0
      %1253 = vmatpush1.bf16.msra.mxu0 0
      %1254 = vmatprep.subr.bf16.mxu0 0
      %1255 = vmatpush1.bf16.msra.mxu0 0
      %1256 = vmatprep.subr.bf16.mxu0 0
      %1257 = vmatpush1.bf16.msra.mxu0 0
      %1258 = vmatprep.subr.bf16.mxu0 0
      %1259 = vmatpush1.bf16.msra.mxu0 0
      %1260 = vmatprep.subr.bf16.mxu0 0
      %1261 = vmatpush1.bf16.msra.mxu0 0
      %1262 = vmatprep.subr.bf16.mxu0 0
      %1263 = vmatpush1.bf16.msra.mxu0 0
      %1264 = vmatprep.subr.bf16.mxu0 %v709
      %1265 = vmatpush1.bf16.msra.mxu0 %v708
      %1266 = vmatprep.subr.bf16.mxu0 %v693
      %1267 = vmatpush1.bf16.msra.mxu0 %v692
      %1268 = vmatprep.subr.bf16.mxu0 0
      %1269 = vmatpush2.bf16.msra.mxu0 0
      %1270 = vmatprep.subr.bf16.mxu0 0
      %1271 = vmatpush2.bf16.msra.mxu0 0
      %1272 = vmatprep.subr.bf16.mxu0 0
      %1273 = vmatpush2.bf16.msra.mxu0 0
      %1274 = vmatprep.subr.bf16.mxu0 0
      %1275 = vmatpush2.bf16.msra.mxu0 0
      %1276 = vmatprep.subr.bf16.mxu0 0
      %1277 = vmatpush2.bf16.msra.mxu0 0
      %1278 = vmatprep.subr.bf16.mxu0 0
      %1279 = vmatpush2.bf16.msra.mxu0 0
      %1280 = vmatprep.subr.bf16.mxu0 0
      %1281 = vmatpush2.bf16.msra.mxu0 0
      %1282 = vmatprep.subr.bf16.mxu0 0
      %1283 = vmatpush2.bf16.msra.mxu0 0
      %1284 = vmatprep.mubr.bf16.mxu0 0
      %1285 = vmatmul.mubr.bf16.gmra.mxu0 %v744
      %v1286 = vpop.f32.mrf.mxu0
      %v1287 = vadd.f32 %v561, %v1286
      %v1288 = vpop.f32.mrf.mxu0
      %v1289 = vadd.f32 %v565, %v1288
      %v1290 = vpop.f32.mrf.mxu0
      %v1291 = vadd.f32 %v561, %v1290
      %v1292 = vpop.f32.mrf.mxu0
      %v1293 = vadd.f32 %v565, %v1292
      %1294 = vmatprep.mubr.bf16.mxu0 0
      %1295 = vmatmul.mubr.bf16.gmra.mxu0 %v747
      %v1296 = vpop.f32.mrf.mxu0
      %v1297 = vadd.f32 %v561, %v1296
      %v1298 = vpop.f32.mrf.mxu0
      %v1299 = vadd.f32 %v565, %v1298
      %v1300 = vpop.f32.mrf.mxu0
      %v1301 = vadd.f32 %v561, %v1300
      %v1302 = vpop.f32.mrf.mxu0
      %v1303 = vadd.f32 %v565, %v1302
      %1304 = vmatprep.mubr.bf16.mxu0 0
      %1305 = vmatmul.mubr.bf16.gmra.mxu0 %v750
      %v1306 = vpop.f32.mrf.mxu0
      %v1307 = vadd.f32 %v561, %v1306
      %v1308 = vpop.f32.mrf.mxu0
      %v1309 = vadd.f32 %v565, %v1308
      %v1310 = vpop.f32.mrf.mxu0
      %v1311 = vadd.f32 %v561, %v1310
      %v1312 = vpop.f32.mrf.mxu0
      %v1313 = vadd.f32 %v565, %v1312
      %1314 = vmatprep.mubr.bf16.mxu0 0
      %1315 = vmatmul.mubr.bf16.gmra.mxu0 %v753
      %v1316 = vpop.f32.mrf.mxu0
      %v1317 = vadd.f32 %v561, %v1316
      %v1318 = vpop.f32.mrf.mxu0
      %v1319 = vadd.f32 %v565, %v1318
      %v1320 = vpop.f32.mrf.mxu0
      %v1321 = vpop.f32.mrf.mxu0
      %1322 = vdwg.mxu0
      %v1323 = vmax.f32 %v790, 0.0
      %v1324 = vmax.f32 %v792, 0.0
      %v1325 = vmax.f32 %v861, 0.0
      %v1326 = vmax.f32 %v863, 0.0
      %v1327 = vmax.f32 %v932, 0.0
      %v1328 = vmax.f32 %v934, 0.0
      %v1329 = vmax.f32 %v1003, 0.0
      %v1330 = vmax.f32 %v1005, 0.0
      %v1331 = vmax.f32 %v1074, 0.0
      %v1332 = vmax.f32 %v1076, 0.0
      %v1333 = vmax.f32 %v1145, 0.0
      %v1334 = vmax.f32 %v1147, 0.0
      %v1335 = vmax.f32 %v1216, 0.0
      %v1336 = vmax.f32 %v1218, 0.0
      %v1337 = vmax.f32 %v1287, 0.0
      %v1338 = vmax.f32 %v1289, 0.0
      %v1339 = vmax.f32 %v794, 0.0
      %v1340 = vmax.f32 %v796, 0.0
      %v1341 = vmax.f32 %v865, 0.0
      %v1342 = vmax.f32 %v867, 0.0
      %v1343 = vmax.f32 %v936, 0.0
      %v1344 = vmax.f32 %v938, 0.0
      %v1345 = vmax.f32 %v1007, 0.0
      %v1346 = vmax.f32 %v1009, 0.0
      %v1347 = vmax.f32 %v1078, 0.0
      %v1348 = vmax.f32 %v1080, 0.0
      %v1349 = vmax.f32 %v1149, 0.0
      %v1350 = vmax.f32 %v1151, 0.0
      %v1351 = vmax.f32 %v1220, 0.0
      %v1352 = vmax.f32 %v1222, 0.0
      %v1353 = vmax.f32 %v1291, 0.0
      %v1354 = vmax.f32 %v1293, 0.0
      %v1355 = vmax.f32 %v800, 0.0
      %v1356 = vmax.f32 %v802, 0.0
      %v1357 = vmax.f32 %v871, 0.0
      %v1358 = vmax.f32 %v873, 0.0
      %v1359 = vmax.f32 %v942, 0.0
      %v1360 = vmax.f32 %v944, 0.0
      %v1361 = vmax.f32 %v1013, 0.0
      %v1362 = vmax.f32 %v1015, 0.0
      %v1363 = vmax.f32 %v1084, 0.0
      %v1364 = vmax.f32 %v1086, 0.0
      %v1365 = vmax.f32 %v1155, 0.0
      %v1366 = vmax.f32 %v1157, 0.0
      %v1367 = vmax.f32 %v1226, 0.0
      %v1368 = vmax.f32 %v1228, 0.0
      %v1369 = vmax.f32 %v1297, 0.0
      %v1370 = vmax.f32 %v1299, 0.0
      %v1371 = vmax.f32 %v804, 0.0
      %v1372 = vmax.f32 %v806, 0.0
      %v1373 = vmax.f32 %v875, 0.0
      %v1374 = vmax.f32 %v877, 0.0
      %v1375 = vmax.f32 %v946, 0.0
      %v1376 = vmax.f32 %v948, 0.0
      %v1377 = vmax.f32 %v1017, 0.0
      %v1378 = vmax.f32 %v1019, 0.0
      %v1379 = vmax.f32 %v1088, 0.0
      %v1380 = vmax.f32 %v1090, 0.0
      %v1381 = vmax.f32 %v1159, 0.0
      %v1382 = vmax.f32 %v1161, 0.0
      %v1383 = vmax.f32 %v1230, 0.0
      %v1384 = vmax.f32 %v1232, 0.0
      %v1385 = vmax.f32 %v1301, 0.0
      %v1386 = vmax.f32 %v1303, 0.0
      %v1387 = vmax.f32 %v810, 0.0
      %v1388 = vmax.f32 %v812, 0.0
      %v1389 = vmax.f32 %v881, 0.0
      %v1390 = vmax.f32 %v883, 0.0
      %v1391 = vmax.f32 %v952, 0.0
      %v1392 = vmax.f32 %v954, 0.0
      %v1393 = vmax.f32 %v1023, 0.0
      %v1394 = vmax.f32 %v1025, 0.0
      %v1395 = vmax.f32 %v1094, 0.0
      %v1396 = vmax.f32 %v1096, 0.0
      %v1397 = vmax.f32 %v1165, 0.0
      %v1398 = vmax.f32 %v1167, 0.0
      %v1399 = vmax.f32 %v1236, 0.0
      %v1400 = vmax.f32 %v1238, 0.0
      %v1401 = vmax.f32 %v1307, 0.0
      %v1402 = vmax.f32 %v1309, 0.0
      %v1403 = vmax.f32 %v814, 0.0
      %v1404 = vmax.f32 %v816, 0.0
      %v1405 = vmax.f32 %v885, 0.0
      %v1406 = vmax.f32 %v887, 0.0
      %v1407 = vmax.f32 %v956, 0.0
      %v1408 = vmax.f32 %v958, 0.0
      %v1409 = vmax.f32 %v1027, 0.0
      %v1410 = vmax.f32 %v1029, 0.0
      %v1411 = vmax.f32 %v1098, 0.0
      %v1412 = vmax.f32 %v1100, 0.0
      %v1413 = vmax.f32 %v1169, 0.0
      %v1414 = vmax.f32 %v1171, 0.0
      %v1415 = vmax.f32 %v1240, 0.0
      %v1416 = vmax.f32 %v1242, 0.0
      %v1417 = vmax.f32 %v1311, 0.0
      %v1418 = vmax.f32 %v1313, 0.0
      %v1419 = vmax.f32 %v820, 0.0
      %v1420 = vmax.f32 %v822, 0.0
      %v1421 = vmax.f32 %v891, 0.0
      %v1422 = vmax.f32 %v893, 0.0
      %v1423 = vmax.f32 %v962, 0.0
      %v1424 = vmax.f32 %v964, 0.0
      %v1425 = vmax.f32 %v1033, 0.0
      %v1426 = vmax.f32 %v1035, 0.0
      %v1427 = vmax.f32 %v1104, 0.0
      %v1428 = vmax.f32 %v1106, 0.0
      %v1429 = vmax.f32 %v1175, 0.0
      %v1430 = vmax.f32 %v1177, 0.0
      %v1431 = vmax.f32 %v1246, 0.0
      %v1432 = vmax.f32 %v1248, 0.0
      %v1433 = vmax.f32 %v1317, 0.0
      %v1434 = vmax.f32 %v1319, 0.0
      // Predicated region
      $region53: #{transfer_inception_v3_forward.1} parent=47 // pred_check
        %p1435 = pneg %p304
      $region54: #{transfer_inception_v3_forward.1} parent=47 // pred_check_branch
        %1437 = sbr.rel (%p1435) target = $region56
      $region55: #{transfer_inception_v3_forward.1} parent=47 // pred_region
        %v1438 = vlaneseq
        %v1439 = vshrl.u32 %v1438, 7
        %v1440 = vadd.s32 %v1439, 8
        %v1441 = vadd.s32 %v1439, 16
        %v1442 = vadd.s32 %v1439, 24
        %v1443 = vadd.s32 %v1439, 32
        %v1444 = vadd.s32 %v1439, 40
        %v1445 = vadd.s32 %v1439, 48
        %vm1446 = vcmp.lt.s32.totalorder %v1439, 49
        %vm1447 = vcmp.lt.s32.totalorder %v1440, 49
        %vm1448 = vcmp.lt.s32.totalorder %v1441, 49
        %vm1449 = vcmp.lt.s32.totalorder %v1442, 49
        %vm1450 = vcmp.lt.s32.totalorder %v1443, 49
        %vm1451 = vcmp.lt.s32.totalorder %v1444, 49
        %vm1452 = vcmp.lt.s32.totalorder %v1445, 49
        %v1453 = vsel %vm1446, 1, 0
        %v1454 = vsel %vm1447, 1, 0
        %v1455 = vsel %vm1448, 1, 0
        %v1456 = vsel %vm1449, 1, 0
        %v1457 = vsel %vm1450, 1, 0
        %v1458 = vsel %vm1451, 1, 0
        %v1459 = vsel %vm1452, 1, 0
        %vm1460 = vcmp.eq.s32.totalorder %v1453, 1
        %vm1461 = vcmp.eq.s32.totalorder %v1454, 1
        %vm1462 = vcmp.eq.s32.totalorder %v1455, 1
        %vm1463 = vcmp.eq.s32.totalorder %v1456, 1
        %vm1464 = vcmp.eq.s32.totalorder %v1457, 1
        %vm1465 = vcmp.eq.s32.totalorder %v1458, 1
        %vm1466 = vcmp.eq.s32.totalorder %v1459, 1
        %v1467 = vsel %vm1460, %v1323, 0.0
        %v1468 = vsel %vm1460, %v1324, 0.0
        %v1469 = vsel %vm1460, %v1325, 0.0
        %v1470 = vsel %vm1460, %v1326, 0.0
        %v1471 = vsel %vm1460, %v1327, 0.0
        %v1472 = vsel %vm1460, %v1328, 0.0
        %v1473 = vsel %vm1460, %v1329, 0.0
        %v1474 = vsel %vm1460, %v1330, 0.0
        %v1475 = vsel %vm1460, %v1331, 0.0
        %v1476 = vsel %vm1460, %v1332, 0.0
        %v1477 = vsel %vm1460, %v1333, 0.0
        %v1478 = vsel %vm1460, %v1334, 0.0
        %v1479 = vsel %vm1460, %v1335, 0.0
        %v1480 = vsel %vm1460, %v1336, 0.0
        %v1481 = vsel %vm1460, %v1337, 0.0
        %v1482 = vsel %vm1460, %v1338, 0.0
        %v1483 = vsel %vm1461, %v1339, 0.0
        %v1484 = vsel %vm1461, %v1340, 0.0
        %v1485 = vsel %vm1461, %v1341, 0.0
        %v1486 = vsel %vm1461, %v1342, 0.0
        %v1487 = vsel %vm1461, %v1343, 0.0
        %v1488 = vsel %vm1461, %v1344, 0.0
        %v1489 = vsel %vm1461, %v1345, 0.0
        %v1490 = vsel %vm1461, %v1346, 0.0
        %v1491 = vsel %vm1461, %v1347, 0.0
        %v1492 = vsel %vm1461, %v1348, 0.0
        %v1493 = vsel %vm1461, %v1349, 0.0
        %v1494 = vsel %vm1461, %v1350, 0.0
        %v1495 = vsel %vm1461, %v1351, 0.0
        %v1496 = vsel %vm1461, %v1352, 0.0
        %v1497 = vsel %vm1461, %v1353, 0.0
        %v1498 = vsel %vm1461, %v1354, 0.0
        %v1499 = vsel %vm1462, %v1355, 0.0
        %v1500 = vsel %vm1462, %v1356, 0.0
        %v1501 = vsel %vm1462, %v1357, 0.0
        %v1502 = vsel %vm1462, %v1358, 0.0
        %v1503 = vsel %vm1462, %v1359, 0.0
        %v1504 = vsel %vm1462, %v1360, 0.0
        %v1505 = vsel %vm1462, %v1361, 0.0
        %v1506 = vsel %vm1462, %v1362, 0.0
        %v1507 = vsel %vm1462, %v1363, 0.0
        %v1508 = vsel %vm1462, %v1364, 0.0
        %v1509 = vsel %vm1462, %v1365, 0.0
        %v1510 = vsel %vm1462, %v1366, 0.0
        %v1511 = vsel %vm1462, %v1367, 0.0
        %v1512 = vsel %vm1462, %v1368, 0.0
        %v1513 = vsel %vm1462, %v1369, 0.0
        %v1514 = vsel %vm1462, %v1370, 0.0
        %v1515 = vsel %vm1463, %v1371, 0.0
        %v1516 = vsel %vm1463, %v1372, 0.0
        %v1517 = vsel %vm1463, %v1373, 0.0
        %v1518 = vsel %vm1463, %v1374, 0.0
        %v1519 = vsel %vm1463, %v1375, 0.0
        %v1520 = vsel %vm1463, %v1376, 0.0
        %v1521 = vsel %vm1463, %v1377, 0.0
        %v1522 = vsel %vm1463, %v1378, 0.0
        %v1523 = vsel %vm1463, %v1379, 0.0
        %v1524 = vsel %vm1463, %v1380, 0.0
        %v1525 = vsel %vm1463, %v1381, 0.0
        %v1526 = vsel %vm1463, %v1382, 0.0
        %v1527 = vsel %vm1463, %v1383, 0.0
        %v1528 = vsel %vm1463, %v1384, 0.0
        %v1529 = vsel %vm1463, %v1385, 0.0
        %v1530 = vsel %vm1463, %v1386, 0.0
        %v1531 = vsel %vm1464, %v1387, 0.0
        %v1532 = vsel %vm1464, %v1388, 0.0
        %v1533 = vsel %vm1464, %v1389, 0.0
        %v1534 = vsel %vm1464, %v1390, 0.0
        %v1535 = vsel %vm1464, %v1391, 0.0
        %v1536 = vsel %vm1464, %v1392, 0.0
        %v1537 = vsel %vm1464, %v1393, 0.0
        %v1538 = vsel %vm1464, %v1394, 0.0
        %v1539 = vsel %vm1464, %v1395, 0.0
        %v1540 = vsel %vm1464, %v1396, 0.0
        %v1541 = vsel %vm1464, %v1397, 0.0
        %v1542 = vsel %vm1464, %v1398, 0.0
        %v1543 = vsel %vm1464, %v1399, 0.0
        %v1544 = vsel %vm1464, %v1400, 0.0
        %v1545 = vsel %vm1464, %v1401, 0.0
        %v1546 = vsel %vm1464, %v1402, 0.0
        %v1547 = vsel %vm1465, %v1403, 0.0
        %v1548 = vsel %vm1465, %v1404, 0.0
        %v1549 = vsel %vm1465, %v1405, 0.0
        %v1550 = vsel %vm1465, %v1406, 0.0
        %v1551 = vsel %vm1465, %v1407, 0.0
        %v1552 = vsel %vm1465, %v1408, 0.0
        %v1553 = vsel %vm1465, %v1409, 0.0
        %v1554 = vsel %vm1465, %v1410, 0.0
        %v1555 = vsel %vm1465, %v1411, 0.0
        %v1556 = vsel %vm1465, %v1412, 0.0
        %v1557 = vsel %vm1465, %v1413, 0.0
        %v1558 = vsel %vm1465, %v1414, 0.0
        %v1559 = vsel %vm1465, %v1415, 0.0
        %v1560 = vsel %vm1465, %v1416, 0.0
        %v1561 = vsel %vm1465, %v1417, 0.0
        %v1562 = vsel %vm1465, %v1418, 0.0
        %v1563 = vsel %vm1466, %v1419, 0.0
        %v1564 = vsel %vm1466, %v1420, 0.0
        %v1565 = vsel %vm1466, %v1421, 0.0
        %v1566 = vsel %vm1466, %v1422, 0.0
        %v1567 = vsel %vm1466, %v1423, 0.0
        %v1568 = vsel %vm1466, %v1424, 0.0
        %v1569 = vsel %vm1466, %v1425, 0.0
        %v1570 = vsel %vm1466, %v1426, 0.0
        %v1571 = vsel %vm1466, %v1427, 0.0
        %v1572 = vsel %vm1466, %v1428, 0.0
        %v1573 = vsel %vm1466, %v1429, 0.0
        %v1574 = vsel %vm1466, %v1430, 0.0
        %v1575 = vsel %vm1466, %v1431, 0.0
        %v1576 = vsel %vm1466, %v1432, 0.0
        %v1577 = vsel %vm1466, %v1433, 0.0
        %v1578 = vsel %vm1466, %v1434, 0.0
        %v1579 = vld [vmem:[#allocation2] sm:$0xff]
        %v1580 = vld [vmem:[#allocation2 + $0x8] sm:$0xff]
        %v1581 = vld [vmem:[#allocation2 + $0x10] sm:$0xff]
        %v1582 = vld [vmem:[#allocation2 + $0x18] sm:$0xff]
        %v1583 = vld [vmem:[#allocation2 + $0x20] sm:$0xff]
        %v1584 = vld [vmem:[#allocation2 + $0x28] sm:$0xff]
        %v1585 = vld [vmem:[#allocation2 + $0x30] sm:$0xff]
        %v1586 = vld [vmem:[#allocation2 + $0x38] sm:$0xff]
        %v1587 = vld [vmem:[#allocation2 + $0x40] sm:$0xff]
        %v1588 = vld [vmem:[#allocation2 + $0x48] sm:$0xff]
        %v1589 = vld [vmem:[#allocation2 + $0x50] sm:$0xff]
        %v1590 = vld [vmem:[#allocation2 + $0x58] sm:$0xff]
        %v1591 = vld [vmem:[#allocation2 + $0x60] sm:$0xff]
        %v1592 = vld [vmem:[#allocation2 + $0x68] sm:$0xff]
        %v1593 = vld [vmem:[#allocation2 + $0x70] sm:$0xff]
        %v1594 = vld [vmem:[#allocation2 + $0x78] sm:$0xff]
        %v1595 = vadd.f32 %v1467, %v1483
        %v1596 = vadd.f32 %v1595, %v1499
        %v1597 = vadd.f32 %v1596, %v1515
        %v1598 = vadd.f32 %v1597, %v1531
        %v1599 = vadd.f32 %v1598, %v1547
        %v1600 = vadd.f32 %v1599, %v1563
        %v1601 = vadd.f32 %v1468, %v1484
        %v1602 = vadd.f32 %v1601, %v1500
        %v1603 = vadd.f32 %v1602, %v1516
        %v1604 = vadd.f32 %v1603, %v1532
        %v1605 = vadd.f32 %v1604, %v1548
        %v1606 = vadd.f32 %v1605, %v1564
        %v1607 = vadd.f32 %v1469, %v1485
        %v1608 = vadd.f32 %v1607, %v1501
        %v1609 = vadd.f32 %v1608, %v1517
        %v1610 = vadd.f32 %v1609, %v1533
        %v1611 = vadd.f32 %v1610, %v1549
        %v1612 = vadd.f32 %v1611, %v1565
        %v1613 = vadd.f32 %v1470, %v1486
        %v1614 = vadd.f32 %v1613, %v1502
        %v1615 = vadd.f32 %v1614, %v1518
        %v1616 = vadd.f32 %v1615, %v1534
        %v1617 = vadd.f32 %v1616, %v1550
        %v1618 = vadd.f32 %v1617, %v1566
        %v1619 = vadd.f32 %v1471, %v1487
        %v1620 = vadd.f32 %v1619, %v1503
        %v1621 = vadd.f32 %v1620, %v1519
        %v1622 = vadd.f32 %v1621, %v1535
        %v1623 = vadd.f32 %v1622, %v1551
        %v1624 = vadd.f32 %v1623, %v1567
        %v1625 = vadd.f32 %v1472, %v1488
        %v1626 = vadd.f32 %v1625, %v1504
        %v1627 = vadd.f32 %v1626, %v1520
        %v1628 = vadd.f32 %v1627, %v1536
        %v1629 = vadd.f32 %v1628, %v1552
        %v1630 = vadd.f32 %v1629, %v1568
        %v1631 = vadd.f32 %v1473, %v1489
        %v1632 = vadd.f32 %v1631, %v1505
        %v1633 = vadd.f32 %v1632, %v1521
        %v1634 = vadd.f32 %v1633, %v1537
        %v1635 = vadd.f32 %v1634, %v1553
        %v1636 = vadd.f32 %v1635, %v1569
        %v1637 = vadd.f32 %v1474, %v1490
        %v1638 = vadd.f32 %v1637, %v1506
        %v1639 = vadd.f32 %v1638, %v1522
        %v1640 = vadd.f32 %v1639, %v1538
        %v1641 = vadd.f32 %v1640, %v1554
        %v1642 = vadd.f32 %v1641, %v1570
        %v1643 = vadd.f32 %v1475, %v1491
        %v1644 = vadd.f32 %v1643, %v1507
        %v1645 = vadd.f32 %v1644, %v1523
        %v1646 = vadd.f32 %v1645, %v1539
        %v1647 = vadd.f32 %v1646, %v1555
        %v1648 = vadd.f32 %v1647, %v1571
        %v1649 = vadd.f32 %v1476, %v1492
        %v1650 = vadd.f32 %v1649, %v1508
        %v1651 = vadd.f32 %v1650, %v1524
        %v1652 = vadd.f32 %v1651, %v1540
        %v1653 = vadd.f32 %v1652, %v1556
        %v1654 = vadd.f32 %v1653, %v1572
        %v1655 = vadd.f32 %v1477, %v1493
        %v1656 = vadd.f32 %v1655, %v1509
        %v1657 = vadd.f32 %v1656, %v1525
        %v1658 = vadd.f32 %v1657, %v1541
        %v1659 = vadd.f32 %v1658, %v1557
        %v1660 = vadd.f32 %v1659, %v1573
        %v1661 = vadd.f32 %v1478, %v1494
        %v1662 = vadd.f32 %v1661, %v1510
        %v1663 = vadd.f32 %v1662, %v1526
        %v1664 = vadd.f32 %v1663, %v1542
        %v1665 = vadd.f32 %v1664, %v1558
        %v1666 = vadd.f32 %v1665, %v1574
        %v1667 = vadd.f32 %v1479, %v1495
        %v1668 = vadd.f32 %v1667, %v1511
        %v1669 = vadd.f32 %v1668, %v1527
        %v1670 = vadd.f32 %v1669, %v1543
        %v1671 = vadd.f32 %v1670, %v1559
        %v1672 = vadd.f32 %v1671, %v1575
        %v1673 = vadd.f32 %v1480, %v1496
        %v1674 = vadd.f32 %v1673, %v1512
        %v1675 = vadd.f32 %v1674, %v1528
        %v1676 = vadd.f32 %v1675, %v1544
        %v1677 = vadd.f32 %v1676, %v1560
        %v1678 = vadd.f32 %v1677, %v1576
        %v1679 = vadd.f32 %v1481, %v1497
        %v1680 = vadd.f32 %v1679, %v1513
        %v1681 = vadd.f32 %v1680, %v1529
        %v1682 = vadd.f32 %v1681, %v1545
        %v1683 = vadd.f32 %v1682, %v1561
        %v1684 = vadd.f32 %v1683, %v1577
        %v1685 = vadd.f32 %v1482, %v1498
        %v1686 = vadd.f32 %v1685, %v1514
        %v1687 = vadd.f32 %v1686, %v1530
        %v1688 = vadd.f32 %v1687, %v1546
        %v1689 = vadd.f32 %v1688, %v1562
        %v1690 = vadd.f32 %v1689, %v1578
        %v1691 = vadd.f32 %v1579, %v1600
        %v1692 = vadd.f32 %v1580, %v1606
        %v1693 = vadd.f32 %v1581, %v1612
        %v1694 = vadd.f32 %v1582, %v1618
        %v1695 = vadd.f32 %v1583, %v1624
        %v1696 = vadd.f32 %v1584, %v1630
        %v1697 = vadd.f32 %v1585, %v1636
        %v1698 = vadd.f32 %v1586, %v1642
        %v1699 = vadd.f32 %v1587, %v1648
        %v1700 = vadd.f32 %v1588, %v1654
        %v1701 = vadd.f32 %v1589, %v1660
        %v1702 = vadd.f32 %v1590, %v1666
        %v1703 = vadd.f32 %v1591, %v1672
        %v1704 = vadd.f32 %v1592, %v1678
        %v1705 = vadd.f32 %v1593, %v1684
        %v1706 = vadd.f32 %v1594, %v1690
        %1707 = vst [vmem:[#allocation2] sm:$0xff] %v1691
        %1708 = vst [vmem:[#allocation2 + $0x8] sm:$0xff] %v1692
        %1709 = vst [vmem:[#allocation2 + $0x10] sm:$0xff] %v1693
        %1710 = vst [vmem:[#allocation2 + $0x18] sm:$0xff] %v1694
        %1711 = vst [vmem:[#allocation2 + $0x20] sm:$0xff] %v1695
        %1712 = vst [vmem:[#allocation2 + $0x28] sm:$0xff] %v1696
        %1713 = vst [vmem:[#allocation2 + $0x30] sm:$0xff] %v1697
        %1714 = vst [vmem:[#allocation2 + $0x38] sm:$0xff] %v1698
        %1715 = vst [vmem:[#allocation2 + $0x40] sm:$0xff] %v1699
        %1716 = vst [vmem:[#allocation2 + $0x48] sm:$0xff] %v1700
        %1717 = vst [vmem:[#allocation2 + $0x50] sm:$0xff] %v1701
        %1718 = vst [vmem:[#allocation2 + $0x58] sm:$0xff] %v1702
        %1719 = vst [vmem:[#allocation2 + $0x60] sm:$0xff] %v1703
        %1720 = vst [vmem:[#allocation2 + $0x68] sm:$0xff] %v1704
        %1721 = vst [vmem:[#allocation2 + $0x70] sm:$0xff] %v1705
        %1722 = vst [vmem:[#allocation2 + $0x78] sm:$0xff] %v1706
        %v1723 = vld [vmem:[#allocation2] sm:$0xff]
        %v1724 = vld [vmem:[#allocation2 + $0x8] sm:$0xff]
        %v1725 = vld [vmem:[#allocation2 + $0x10] sm:$0xff]
        %v1726 = vld [vmem:[#allocation2 + $0x18] sm:$0xff]
        %v1727 = vld [vmem:[#allocation2 + $0x20] sm:$0xff]
        %v1728 = vld [vmem:[#allocation2 + $0x28] sm:$0xff]
        %v1729 = vld [vmem:[#allocation2 + $0x30] sm:$0xff]
        %v1730 = vld [vmem:[#allocation2 + $0x38] sm:$0xff]
        %v1731 = vld [vmem:[#allocation2 + $0x40] sm:$0xff]
        %v1732 = vld [vmem:[#allocation2 + $0x48] sm:$0xff]
        %v1733 = vld [vmem:[#allocation2 + $0x50] sm:$0xff]
        %v1734 = vld [vmem:[#allocation2 + $0x58] sm:$0xff]
        %v1735 = vld [vmem:[#allocation2 + $0x60] sm:$0xff]
        %v1736 = vld [vmem:[#allocation2 + $0x68] sm:$0xff]
        %v1737 = vld [vmem:[#allocation2 + $0x70] sm:$0xff]
        %v1738 = vld [vmem:[#allocation2 + $0x78] sm:$0xff]
        %v1739 = vrot.slane %v1723, 4
        %v1740 = vadd.f32 %v1723, %v1739
        %v1741 = vrot.slane %v1740, 2
        %v1742 = vadd.f32 %v1740, %v1741
        %v1743 = vrot.slane %v1742, 1
        %v1744 = vadd.f32 %v1742, %v1743
        %v1745 = vrot.slane %v1724, 4
        %v1746 = vadd.f32 %v1724, %v1745
        %v1747 = vrot.slane %v1746, 2
        %v1748 = vadd.f32 %v1746, %v1747
        %v1749 = vrot.slane %v1748, 1
        %v1750 = vadd.f32 %v1748, %v1749
        %v1751 = vrot.slane %v1725, 4
        %v1752 = vadd.f32 %v1725, %v1751
        %v1753 = vrot.slane %v1752, 2
        %v1754 = vadd.f32 %v1752, %v1753
        %v1755 = vrot.slane %v1754, 1
        %v1756 = vadd.f32 %v1754, %v1755
        %v1757 = vrot.slane %v1726, 4
        %v1758 = vadd.f32 %v1726, %v1757
        %v1759 = vrot.slane %v1758, 2
        %v1760 = vadd.f32 %v1758, %v1759
        %v1761 = vrot.slane %v1760, 1
        %v1762 = vadd.f32 %v1760, %v1761
        %v1763 = vrot.slane %v1727, 4
        %v1764 = vadd.f32 %v1727, %v1763
        %v1765 = vrot.slane %v1764, 2
        %v1766 = vadd.f32 %v1764, %v1765
        %v1767 = vrot.slane %v1766, 1
        %v1768 = vadd.f32 %v1766, %v1767
        %v1769 = vrot.slane %v1728, 4
        %v1770 = vadd.f32 %v1728, %v1769
        %v1771 = vrot.slane %v1770, 2
        %v1772 = vadd.f32 %v1770, %v1771
        %v1773 = vrot.slane %v1772, 1
        %v1774 = vadd.f32 %v1772, %v1773
        %v1775 = vrot.slane %v1729, 4
        %v1776 = vadd.f32 %v1729, %v1775
        %v1777 = vrot.slane %v1776, 2
        %v1778 = vadd.f32 %v1776, %v1777
        %v1779 = vrot.slane %v1778, 1
        %v1780 = vadd.f32 %v1778, %v1779
        %v1781 = vrot.slane %v1730, 4
        %v1782 = vadd.f32 %v1730, %v1781
        %v1783 = vrot.slane %v1782, 2
        %v1784 = vadd.f32 %v1782, %v1783
        %v1785 = vrot.slane %v1784, 1
        %v1786 = vadd.f32 %v1784, %v1785
        %v1787 = vrot.slane %v1731, 4
        %v1788 = vadd.f32 %v1731, %v1787
        %v1789 = vrot.slane %v1788, 2
        %v1790 = vadd.f32 %v1788, %v1789
        %v1791 = vrot.slane %v1790, 1
        %v1792 = vadd.f32 %v1790, %v1791
        %v1793 = vrot.slane %v1732, 4
        %v1794 = vadd.f32 %v1732, %v1793
        %v1795 = vrot.slane %v1794, 2
        %v1796 = vadd.f32 %v1794, %v1795
        %v1797 = vrot.slane %v1796, 1
        %v1798 = vadd.f32 %v1796, %v1797
        %v1799 = vrot.slane %v1733, 4
        %v1800 = vadd.f32 %v1733, %v1799
        %v1801 = vrot.slane %v1800, 2
        %v1802 = vadd.f32 %v1800, %v1801
        %v1803 = vrot.slane %v1802, 1
        %v1804 = vadd.f32 %v1802, %v1803
        %v1805 = vrot.slane %v1734, 4
        %v1806 = vadd.f32 %v1734, %v1805
        %v1807 = vrot.slane %v1806, 2
        %v1808 = vadd.f32 %v1806, %v1807
        %v1809 = vrot.slane %v1808, 1
        %v1810 = vadd.f32 %v1808, %v1809
        %v1811 = vrot.slane %v1735, 4
        %v1812 = vadd.f32 %v1735, %v1811
        %v1813 = vrot.slane %v1812, 2
        %v1814 = vadd.f32 %v1812, %v1813
        %v1815 = vrot.slane %v1814, 1
        %v1816 = vadd.f32 %v1814, %v1815
        %v1817 = vrot.slane %v1736, 4
        %v1818 = vadd.f32 %v1736, %v1817
        %v1819 = vrot.slane %v1818, 2
        %v1820 = vadd.f32 %v1818, %v1819
        %v1821 = vrot.slane %v1820, 1
        %v1822 = vadd.f32 %v1820, %v1821
        %v1823 = vrot.slane %v1737, 4
        %v1824 = vadd.f32 %v1737, %v1823
        %v1825 = vrot.slane %v1824, 2
        %v1826 = vadd.f32 %v1824, %v1825
        %v1827 = vrot.slane %v1826, 1
        %v1828 = vadd.f32 %v1826, %v1827
        %v1829 = vrot.slane %v1738, 4
        %v1830 = vadd.f32 %v1738, %v1829
        %v1831 = vrot.slane %v1830, 2
        %v1832 = vadd.f32 %v1830, %v1831
        %v1833 = vrot.slane %v1832, 1
        %v1834 = vadd.f32 %v1832, %v1833
        %v1835 = vmul.f32 %v1744, 0.020408163
        %v1836 = vmul.f32 %v1750, 0.020408163
        %v1837 = vmul.f32 %v1756, 0.020408163
        %v1838 = vmul.f32 %v1762, 0.020408163
        %v1839 = vmul.f32 %v1768, 0.020408163
        %v1840 = vmul.f32 %v1774, 0.020408163
        %v1841 = vmul.f32 %v1780, 0.020408163
        %v1842 = vmul.f32 %v1786, 0.020408163
        %v1843 = vmul.f32 %v1792, 0.020408163
        %v1844 = vmul.f32 %v1798, 0.020408163
        %v1845 = vmul.f32 %v1804, 0.020408163
        %v1846 = vmul.f32 %v1810, 0.020408163
        %v1847 = vmul.f32 %v1816, 0.020408163
        %v1848 = vmul.f32 %v1822, 0.020408163
        %v1849 = vmul.f32 %v1828, 0.020408163
        %v1850 = vmul.f32 %v1834, 0.020408163
        %v1851 = vpack.c.bf16 %v1835, %v1835
        %v1852 = vpack.c.bf16 %v1836, %v1836
        %v1853 = vpack.c.bf16 %v1837, %v1837
        %v1854 = vpack.c.bf16 %v1838, %v1838
        %v1855 = vpack.c.bf16 %v1839, %v1839
        %v1856 = vpack.c.bf16 %v1840, %v1840
        %v1857 = vpack.c.bf16 %v1841, %v1841
        %v1858 = vpack.c.bf16 %v1842, %v1842
        %v1859 = vpack.c.bf16 %v1843, %v1843
        %v1860 = vpack.c.bf16 %v1844, %v1844
        %v1861 = vpack.c.bf16 %v1845, %v1845
        %v1862 = vpack.c.bf16 %v1846, %v1846
        %v1863 = vpack.c.bf16 %v1847, %v1847
        %v1864 = vpack.c.bf16 %v1848, %v1848
        %v1865 = vpack.c.bf16 %v1849, %v1849
        %v1866 = vpack.c.bf16 %v1850, %v1850
        %v1867 = vld [vmem:[%s5] sm:$0xf]
        %v1868 = vld [vmem:[%s5 + $0x4] sm:$0xf]
        %v1869 = vld [vmem:[%s5 + $0x8] sm:$0xf]
        %v1870 = vld [vmem:[%s5 + $0xc] sm:$0xf]
        %v1871 = vld [vmem:[%s5 + $0x10] sm:$0xf]
        %v1872 = vld [vmem:[%s5 + $0x14] sm:$0xf]
        %v1873 = vld [vmem:[%s5 + $0x18] sm:$0xf]
        %v1874 = vld [vmem:[%s5 + $0x1c] sm:$0xf]
        %v1875 = vld [vmem:[%s5 + $0x20] sm:$0xf]
        %v1876 = vld [vmem:[%s5 + $0x24] sm:$0xf]
        %v1877 = vld [vmem:[%s5 + $0x28] sm:$0xf]
        %v1878 = vld [vmem:[%s5 + $0x2c] sm:$0xf]
        %v1879 = vld [vmem:[%s5 + $0x30] sm:$0xf]
        %v1880 = vld [vmem:[%s5 + $0x34] sm:$0xf]
        %v1881 = vld [vmem:[%s5 + $0x38] sm:$0xf]
        %v1882 = vld [vmem:[%s5 + $0x3c] sm:$0xf]
        %v1883 = vld [vmem:[%s5 + $0x40] sm:$0xf]
        %v1884 = vld [vmem:[%s5 + $0x44] sm:$0xf]
        %v1885 = vld [vmem:[%s5 + $0x48] sm:$0xf]
        %v1886 = vld [vmem:[%s5 + $0x4c] sm:$0xf]
        %v1887 = vld [vmem:[%s5 + $0x50] sm:$0xf]
        %v1888 = vld [vmem:[%s5 + $0x54] sm:$0xf]
        %v1889 = vld [vmem:[%s5 + $0x58] sm:$0xf]
        %v1890 = vld [vmem:[%s5 + $0x5c] sm:$0xf]
        %v1891 = vld [vmem:[%s5 + $0x60] sm:$0xf]
        %v1892 = vld [vmem:[%s5 + $0x64] sm:$0xf]
        %v1893 = vld [vmem:[%s5 + $0x68] sm:$0xf]
        %v1894 = vld [vmem:[%s5 + $0x6c] sm:$0xf]
        %v1895 = vld [vmem:[%s5 + $0x70] sm:$0xf]
        %v1896 = vld [vmem:[%s5 + $0x74] sm:$0xf]
        %v1897 = vld [vmem:[%s5 + $0x78] sm:$0xf]
        %v1898 = vld [vmem:[%s5 + $0x7c] sm:$0xf]
        %v1899 = vld [vmem:[%s5 + $0x80] sm:$0xf]
        %v1900 = vld [vmem:[%s5 + $0x84] sm:$0xf]
        %v1901 = vld [vmem:[%s5 + $0x88] sm:$0xf]
        %v1902 = vld [vmem:[%s5 + $0x8c] sm:$0xf]
        %v1903 = vld [vmem:[%s5 + $0x90] sm:$0xf]
        %v1904 = vld [vmem:[%s5 + $0x94] sm:$0xf]
        %v1905 = vld [vmem:[%s5 + $0x98] sm:$0xf]
        %v1906 = vld [vmem:[%s5 + $0x9c] sm:$0xf]
        %v1907 = vld [vmem:[%s5 + $0xa0] sm:$0xf]
        %v1908 = vld [vmem:[%s5 + $0xa4] sm:$0xf]
        %v1909 = vld [vmem:[%s5 + $0xa8] sm:$0xf]
        %v1910 = vld [vmem:[%s5 + $0xac] sm:$0xf]
        %v1911 = vld [vmem:[%s5 + $0xb0] sm:$0xf]
        %v1912 = vld [vmem:[%s5 + $0xb4] sm:$0xf]
        %v1913 = vld [vmem:[%s5 + $0xb8] sm:$0xf]
        %v1914 = vld [vmem:[%s5 + $0xbc] sm:$0xf]
        %v1915 = vld [vmem:[%s5 + $0xc0] sm:$0xf]
        %v1916 = vld [vmem:[%s5 + $0xc4] sm:$0xf]
        %v1917 = vld [vmem:[%s5 + $0xc8] sm:$0xf]
        %v1918 = vld [vmem:[%s5 + $0xcc] sm:$0xf]
        %v1919 = vld [vmem:[%s5 + $0xd0] sm:$0xf]
        %v1920 = vld [vmem:[%s5 + $0xd4] sm:$0xf]
        %v1921 = vld [vmem:[%s5 + $0xd8] sm:$0xf]
        %v1922 = vld [vmem:[%s5 + $0xdc] sm:$0xf]
        %v1923 = vld [vmem:[%s5 + $0xe0] sm:$0xf]
        %v1924 = vld [vmem:[%s5 + $0xe4] sm:$0xf]
        %v1925 = vld [vmem:[%s5 + $0xe8] sm:$0xf]
        %v1926 = vld [vmem:[%s5 + $0xec] sm:$0xf]
        %v1927 = vld [vmem:[%s5 + $0xf0] sm:$0xf]
        %v1928 = vld [vmem:[%s5 + $0xf4] sm:$0xf]
        %v1929 = vld [vmem:[%s5 + $0xf8] sm:$0xf]
        %v1930 = vld [vmem:[%s5 + $0xfc] sm:$0xf]
        %v1931 = vld [vmem:[%s5 + $0x100] sm:$0xf]
        %v1932 = vld [vmem:[%s5 + $0x104] sm:$0xf]
        %v1933 = vld [vmem:[%s5 + $0x108] sm:$0xf]
        %v1934 = vld [vmem:[%s5 + $0x10c] sm:$0xf]
        %v1935 = vld [vmem:[%s5 + $0x110] sm:$0xf]
        %v1936 = vld [vmem:[%s5 + $0x114] sm:$0xf]
        %v1937 = vld [vmem:[%s5 + $0x118] sm:$0xf]
        %v1938 = vld [vmem:[%s5 + $0x11c] sm:$0xf]
        %v1939 = vld [vmem:[%s5 + $0x120] sm:$0xf]
        %v1940 = vld [vmem:[%s5 + $0x124] sm:$0xf]
        %v1941 = vld [vmem:[%s5 + $0x128] sm:$0xf]
        %v1942 = vld [vmem:[%s5 + $0x12c] sm:$0xf]
        %v1943 = vld [vmem:[%s5 + $0x130] sm:$0xf]
        %v1944 = vld [vmem:[%s5 + $0x134] sm:$0xf]
        %v1945 = vld [vmem:[%s5 + $0x138] sm:$0xf]
        %v1946 = vld [vmem:[%s5 + $0x13c] sm:$0xf]
        %v1947 = vld [vmem:[%s5 + $0x140] sm:$0xf]
        %v1948 = vld [vmem:[%s5 + $0x144] sm:$0xf]
        %v1949 = vld [vmem:[%s5 + $0x148] sm:$0xf]
        %v1950 = vld [vmem:[%s5 + $0x14c] sm:$0xf]
        %v1951 = vld [vmem:[%s5 + $0x150] sm:$0xf]
        %v1952 = vld [vmem:[%s5 + $0x154] sm:$0xf]
        %v1953 = vld [vmem:[%s5 + $0x158] sm:$0xf]
        %v1954 = vld [vmem:[%s5 + $0x15c] sm:$0xf]
        %v1955 = vld [vmem:[%s5 + $0x160] sm:$0xf]
        %v1956 = vld [vmem:[%s5 + $0x164] sm:$0xf]
        %v1957 = vld [vmem:[%s5 + $0x168] sm:$0xf]
        %v1958 = vld [vmem:[%s5 + $0x16c] sm:$0xf]
        %v1959 = vld [vmem:[%s5 + $0x170] sm:$0xf]
        %v1960 = vld [vmem:[%s5 + $0x174] sm:$0xf]
        %v1961 = vld [vmem:[%s5 + $0x178] sm:$0xf]
        %v1962 = vld [vmem:[%s5 + $0x17c] sm:$0xf]
        %v1963 = vld [vmem:[%s5 + $0x180] sm:$0xf]
        %v1964 = vld [vmem:[%s5 + $0x184] sm:$0xf]
        %v1965 = vld [vmem:[%s5 + $0x188] sm:$0xf]
        %v1966 = vld [vmem:[%s5 + $0x18c] sm:$0xf]
        %v1967 = vld [vmem:[%s5 + $0x190] sm:$0xf]
        %v1968 = vld [vmem:[%s5 + $0x194] sm:$0xf]
        %v1969 = vld [vmem:[%s5 + $0x198] sm:$0xf]
        %v1970 = vld [vmem:[%s5 + $0x19c] sm:$0xf]
        %v1971 = vld [vmem:[%s5 + $0x1a0] sm:$0xf]
        %v1972 = vld [vmem:[%s5 + $0x1a4] sm:$0xf]
        %v1973 = vld [vmem:[%s5 + $0x1a8] sm:$0xf]
        %v1974 = vld [vmem:[%s5 + $0x1ac] sm:$0xf]
        %v1975 = vld [vmem:[%s5 + $0x1b0] sm:$0xf]
        %v1976 = vld [vmem:[%s5 + $0x1b4] sm:$0xf]
        %v1977 = vld [vmem:[%s5 + $0x1b8] sm:$0xf]
        %v1978 = vld [vmem:[%s5 + $0x1bc] sm:$0xf]
        %v1979 = vld [vmem:[%s5 + $0x1c0] sm:$0xf]
        %v1980 = vld [vmem:[%s5 + $0x1c4] sm:$0xf]
        %v1981 = vld [vmem:[%s5 + $0x1c8] sm:$0xf]
        %v1982 = vld [vmem:[%s5 + $0x1cc] sm:$0xf]
        %v1983 = vld [vmem:[%s5 + $0x1d0] sm:$0xf]
        %v1984 = vld [vmem:[%s5 + $0x1d4] sm:$0xf]
        %v1985 = vld [vmem:[%s5 + $0x1d8] sm:$0xf]
        %v1986 = vld [vmem:[%s5 + $0x1dc] sm:$0xf]
        %v1987 = vld [vmem:[%s5 + $0x1e0] sm:$0xf]
        %v1988 = vld [vmem:[%s5 + $0x1e4] sm:$0xf]
        %v1989 = vld [vmem:[%s5 + $0x1e8] sm:$0xf]
        %v1990 = vld [vmem:[%s5 + $0x1ec] sm:$0xf]
        %v1991 = vld [vmem:[%s5 + $0x1f0] sm:$0xf]
        %v1992 = vld [vmem:[%s5 + $0x1f4] sm:$0xf]
        %v1993 = vld [vmem:[%s5 + $0x1f8] sm:$0xf]
        %v1994 = vld [vmem:[%s5 + $0x1fc] sm:$0xf]
        %v1995 = vld [vmem:[%s5 + $0x200] sm:$0xf]
        %v1996 = vld [vmem:[%s5 + $0x204] sm:$0xf]
        %v1997 = vld [vmem:[%s5 + $0x208] sm:$0xf]
        %v1998 = vld [vmem:[%s5 + $0x20c] sm:$0xf]
        %v1999 = vld [vmem:[%s5 + $0x210] sm:$0xf]
        %v2000 = vld [vmem:[%s5 + $0x214] sm:$0xf]
        %v2001 = vld [vmem:[%s5 + $0x218] sm:$0xf]
        %v2002 = vld [vmem:[%s5 + $0x21c] sm:$0xf]
        %v2003 = vld [vmem:[%s5 + $0x220] sm:$0xf]
        %v2004 = vld [vmem:[%s5 + $0x224] sm:$0xf]
        %v2005 = vld [vmem:[%s5 + $0x228] sm:$0xf]
        %v2006 = vld [vmem:[%s5 + $0x22c] sm:$0xf]
        %v2007 = vld [vmem:[%s5 + $0x230] sm:$0xf]
        %v2008 = vld [vmem:[%s5 + $0x234] sm:$0xf]
        %v2009 = vld [vmem:[%s5 + $0x238] sm:$0xf]
        %v2010 = vld [vmem:[%s5 + $0x23c] sm:$0xf]
        %v2011 = vld [vmem:[%s5 + $0x240] sm:$0xf]
        %v2012 = vld [vmem:[%s5 + $0x244] sm:$0xf]
        %v2013 = vld [vmem:[%s5 + $0x248] sm:$0xf]
        %v2014 = vld [vmem:[%s5 + $0x24c] sm:$0xf]
        %v2015 = vld [vmem:[%s5 + $0x250] sm:$0xf]
        %v2016 = vld [vmem:[%s5 + $0x254] sm:$0xf]
        %v2017 = vld [vmem:[%s5 + $0x258] sm:$0xf]
        %v2018 = vld [vmem:[%s5 + $0x25c] sm:$0xf]
        %v2019 = vld [vmem:[%s5 + $0x260] sm:$0xf]
        %v2020 = vld [vmem:[%s5 + $0x264] sm:$0xf]
        %v2021 = vld [vmem:[%s5 + $0x268] sm:$0xf]
        %v2022 = vld [vmem:[%s5 + $0x26c] sm:$0xf]
        %v2023 = vld [vmem:[%s5 + $0x270] sm:$0xf]
        %v2024 = vld [vmem:[%s5 + $0x274] sm:$0xf]
        %v2025 = vld [vmem:[%s5 + $0x278] sm:$0xf]
        %v2026 = vld [vmem:[%s5 + $0x27c] sm:$0xf]
        %v2027 = vld [vmem:[%s5 + $0x280] sm:$0xf]
        %v2028 = vld [vmem:[%s5 + $0x284] sm:$0xf]
        %v2029 = vld [vmem:[%s5 + $0x288] sm:$0xf]
        %v2030 = vld [vmem:[%s5 + $0x28c] sm:$0xf]
        %v2031 = vld [vmem:[%s5 + $0x290] sm:$0xf]
        %v2032 = vld [vmem:[%s5 + $0x294] sm:$0xf]
        %v2033 = vld [vmem:[%s5 + $0x298] sm:$0xf]
        %v2034 = vld [vmem:[%s5 + $0x29c] sm:$0xf]
        %v2035 = vld [vmem:[%s5 + $0x2a0] sm:$0xf]
        %v2036 = vld [vmem:[%s5 + $0x2a4] sm:$0xf]
        %v2037 = vld [vmem:[%s5 + $0x2a8] sm:$0xf]
        %v2038 = vld [vmem:[%s5 + $0x2ac] sm:$0xf]
        %v2039 = vld [vmem:[%s5 + $0x2b0] sm:$0xf]
        %v2040 = vld [vmem:[%s5 + $0x2b4] sm:$0xf]
        %v2041 = vld [vmem:[%s5 + $0x2b8] sm:$0xf]
        %v2042 = vld [vmem:[%s5 + $0x2bc] sm:$0xf]
        %v2043 = vld [vmem:[%s5 + $0x2c0] sm:$0xf]
        %v2044 = vld [vmem:[%s5 + $0x2c4] sm:$0xf]
        %v2045 = vld [vmem:[%s5 + $0x2c8] sm:$0xf]
        %v2046 = vld [vmem:[%s5 + $0x2cc] sm:$0xf]
        %v2047 = vld [vmem:[%s5 + $0x2d0] sm:$0xf]
        %v2048 = vld [vmem:[%s5 + $0x2d4] sm:$0xf]
        %v2049 = vld [vmem:[%s5 + $0x2d8] sm:$0xf]
        %v2050 = vld [vmem:[%s5 + $0x2dc] sm:$0xf]
        %v2051 = vld [vmem:[%s5 + $0x2e0] sm:$0xf]
        %v2052 = vld [vmem:[%s5 + $0x2e4] sm:$0xf]
        %v2053 = vld [vmem:[%s5 + $0x2e8] sm:$0xf]
        %v2054 = vld [vmem:[%s5 + $0x2ec] sm:$0xf]
        %v2055 = vld [vmem:[%s5 + $0x2f0] sm:$0xf]
        %v2056 = vld [vmem:[%s5 + $0x2f4] sm:$0xf]
        %v2057 = vld [vmem:[%s5 + $0x2f8] sm:$0xf]
        %v2058 = vld [vmem:[%s5 + $0x2fc] sm:$0xf]
        %v2059 = vld [vmem:[%s5 + $0x300] sm:$0xf]
        %v2060 = vld [vmem:[%s5 + $0x304] sm:$0xf]
        %v2061 = vld [vmem:[%s5 + $0x308] sm:$0xf]
        %v2062 = vld [vmem:[%s5 + $0x30c] sm:$0xf]
        %v2063 = vld [vmem:[%s5 + $0x310] sm:$0xf]
        %v2064 = vld [vmem:[%s5 + $0x314] sm:$0xf]
        %v2065 = vld [vmem:[%s5 + $0x318] sm:$0xf]
        %v2066 = vld [vmem:[%s5 + $0x31c] sm:$0xf]
        %v2067 = vld [vmem:[%s5 + $0x320] sm:$0xf]
        %v2068 = vld [vmem:[%s5 + $0x324] sm:$0xf]
        %v2069 = vld [vmem:[%s5 + $0x328] sm:$0xf]
        %v2070 = vld [vmem:[%s5 + $0x32c] sm:$0xf]
        %v2071 = vld [vmem:[%s5 + $0x330] sm:$0xf]
        %v2072 = vld [vmem:[%s5 + $0x334] sm:$0xf]
        %v2073 = vld [vmem:[%s5 + $0x338] sm:$0xf]
        %v2074 = vld [vmem:[%s5 + $0x33c] sm:$0xf]
        %v2075 = vld [vmem:[%s5 + $0x340] sm:$0xf]
        %v2076 = vld [vmem:[%s5 + $0x344] sm:$0xf]
        %v2077 = vld [vmem:[%s5 + $0x348] sm:$0xf]
        %v2078 = vld [vmem:[%s5 + $0x34c] sm:$0xf]
        %v2079 = vld [vmem:[%s5 + $0x350] sm:$0xf]
        %v2080 = vld [vmem:[%s5 + $0x354] sm:$0xf]
        %v2081 = vld [vmem:[%s5 + $0x358] sm:$0xf]
        %v2082 = vld [vmem:[%s5 + $0x35c] sm:$0xf]
        %v2083 = vld [vmem:[%s5 + $0x360] sm:$0xf]
        %v2084 = vld [vmem:[%s5 + $0x364] sm:$0xf]
        %v2085 = vld [vmem:[%s5 + $0x368] sm:$0xf]
        %v2086 = vld [vmem:[%s5 + $0x36c] sm:$0xf]
        %v2087 = vld [vmem:[%s5 + $0x370] sm:$0xf]
        %v2088 = vld [vmem:[%s5 + $0x374] sm:$0xf]
        %v2089 = vld [vmem:[%s5 + $0x378] sm:$0xf]
        %v2090 = vld [vmem:[%s5 + $0x37c] sm:$0xf]
        %v2091 = vld [vmem:[%s5 + $0x380] sm:$0xf]
        %v2092 = vld [vmem:[%s5 + $0x384] sm:$0xf]
        %v2093 = vld [vmem:[%s5 + $0x388] sm:$0xf]
        %v2094 = vld [vmem:[%s5 + $0x38c] sm:$0xf]
        %v2095 = vld [vmem:[%s5 + $0x390] sm:$0xf]
        %v2096 = vld [vmem:[%s5 + $0x394] sm:$0xf]
        %v2097 = vld [vmem:[%s5 + $0x398] sm:$0xf]
        %v2098 = vld [vmem:[%s5 + $0x39c] sm:$0xf]
        %v2099 = vld [vmem:[%s5 + $0x3a0] sm:$0xf]
        %v2100 = vld [vmem:[%s5 + $0x3a4] sm:$0xf]
        %v2101 = vld [vmem:[%s5 + $0x3a8] sm:$0xf]
        %v2102 = vld [vmem:[%s5 + $0x3ac] sm:$0xf]
        %v2103 = vld [vmem:[%s5 + $0x3b0] sm:$0xf]
        %v2104 = vld [vmem:[%s5 + $0x3b4] sm:$0xf]
        %v2105 = vld [vmem:[%s5 + $0x3b8] sm:$0xf]
        %v2106 = vld [vmem:[%s5 + $0x3bc] sm:$0xf]
        %v2107 = vld [vmem:[%s5 + $0x3c0] sm:$0xf]
        %v2108 = vld [vmem:[%s5 + $0x3c4] sm:$0xf]
        %v2109 = vld [vmem:[%s5 + $0x3c8] sm:$0xf]
        %v2110 = vld [vmem:[%s5 + $0x3cc] sm:$0xf]
        %v2111 = vld [vmem:[%s5 + $0x3d0] sm:$0xf]
        %v2112 = vld [vmem:[%s5 + $0x3d4] sm:$0xf]
        %v2113 = vld [vmem:[%s5 + $0x3d8] sm:$0xf]
        %v2114 = vld [vmem:[%s5 + $0x3dc] sm:$0xf]
        %v2115 = vld [vmem:[%s5 + $0x3e0] sm:$0xf]
        %v2116 = vld [vmem:[%s5 + $0x3e4] sm:$0xf]
        %v2117 = vld [vmem:[%s5 + $0x3e8] sm:$0xf]
        %v2118 = vld [vmem:[%s5 + $0x3ec] sm:$0xf]
        %v2119 = vld [vmem:[%s5 + $0x3f0] sm:$0xf]
        %v2120 = vld [vmem:[%s5 + $0x3f4] sm:$0xf]
        %v2121 = vld [vmem:[%s5 + $0x3f8] sm:$0xf]
        %v2122 = vld [vmem:[%s5 + $0x3fc] sm:$0xf]
        %v2123 = vld [vmem:[%s6] sm:$0x1]
        %v2380 = vunpack.c.l.b16 %v1867
        %v2381 = vunpack.c.l.b16 %v1868
        %v2382 = vunpack.c.l.b16 %v1869
        %v2383 = vunpack.c.l.b16 %v1870
        %v2384 = vunpack.c.l.b16 %v1871
        %v2385 = vunpack.c.l.b16 %v1872
        %v2386 = vunpack.c.l.b16 %v1873
        %v2387 = vunpack.c.l.b16 %v1874
        %v2388 = vunpack.c.l.b16 %v1875
        %v2389 = vunpack.c.l.b16 %v1876
        %v2390 = vunpack.c.l.b16 %v1877
        %v2391 = vunpack.c.l.b16 %v1878
        %v2392 = vunpack.c.l.b16 %v1879
        %v2393 = vunpack.c.l.b16 %v1880
        %v2394 = vunpack.c.l.b16 %v1881
        %v2395 = vunpack.c.l.b16 %v1882
        %v2396 = vunpack.c.l.b16 %v1883
        %v2397 = vunpack.c.l.b16 %v1884
        %v2398 = vunpack.c.l.b16 %v1885
        %v2399 = vunpack.c.l.b16 %v1886
        %v2400 = vunpack.c.l.b16 %v1887
        %v2401 = vunpack.c.l.b16 %v1888
        %v2402 = vunpack.c.l.b16 %v1889
        %v2403 = vunpack.c.l.b16 %v1890
        %v2404 = vunpack.c.l.b16 %v1891
        %v2405 = vunpack.c.l.b16 %v1892
        %v2406 = vunpack.c.l.b16 %v1893
        %v2407 = vunpack.c.l.b16 %v1894
        %v2408 = vunpack.c.l.b16 %v1895
        %v2409 = vunpack.c.l.b16 %v1896
        %v2410 = vunpack.c.l.b16 %v1897
        %v2411 = vunpack.c.l.b16 %v1898
        %v2412 = vunpack.c.l.b16 %v1899
        %v2413 = vunpack.c.l.b16 %v1900
        %v2414 = vunpack.c.l.b16 %v1901
        %v2415 = vunpack.c.l.b16 %v1902
        %v2416 = vunpack.c.l.b16 %v1903
        %v2417 = vunpack.c.l.b16 %v1904
        %v2418 = vunpack.c.l.b16 %v1905
        %v2419 = vunpack.c.l.b16 %v1906
        %v2420 = vunpack.c.l.b16 %v1907
        %v2421 = vunpack.c.l.b16 %v1908
        %v2422 = vunpack.c.l.b16 %v1909
        %v2423 = vunpack.c.l.b16 %v1910
        %v2424 = vunpack.c.l.b16 %v1911
        %v2425 = vunpack.c.l.b16 %v1912
        %v2426 = vunpack.c.l.b16 %v1913
        %v2427 = vunpack.c.l.b16 %v1914
        %v2428 = vunpack.c.l.b16 %v1915
        %v2429 = vunpack.c.l.b16 %v1916
        %v2430 = vunpack.c.l.b16 %v1917
        %v2431 = vunpack.c.l.b16 %v1918
        %v2432 = vunpack.c.l.b16 %v1919
        %v2433 = vunpack.c.l.b16 %v1920
        %v2434 = vunpack.c.l.b16 %v1921
        %v2435 = vunpack.c.l.b16 %v1922
        %v2436 = vunpack.c.l.b16 %v1923
        %v2437 = vunpack.c.l.b16 %v1924
        %v2438 = vunpack.c.l.b16 %v1925
        %v2439 = vunpack.c.l.b16 %v1926
        %v2440 = vunpack.c.l.b16 %v1927
        %v2441 = vunpack.c.l.b16 %v1928
        %v2442 = vunpack.c.l.b16 %v1929
        %v2443 = vunpack.c.l.b16 %v1930
        %v2444 = vunpack.c.l.b16 %v1931
        %v2445 = vunpack.c.l.b16 %v1932
        %v2446 = vunpack.c.l.b16 %v1933
        %v2447 = vunpack.c.l.b16 %v1934
        %v2448 = vunpack.c.l.b16 %v1935
        %v2449 = vunpack.c.l.b16 %v1936
        %v2450 = vunpack.c.l.b16 %v1937
        %v2451 = vunpack.c.l.b16 %v1938
        %v2452 = vunpack.c.l.b16 %v1939
        %v2453 = vunpack.c.l.b16 %v1940
        %v2454 = vunpack.c.l.b16 %v1941
        %v2455 = vunpack.c.l.b16 %v1942
        %v2456 = vunpack.c.l.b16 %v1943
        %v2457 = vunpack.c.l.b16 %v1944
        %v2458 = vunpack.c.l.b16 %v1945
        %v2459 = vunpack.c.l.b16 %v1946
        %v2460 = vunpack.c.l.b16 %v1947
        %v2461 = vunpack.c.l.b16 %v1948
        %v2462 = vunpack.c.l.b16 %v1949
        %v2463 = vunpack.c.l.b16 %v1950
        %v2464 = vunpack.c.l.b16 %v1951
        %v2465 = vunpack.c.l.b16 %v1952
        %v2466 = vunpack.c.l.b16 %v1953
        %v2467 = vunpack.c.l.b16 %v1954
        %v2468 = vunpack.c.l.b16 %v1955
        %v2469 = vunpack.c.l.b16 %v1956
        %v2470 = vunpack.c.l.b16 %v1957
        %v2471 = vunpack.c.l.b16 %v1958
        %v2472 = vunpack.c.l.b16 %v1959
        %v2473 = vunpack.c.l.b16 %v1960
        %v2474 = vunpack.c.l.b16 %v1961
        %v2475 = vunpack.c.l.b16 %v1962
        %v2476 = vunpack.c.l.b16 %v1963
        %v2477 = vunpack.c.l.b16 %v1964
        %v2478 = vunpack.c.l.b16 %v1965
        %v2479 = vunpack.c.l.b16 %v1966
        %v2480 = vunpack.c.l.b16 %v1967
        %v2481 = vunpack.c.l.b16 %v1968
        %v2482 = vunpack.c.l.b16 %v1969
        %v2483 = vunpack.c.l.b16 %v1970
        %v2484 = vunpack.c.l.b16 %v1971
        %v2485 = vunpack.c.l.b16 %v1972
        %v2486 = vunpack.c.l.b16 %v1973
        %v2487 = vunpack.c.l.b16 %v1974
        %v2488 = vunpack.c.l.b16 %v1975
        %v2489 = vunpack.c.l.b16 %v1976
        %v2490 = vunpack.c.l.b16 %v1977
        %v2491 = vunpack.c.l.b16 %v1978
        %v2492 = vunpack.c.l.b16 %v1979
        %v2493 = vunpack.c.l.b16 %v1980
        %v2494 = vunpack.c.l.b16 %v1981
        %v2495 = vunpack.c.l.b16 %v1982
        %v2496 = vunpack.c.l.b16 %v1983
        %v2497 = vunpack.c.l.b16 %v1984
        %v2498 = vunpack.c.l.b16 %v1985
        %v2499 = vunpack.c.l.b16 %v1986
        %v2500 = vunpack.c.l.b16 %v1987
        %v2501 = vunpack.c.l.b16 %v1988
        %v2502 = vunpack.c.l.b16 %v1989
        %v2503 = vunpack.c.l.b16 %v1990
        %v2504 = vunpack.c.l.b16 %v1991
        %v2505 = vunpack.c.l.b16 %v1992
        %v2506 = vunpack.c.l.b16 %v1993
        %v2507 = vunpack.c.l.b16 %v1994
        %v2508 = vunpack.c.l.b16 %v1995
        %v2509 = vunpack.c.l.b16 %v1996
        %v2510 = vunpack.c.l.b16 %v1997
        %v2511 = vunpack.c.l.b16 %v1998
        %v2512 = vunpack.c.l.b16 %v1999
        %v2513 = vunpack.c.l.b16 %v2000
        %v2514 = vunpack.c.l.b16 %v2001
        %v2515 = vunpack.c.l.b16 %v2002
        %v2516 = vunpack.c.l.b16 %v2003
        %v2517 = vunpack.c.l.b16 %v2004
        %v2518 = vunpack.c.l.b16 %v2005
        %v2519 = vunpack.c.l.b16 %v2006
        %v2520 = vunpack.c.l.b16 %v2007
        %v2521 = vunpack.c.l.b16 %v2008
        %v2522 = vunpack.c.l.b16 %v2009
        %v2523 = vunpack.c.l.b16 %v2010
        %v2524 = vunpack.c.l.b16 %v2011
        %v2525 = vunpack.c.l.b16 %v2012
        %v2526 = vunpack.c.l.b16 %v2013
        %v2527 = vunpack.c.l.b16 %v2014
        %v2528 = vunpack.c.l.b16 %v2015
        %v2529 = vunpack.c.l.b16 %v2016
        %v2530 = vunpack.c.l.b16 %v2017
        %v2531 = vunpack.c.l.b16 %v2018
        %v2532 = vunpack.c.l.b16 %v2019
        %v2533 = vunpack.c.l.b16 %v2020
        %v2534 = vunpack.c.l.b16 %v2021
        %v2535 = vunpack.c.l.b16 %v2022
        %v2536 = vunpack.c.l.b16 %v2023
        %v2537 = vunpack.c.l.b16 %v2024
        %v2538 = vunpack.c.l.b16 %v2025
        %v2539 = vunpack.c.l.b16 %v2026
        %v2540 = vunpack.c.l.b16 %v2027
        %v2541 = vunpack.c.l.b16 %v2028
        %v2542 = vunpack.c.l.b16 %v2029
        %v2543 = vunpack.c.l.b16 %v2030
        %v2544 = vunpack.c.l.b16 %v2031
        %v2545 = vunpack.c.l.b16 %v2032
        %v2546 = vunpack.c.l.b16 %v2033
        %v2547 = vunpack.c.l.b16 %v2034
        %v2548 = vunpack.c.l.b16 %v2035
        %v2549 = vunpack.c.l.b16 %v2036
        %v2550 = vunpack.c.l.b16 %v2037
        %v2551 = vunpack.c.l.b16 %v2038
        %v2552 = vunpack.c.l.b16 %v2039
        %v2553 = vunpack.c.l.b16 %v2040
        %v2554 = vunpack.c.l.b16 %v2041
        %v2555 = vunpack.c.l.b16 %v2042
        %v2556 = vunpack.c.l.b16 %v2043
        %v2557 = vunpack.c.l.b16 %v2044
        %v2558 = vunpack.c.l.b16 %v2045
        %v2559 = vunpack.c.l.b16 %v2046
        %v2560 = vunpack.c.l.b16 %v2047
        %v2561 = vunpack.c.l.b16 %v2048
        %v2562 = vunpack.c.l.b16 %v2049
        %v2563 = vunpack.c.l.b16 %v2050
        %v2564 = vunpack.c.l.b16 %v2051
        %v2565 = vunpack.c.l.b16 %v2052
        %v2566 = vunpack.c.l.b16 %v2053
        %v2567 = vunpack.c.l.b16 %v2054
        %v2568 = vunpack.c.l.b16 %v2055
        %v2569 = vunpack.c.l.b16 %v2056
        %v2570 = vunpack.c.l.b16 %v2057
        %v2571 = vunpack.c.l.b16 %v2058
        %v2572 = vunpack.c.l.b16 %v2059
        %v2573 = vunpack.c.l.b16 %v2060
        %v2574 = vunpack.c.l.b16 %v2061
        %v2575 = vunpack.c.l.b16 %v2062
        %v2576 = vunpack.c.l.b16 %v2063
        %v2577 = vunpack.c.l.b16 %v2064
        %v2578 = vunpack.c.l.b16 %v2065
        %v2579 = vunpack.c.l.b16 %v2066
        %v2580 = vunpack.c.l.b16 %v2067
        %v2581 = vunpack.c.l.b16 %v2068
        %v2582 = vunpack.c.l.b16 %v2069
        %v2583 = vunpack.c.l.b16 %v2070
        %v2584 = vunpack.c.l.b16 %v2071
        %v2585 = vunpack.c.l.b16 %v2072
        %v2586 = vunpack.c.l.b16 %v2073
        %v2587 = vunpack.c.l.b16 %v2074
        %v2588 = vunpack.c.l.b16 %v2075
        %v2589 = vunpack.c.l.b16 %v2076
        %v2590 = vunpack.c.l.b16 %v2077
        %v2591 = vunpack.c.l.b16 %v2078
        %v2592 = vunpack.c.l.b16 %v2079
        %v2593 = vunpack.c.l.b16 %v2080
        %v2594 = vunpack.c.l.b16 %v2081
        %v2595 = vunpack.c.l.b16 %v2082
        %v2596 = vunpack.c.l.b16 %v2083
        %v2597 = vunpack.c.l.b16 %v2084
        %v2598 = vunpack.c.l.b16 %v2085
        %v2599 = vunpack.c.l.b16 %v2086
        %v2600 = vunpack.c.l.b16 %v2087
        %v2601 = vunpack.c.l.b16 %v2088
        %v2602 = vunpack.c.l.b16 %v2089
        %v2603 = vunpack.c.l.b16 %v2090
        %v2604 = vunpack.c.l.b16 %v2091
        %v2605 = vunpack.c.l.b16 %v2092
        %v2606 = vunpack.c.l.b16 %v2093
        %v2607 = vunpack.c.l.b16 %v2094
        %v2608 = vunpack.c.l.b16 %v2095
        %v2609 = vunpack.c.l.b16 %v2096
        %v2610 = vunpack.c.l.b16 %v2097
        %v2611 = vunpack.c.l.b16 %v2098
        %v2612 = vunpack.c.l.b16 %v2099
        %v2613 = vunpack.c.l.b16 %v2100
        %v2614 = vunpack.c.l.b16 %v2101
        %v2615 = vunpack.c.l.b16 %v2102
        %v2616 = vunpack.c.l.b16 %v2103
        %v2617 = vunpack.c.l.b16 %v2104
        %v2618 = vunpack.c.l.b16 %v2105
        %v2619 = vunpack.c.l.b16 %v2106
        %v2620 = vunpack.c.l.b16 %v2107
        %v2621 = vunpack.c.l.b16 %v2108
        %v2622 = vunpack.c.l.b16 %v2109
        %v2623 = vunpack.c.l.b16 %v2110
        %v2624 = vunpack.c.l.b16 %v2111
        %v2625 = vunpack.c.l.b16 %v2112
        %v2626 = vunpack.c.l.b16 %v2113
        %v2627 = vunpack.c.l.b16 %v2114
        %v2628 = vunpack.c.l.b16 %v2115
        %v2629 = vunpack.c.l.b16 %v2116
        %v2630 = vunpack.c.l.b16 %v2117
        %v2631 = vunpack.c.l.b16 %v2118
        %v2632 = vunpack.c.l.b16 %v2119
        %v2633 = vunpack.c.l.b16 %v2120
        %v2634 = vunpack.c.l.b16 %v2121
        %v2635 = vunpack.c.l.b16 %v2122
        %v2636 = vpack.c.b16 %v2381, %v2380
        %v2637 = vpack.c.b16 %v2383, %v2382
        %v2638 = vpack.c.b16 %v2385, %v2384
        %v2639 = vpack.c.b16 %v2387, %v2386
        %v2640 = vpack.c.b16 %v2389, %v2388
        %v2641 = vpack.c.b16 %v2391, %v2390
        %v2642 = vpack.c.b16 %v2393, %v2392
        %v2643 = vpack.c.b16 %v2395, %v2394
        %v2644 = vpack.c.b16 %v2397, %v2396
        %v2645 = vpack.c.b16 %v2399, %v2398
        %v2646 = vpack.c.b16 %v2401, %v2400
        %v2647 = vpack.c.b16 %v2403, %v2402
        %v2648 = vpack.c.b16 %v2405, %v2404
        %v2649 = vpack.c.b16 %v2407, %v2406
        %v2650 = vpack.c.b16 %v2409, %v2408
        %v2651 = vpack.c.b16 %v2411, %v2410
        %v2652 = vpack.c.b16 %v2413, %v2412
        %v2653 = vpack.c.b16 %v2415, %v2414
        %v2654 = vpack.c.b16 %v2417, %v2416
        %v2655 = vpack.c.b16 %v2419, %v2418
        %v2656 = vpack.c.b16 %v2421, %v2420
        %v2657 = vpack.c.b16 %v2423, %v2422
        %v2658 = vpack.c.b16 %v2425, %v2424
        %v2659 = vpack.c.b16 %v2427, %v2426
        %v2660 = vpack.c.b16 %v2429, %v2428
        %v2661 = vpack.c.b16 %v2431, %v2430
        %v2662 = vpack.c.b16 %v2433, %v2432
        %v2663 = vpack.c.b16 %v2435, %v2434
        %v2664 = vpack.c.b16 %v2437, %v2436
        %v2665 = vpack.c.b16 %v2439, %v2438
        %v2666 = vpack.c.b16 %v2441, %v2440
        %v2667 = vpack.c.b16 %v2443, %v2442
        %v2668 = vpack.c.b16 %v2445, %v2444
        %v2669 = vpack.c.b16 %v2447, %v2446
        %v2670 = vpack.c.b16 %v2449, %v2448
        %v2671 = vpack.c.b16 %v2451, %v2450
        %v2672 = vpack.c.b16 %v2453, %v2452
        %v2673 = vpack.c.b16 %v2455, %v2454
        %v2674 = vpack.c.b16 %v2457, %v2456
        %v2675 = vpack.c.b16 %v2459, %v2458
        %v2676 = vpack.c.b16 %v2461, %v2460
        %v2677 = vpack.c.b16 %v2463, %v2462
        %v2678 = vpack.c.b16 %v2465, %v2464
        %v2679 = vpack.c.b16 %v2467, %v2466
        %v2680 = vpack.c.b16 %v2469, %v2468
        %v2681 = vpack.c.b16 %v2471, %v2470
        %v2682 = vpack.c.b16 %v2473, %v2472
        %v2683 = vpack.c.b16 %v2475, %v2474
        %v2684 = vpack.c.b16 %v2477, %v2476
        %v2685 = vpack.c.b16 %v2479, %v2478
        %v2686 = vpack.c.b16 %v2481, %v2480
        %v2687 = vpack.c.b16 %v2483, %v2482
        %v2688 = vpack.c.b16 %v2485, %v2484
        %v2689 = vpack.c.b16 %v2487, %v2486
        %v2690 = vpack.c.b16 %v2489, %v2488
        %v2691 = vpack.c.b16 %v2491, %v2490
        %v2692 = vpack.c.b16 %v2493, %v2492
        %v2693 = vpack.c.b16 %v2495, %v2494
        %v2694 = vpack.c.b16 %v2497, %v2496
        %v2695 = vpack.c.b16 %v2499, %v2498
        %v2696 = vpack.c.b16 %v2501, %v2500
        %v2697 = vpack.c.b16 %v2503, %v2502
        %v2698 = vpack.c.b16 %v2505, %v2504
        %v2699 = vpack.c.b16 %v2507, %v2506
        %v2700 = vpack.c.b16 %v2509, %v2508
        %v2701 = vpack.c.b16 %v2511, %v2510
        %v2702 = vpack.c.b16 %v2513, %v2512
        %v2703 = vpack.c.b16 %v2515, %v2514
        %v2704 = vpack.c.b16 %v2517, %v2516
        %v2705 = vpack.c.b16 %v2519, %v2518
        %v2706 = vpack.c.b16 %v2521, %v2520
        %v2707 = vpack.c.b16 %v2523, %v2522
        %v2708 = vpack.c.b16 %v2525, %v2524
        %v2709 = vpack.c.b16 %v2527, %v2526
        %v2710 = vpack.c.b16 %v2529, %v2528
        %v2711 = vpack.c.b16 %v2531, %v2530
        %v2712 = vpack.c.b16 %v2533, %v2532
        %v2713 = vpack.c.b16 %v2535, %v2534
        %v2714 = vpack.c.b16 %v2537, %v2536
        %v2715 = vpack.c.b16 %v2539, %v2538
        %v2716 = vpack.c.b16 %v2541, %v2540
        %v2717 = vpack.c.b16 %v2543, %v2542
        %v2718 = vpack.c.b16 %v2545, %v2544
        %v2719 = vpack.c.b16 %v2547, %v2546
        %v2720 = vpack.c.b16 %v2549, %v2548
        %v2721 = vpack.c.b16 %v2551, %v2550
        %v2722 = vpack.c.b16 %v2553, %v2552
        %v2723 = vpack.c.b16 %v2555, %v2554
        %v2724 = vpack.c.b16 %v2557, %v2556
        %v2725 = vpack.c.b16 %v2559, %v2558
        %v2726 = vpack.c.b16 %v2561, %v2560
        %v2727 = vpack.c.b16 %v2563, %v2562
        %v2728 = vpack.c.b16 %v2565, %v2564
        %v2729 = vpack.c.b16 %v2567, %v2566
        %v2730 = vpack.c.b16 %v2569, %v2568
        %v2731 = vpack.c.b16 %v2571, %v2570
        %v2732 = vpack.c.b16 %v2573, %v2572
        %v2733 = vpack.c.b16 %v2575, %v2574
        %v2734 = vpack.c.b16 %v2577, %v2576
        %v2735 = vpack.c.b16 %v2579, %v2578
        %v2736 = vpack.c.b16 %v2581, %v2580
        %v2737 = vpack.c.b16 %v2583, %v2582
        %v2738 = vpack.c.b16 %v2585, %v2584
        %v2739 = vpack.c.b16 %v2587, %v2586
        %v2740 = vpack.c.b16 %v2589, %v2588
        %v2741 = vpack.c.b16 %v2591, %v2590
        %v2742 = vpack.c.b16 %v2593, %v2592
        %v2743 = vpack.c.b16 %v2595, %v2594
        %v2744 = vpack.c.b16 %v2597, %v2596
        %v2745 = vpack.c.b16 %v2599, %v2598
        %v2746 = vpack.c.b16 %v2601, %v2600
        %v2747 = vpack.c.b16 %v2603, %v2602
        %v2748 = vpack.c.b16 %v2605, %v2604
        %v2749 = vpack.c.b16 %v2607, %v2606
        %v2750 = vpack.c.b16 %v2609, %v2608
        %v2751 = vpack.c.b16 %v2611, %v2610
        %v2752 = vpack.c.b16 %v2613, %v2612
        %v2753 = vpack.c.b16 %v2615, %v2614
        %v2754 = vpack.c.b16 %v2617, %v2616
        %v2755 = vpack.c.b16 %v2619, %v2618
        %v2756 = vpack.c.b16 %v2621, %v2620
        %v2757 = vpack.c.b16 %v2623, %v2622
        %v2758 = vpack.c.b16 %v2625, %v2624
        %v2759 = vpack.c.b16 %v2627, %v2626
        %v2760 = vpack.c.b16 %v2629, %v2628
        %v2761 = vpack.c.b16 %v2631, %v2630
        %v2762 = vpack.c.b16 %v2633, %v2632
        %v2763 = vpack.c.b16 %v2635, %v2634
        %2892 = vmatprep.subr.bf16.mxu0 0
        %2893 = vmatpush1.bf16.msra.mxu0 %v2643
        %2894 = vmatprep.subr.bf16.mxu0 0
        %2895 = vmatpush1.bf16.msra.mxu0 %v2642
        %2896 = vmatprep.subr.bf16.mxu0 0
        %2897 = vmatpush1.bf16.msra.mxu0 %v2641
        %2898 = vmatprep.subr.bf16.mxu0 0
        %2899 = vmatpush1.bf16.msra.mxu0 %v2640
        %2900 = vmatprep.subr.bf16.mxu0 0
        %2901 = vmatpush1.bf16.msra.mxu0 %v2639
        %2902 = vmatprep.subr.bf16.mxu0 0
        %2903 = vmatpush1.bf16.msra.mxu0 %v2638
        %2904 = vmatprep.subr.bf16.mxu0 0
        %2905 = vmatpush1.bf16.msra.mxu0 %v2637
        %2906 = vmatprep.subr.bf16.mxu0 0
        %2907 = vmatpush1.bf16.msra.mxu0 %v2636
        %2908 = vmatprep.subr.bf16.mxu0 0
        %2909 = vmatpush2.bf16.msra.mxu0 %v2651
        %2910 = vmatprep.subr.bf16.mxu0 0
        %2911 = vmatpush2.bf16.msra.mxu0 %v2650
        %2912 = vmatprep.subr.bf16.mxu0 0
        %2913 = vmatpush2.bf16.msra.mxu0 %v2649
        %2914 = vmatprep.subr.bf16.mxu0 0
        %2915 = vmatpush2.bf16.msra.mxu0 %v2648
        %2916 = vmatprep.subr.bf16.mxu0 0
        %2917 = vmatpush2.bf16.msra.mxu0 %v2647
        %2918 = vmatprep.subr.bf16.mxu0 0
        %2919 = vmatpush2.bf16.msra.mxu0 %v2646
        %2920 = vmatprep.subr.bf16.mxu0 0
        %2921 = vmatpush2.bf16.msra.mxu0 %v2645
        %2922 = vmatprep.subr.bf16.mxu0 0
        %2923 = vmatpush2.bf16.msra.mxu0 %v2644
        %2924 = vmatprep.mubr.bf16.mxu0 %v1852
        %2925 = vmatmul.mubr.bf16.gmra.mxu0 %v1851
        %v2926 = vpop.f32.mrf.mxu0
        %v2927 = vadd.f32 %v2123, %v2926
        %v2928 = vpop.f32.mrf.mxu0
        %v2929 = vpop.f32.mrf.mxu0
        %v2930 = vpop.f32.mrf.mxu0
        %2931 = vdwg.mxu0
        %2932 = vmatprep.subr.bf16.mxu0 0
        %2933 = vmatpush1.bf16.msra.mxu0 %v2659
        %2934 = vmatprep.subr.bf16.mxu0 0
        %2935 = vmatpush1.bf16.msra.mxu0 %v2658
        %2936 = vmatprep.subr.bf16.mxu0 0
        %2937 = vmatpush1.bf16.msra.mxu0 %v2657
        %2938 = vmatprep.subr.bf16.mxu0 0
        %2939 = vmatpush1.bf16.msra.mxu0 %v2656
        %2940 = vmatprep.subr.bf16.mxu0 0
        %2941 = vmatpush1.bf16.msra.mxu0 %v2655
        %2942 = vmatprep.subr.bf16.mxu0 0
        %2943 = vmatpush1.bf16.msra.mxu0 %v2654
        %2944 = vmatprep.subr.bf16.mxu0 0
        %2945 = vmatpush1.bf16.msra.mxu0 %v2653
        %2946 = vmatprep.subr.bf16.mxu0 0
        %2947 = vmatpush1.bf16.msra.mxu0 %v2652
        %2948 = vmatprep.subr.bf16.mxu0 0
        %2949 = vmatpush2.bf16.msra.mxu0 %v2667
        %2950 = vmatprep.subr.bf16.mxu0 0
        %2951 = vmatpush2.bf16.msra.mxu0 %v2666
        %2952 = vmatprep.subr.bf16.mxu0 0
        %2953 = vmatpush2.bf16.msra.mxu0 %v2665
        %2954 = vmatprep.subr.bf16.mxu0 0
        %2955 = vmatpush2.bf16.msra.mxu0 %v2664
        %2956 = vmatprep.subr.bf16.mxu0 0
        %2957 = vmatpush2.bf16.msra.mxu0 %v2663
        %2958 = vmatprep.subr.bf16.mxu0 0
        %2959 = vmatpush2.bf16.msra.mxu0 %v2662
        %2960 = vmatprep.subr.bf16.mxu0 0
        %2961 = vmatpush2.bf16.msra.mxu0 %v2661
        %2962 = vmatprep.subr.bf16.mxu0 0
        %2963 = vmatpush2.bf16.msra.mxu0 %v2660
        %2964 = vmatprep.mubr.bf16.mxu0 %v1854
        %2965 = vmatmul.mubr.bf16.gmra.mxu0 %v1853
        %v2966 = vpop.f32.mrf.mxu0
        %v2967 = vadd.f32 %v2927, %v2966
        %v2968 = vpop.f32.mrf.mxu0
        %v2969 = vpop.f32.mrf.mxu0
        %v2970 = vpop.f32.mrf.mxu0
        %2971 = vdwg.mxu0
        %2972 = vmatprep.subr.bf16.mxu0 0
        %2973 = vmatpush1.bf16.msra.mxu0 %v2675
        %2974 = vmatprep.subr.bf16.mxu0 0
        %2975 = vmatpush1.bf16.msra.mxu0 %v2674
        %2976 = vmatprep.subr.bf16.mxu0 0
        %2977 = vmatpush1.bf16.msra.mxu0 %v2673
        %2978 = vmatprep.subr.bf16.mxu0 0
        %2979 = vmatpush1.bf16.msra.mxu0 %v2672
        %2980 = vmatprep.subr.bf16.mxu0 0
        %2981 = vmatpush1.bf16.msra.mxu0 %v2671
        %2982 = vmatprep.subr.bf16.mxu0 0
        %2983 = vmatpush1.bf16.msra.mxu0 %v2670
        %2984 = vmatprep.subr.bf16.mxu0 0
        %2985 = vmatpush1.bf16.msra.mxu0 %v2669
        %2986 = vmatprep.subr.bf16.mxu0 0
        %2987 = vmatpush1.bf16.msra.mxu0 %v2668
        %2988 = vmatprep.subr.bf16.mxu0 0
        %2989 = vmatpush2.bf16.msra.mxu0 %v2683
        %2990 = vmatprep.subr.bf16.mxu0 0
        %2991 = vmatpush2.bf16.msra.mxu0 %v2682
        %2992 = vmatprep.subr.bf16.mxu0 0
        %2993 = vmatpush2.bf16.msra.mxu0 %v2681
        %2994 = vmatprep.subr.bf16.mxu0 0
        %2995 = vmatpush2.bf16.msra.mxu0 %v2680
        %2996 = vmatprep.subr.bf16.mxu0 0
        %2997 = vmatpush2.bf16.msra.mxu0 %v2679
        %2998 = vmatprep.subr.bf16.mxu0 0
        %2999 = vmatpush2.bf16.msra.mxu0 %v2678
        %3000 = vmatprep.subr.bf16.mxu0 0
        %3001 = vmatpush2.bf16.msra.mxu0 %v2677
        %3002 = vmatprep.subr.bf16.mxu0 0
        %3003 = vmatpush2.bf16.msra.mxu0 %v2676
        %3004 = vmatprep.mubr.bf16.mxu0 %v1856
        %3005 = vmatmul.mubr.bf16.gmra.mxu0 %v1855
        %v3006 = vpop.f32.mrf.mxu0
        %v3007 = vadd.f32 %v2967, %v3006
        %v3008 = vpop.f32.mrf.mxu0
        %v3009 = vpop.f32.mrf.mxu0
        %v3010 = vpop.f32.mrf.mxu0
        %3011 = vdwg.mxu0
        %3012 = vmatprep.subr.bf16.mxu0 0
        %3013 = vmatpush1.bf16.msra.mxu0 %v2691
        %3014 = vmatprep.subr.bf16.mxu0 0
        %3015 = vmatpush1.bf16.msra.mxu0 %v2690
        %3016 = vmatprep.subr.bf16.mxu0 0
        %3017 = vmatpush1.bf16.msra.mxu0 %v2689
        %3018 = vmatprep.subr.bf16.mxu0 0
        %3019 = vmatpush1.bf16.msra.mxu0 %v2688
        %3020 = vmatprep.subr.bf16.mxu0 0
        %3021 = vmatpush1.bf16.msra.mxu0 %v2687
        %3022 = vmatprep.subr.bf16.mxu0 0
        %3023 = vmatpush1.bf16.msra.mxu0 %v2686
        %3024 = vmatprep.subr.bf16.mxu0 0
        %3025 = vmatpush1.bf16.msra.mxu0 %v2685
        %3026 = vmatprep.subr.bf16.mxu0 0
        %3027 = vmatpush1.bf16.msra.mxu0 %v2684
        %3028 = vmatprep.subr.bf16.mxu0 0
        %3029 = vmatpush2.bf16.msra.mxu0 %v2699
        %3030 = vmatprep.subr.bf16.mxu0 0
        %3031 = vmatpush2.bf16.msra.mxu0 %v2698
        %3032 = vmatprep.subr.bf16.mxu0 0
        %3033 = vmatpush2.bf16.msra.mxu0 %v2697
        %3034 = vmatprep.subr.bf16.mxu0 0
        %3035 = vmatpush2.bf16.msra.mxu0 %v2696
        %3036 = vmatprep.subr.bf16.mxu0 0
        %3037 = vmatpush2.bf16.msra.mxu0 %v2695
        %3038 = vmatprep.subr.bf16.mxu0 0
        %3039 = vmatpush2.bf16.msra.mxu0 %v2694
        %3040 = vmatprep.subr.bf16.mxu0 0
        %3041 = vmatpush2.bf16.msra.mxu0 %v2693
        %3042 = vmatprep.subr.bf16.mxu0 0
        %3043 = vmatpush2.bf16.msra.mxu0 %v2692
        %3044 = vmatprep.mubr.bf16.mxu0 %v1858
        %3045 = vmatmul.mubr.bf16.gmra.mxu0 %v1857
        %v3046 = vpop.f32.mrf.mxu0
        %v3047 = vadd.f32 %v3007, %v3046
        %v3048 = vpop.f32.mrf.mxu0
        %v3049 = vpop.f32.mrf.mxu0
        %v3050 = vpop.f32.mrf.mxu0
        %3051 = vdwg.mxu0
        %3052 = vmatprep.subr.bf16.mxu0 0
        %3053 = vmatpush1.bf16.msra.mxu0 %v2707
        %3054 = vmatprep.subr.bf16.mxu0 0
        %3055 = vmatpush1.bf16.msra.mxu0 %v2706
        %3056 = vmatprep.subr.bf16.mxu0 0
        %3057 = vmatpush1.bf16.msra.mxu0 %v2705
        %3058 = vmatprep.subr.bf16.mxu0 0
        %3059 = vmatpush1.bf16.msra.mxu0 %v2704
        %3060 = vmatprep.subr.bf16.mxu0 0
        %3061 = vmatpush1.bf16.msra.mxu0 %v2703
        %3062 = vmatprep.subr.bf16.mxu0 0
        %3063 = vmatpush1.bf16.msra.mxu0 %v2702
        %3064 = vmatprep.subr.bf16.mxu0 0
        %3065 = vmatpush1.bf16.msra.mxu0 %v2701
        %3066 = vmatprep.subr.bf16.mxu0 0
        %3067 = vmatpush1.bf16.msra.mxu0 %v2700
        %3068 = vmatprep.subr.bf16.mxu0 0
        %3069 = vmatpush2.bf16.msra.mxu0 %v2715
        %3070 = vmatprep.subr.bf16.mxu0 0
        %3071 = vmatpush2.bf16.msra.mxu0 %v2714
        %3072 = vmatprep.subr.bf16.mxu0 0
        %3073 = vmatpush2.bf16.msra.mxu0 %v2713
        %3074 = vmatprep.subr.bf16.mxu0 0
        %3075 = vmatpush2.bf16.msra.mxu0 %v2712
        %3076 = vmatprep.subr.bf16.mxu0 0
        %3077 = vmatpush2.bf16.msra.mxu0 %v2711
        %3078 = vmatprep.subr.bf16.mxu0 0
        %3079 = vmatpush2.bf16.msra.mxu0 %v2710
        %3080 = vmatprep.subr.bf16.mxu0 0
        %3081 = vmatpush2.bf16.msra.mxu0 %v2709
        %3082 = vmatprep.subr.bf16.mxu0 0
        %3083 = vmatpush2.bf16.msra.mxu0 %v2708
        %3084 = vmatprep.mubr.bf16.mxu0 %v1860
        %3085 = vmatmul.mubr.bf16.gmra.mxu0 %v1859
        %v3086 = vpop.f32.mrf.mxu0
        %v3087 = vadd.f32 %v3047, %v3086
        %v3088 = vpop.f32.mrf.mxu0
        %v3089 = vpop.f32.mrf.mxu0
        %v3090 = vpop.f32.mrf.mxu0
        %3091 = vdwg.mxu0
        %3092 = vmatprep.subr.bf16.mxu0 0
        %3093 = vmatpush1.bf16.msra.mxu0 %v2723
        %3094 = vmatprep.subr.bf16.mxu0 0
        %3095 = vmatpush1.bf16.msra.mxu0 %v2722
        %3096 = vmatprep.subr.bf16.mxu0 0
        %3097 = vmatpush1.bf16.msra.mxu0 %v2721
        %3098 = vmatprep.subr.bf16.mxu0 0
        %3099 = vmatpush1.bf16.msra.mxu0 %v2720
        %3100 = vmatprep.subr.bf16.mxu0 0
        %3101 = vmatpush1.bf16.msra.mxu0 %v2719
        %3102 = vmatprep.subr.bf16.mxu0 0
        %3103 = vmatpush1.bf16.msra.mxu0 %v2718
        %3104 = vmatprep.subr.bf16.mxu0 0
        %3105 = vmatpush1.bf16.msra.mxu0 %v2717
        %3106 = vmatprep.subr.bf16.mxu0 0
        %3107 = vmatpush1.bf16.msra.mxu0 %v2716
        %3108 = vmatprep.subr.bf16.mxu0 0
        %3109 = vmatpush2.bf16.msra.mxu0 %v2731
        %3110 = vmatprep.subr.bf16.mxu0 0
        %3111 = vmatpush2.bf16.msra.mxu0 %v2730
        %3112 = vmatprep.subr.bf16.mxu0 0
        %3113 = vmatpush2.bf16.msra.mxu0 %v2729
        %3114 = vmatprep.subr.bf16.mxu0 0
        %3115 = vmatpush2.bf16.msra.mxu0 %v2728
        %3116 = vmatprep.subr.bf16.mxu0 0
        %3117 = vmatpush2.bf16.msra.mxu0 %v2727
        %3118 = vmatprep.subr.bf16.mxu0 0
        %3119 = vmatpush2.bf16.msra.mxu0 %v2726
        %3120 = vmatprep.subr.bf16.mxu0 0
        %3121 = vmatpush2.bf16.msra.mxu0 %v2725
        %3122 = vmatprep.subr.bf16.mxu0 0
        %3123 = vmatpush2.bf16.msra.mxu0 %v2724
        %3124 = vmatprep.mubr.bf16.mxu0 %v1862
        %3125 = vmatmul.mubr.bf16.gmra.mxu0 %v1861
        %v3126 = vpop.f32.mrf.mxu0
        %v3127 = vadd.f32 %v3087, %v3126
        %v3128 = vpop.f32.mrf.mxu0
        %v3129 = vpop.f32.mrf.mxu0
        %v3130 = vpop.f32.mrf.mxu0
        %3131 = vdwg.mxu0
        %3132 = vmatprep.subr.bf16.mxu0 0
        %3133 = vmatpush1.bf16.msra.mxu0 %v2739
        %3134 = vmatprep.subr.bf16.mxu0 0
        %3135 = vmatpush1.bf16.msra.mxu0 %v2738
        %3136 = vmatprep.subr.bf16.mxu0 0
        %3137 = vmatpush1.bf16.msra.mxu0 %v2737
        %3138 = vmatprep.subr.bf16.mxu0 0
        %3139 = vmatpush1.bf16.msra.mxu0 %v2736
        %3140 = vmatprep.subr.bf16.mxu0 0
        %3141 = vmatpush1.bf16.msra.mxu0 %v2735
        %3142 = vmatprep.subr.bf16.mxu0 0
        %3143 = vmatpush1.bf16.msra.mxu0 %v2734
        %3144 = vmatprep.subr.bf16.mxu0 0
        %3145 = vmatpush1.bf16.msra.mxu0 %v2733
        %3146 = vmatprep.subr.bf16.mxu0 0
        %3147 = vmatpush1.bf16.msra.mxu0 %v2732
        %3148 = vmatprep.subr.bf16.mxu0 0
        %3149 = vmatpush2.bf16.msra.mxu0 %v2747
        %3150 = vmatprep.subr.bf16.mxu0 0
        %3151 = vmatpush2.bf16.msra.mxu0 %v2746
        %3152 = vmatprep.subr.bf16.mxu0 0
        %3153 = vmatpush2.bf16.msra.mxu0 %v2745
        %3154 = vmatprep.subr.bf16.mxu0 0
        %3155 = vmatpush2.bf16.msra.mxu0 %v2744
        %3156 = vmatprep.subr.bf16.mxu0 0
        %3157 = vmatpush2.bf16.msra.mxu0 %v2743
        %3158 = vmatprep.subr.bf16.mxu0 0
        %3159 = vmatpush2.bf16.msra.mxu0 %v2742
        %3160 = vmatprep.subr.bf16.mxu0 0
        %3161 = vmatpush2.bf16.msra.mxu0 %v2741
        %3162 = vmatprep.subr.bf16.mxu0 0
        %3163 = vmatpush2.bf16.msra.mxu0 %v2740
        %3164 = vmatprep.mubr.bf16.mxu0 %v1864
        %3165 = vmatmul.mubr.bf16.gmra.mxu0 %v1863
        %v3166 = vpop.f32.mrf.mxu0
        %v3167 = vadd.f32 %v3127, %v3166
        %v3168 = vpop.f32.mrf.mxu0
        %v3169 = vpop.f32.mrf.mxu0
        %v3170 = vpop.f32.mrf.mxu0
        %3171 = vdwg.mxu0
        %3172 = vmatprep.subr.bf16.mxu0 0
        %3173 = vmatpush1.bf16.msra.mxu0 %v2755
        %3174 = vmatprep.subr.bf16.mxu0 0
        %3175 = vmatpush1.bf16.msra.mxu0 %v2754
        %3176 = vmatprep.subr.bf16.mxu0 0
        %3177 = vmatpush1.bf16.msra.mxu0 %v2753
        %3178 = vmatprep.subr.bf16.mxu0 0
        %3179 = vmatpush1.bf16.msra.mxu0 %v2752
        %3180 = vmatprep.subr.bf16.mxu0 0
        %3181 = vmatpush1.bf16.msra.mxu0 %v2751
        %3182 = vmatprep.subr.bf16.mxu0 0
        %3183 = vmatpush1.bf16.msra.mxu0 %v2750
        %3184 = vmatprep.subr.bf16.mxu0 0
        %3185 = vmatpush1.bf16.msra.mxu0 %v2749
        %3186 = vmatprep.subr.bf16.mxu0 0
        %3187 = vmatpush1.bf16.msra.mxu0 %v2748
        %3188 = vmatprep.subr.bf16.mxu0 0
        %3189 = vmatpush2.bf16.msra.mxu0 %v2763
        %3190 = vmatprep.subr.bf16.mxu0 0
        %3191 = vmatpush2.bf16.msra.mxu0 %v2762
        %3192 = vmatprep.subr.bf16.mxu0 0
        %3193 = vmatpush2.bf16.msra.mxu0 %v2761
        %3194 = vmatprep.subr.bf16.mxu0 0
        %3195 = vmatpush2.bf16.msra.mxu0 %v2760
        %3196 = vmatprep.subr.bf16.mxu0 0
        %3197 = vmatpush2.bf16.msra.mxu0 %v2759
        %3198 = vmatprep.subr.bf16.mxu0 0
        %3199 = vmatpush2.bf16.msra.mxu0 %v2758
        %3200 = vmatprep.subr.bf16.mxu0 0
        %3201 = vmatpush2.bf16.msra.mxu0 %v2757
        %3202 = vmatprep.subr.bf16.mxu0 0
        %3203 = vmatpush2.bf16.msra.mxu0 %v2756
        %3204 = vmatprep.mubr.bf16.mxu0 %v1866
        %3205 = vmatmul.mubr.bf16.gmra.mxu0 %v1865
        %v3206 = vpop.f32.mrf.mxu0
        %v3207 = vadd.f32 %v3167, %v3206
        %v3208 = vpop.f32.mrf.mxu0
        %v3209 = vpop.f32.mrf.mxu0
        %v3210 = vpop.f32.mrf.mxu0
        %3211 = vdwg.mxu0
        %v3212 = vlaneseq
        %v3213 = vand.u32 %v3212, 127
        %vm3214 = vcmp.lt.s32.totalorder %v3213, 2
        %v3215 = vxor.u32 %v3207, 2147483648
        %v3216 = vmul.f32 %v3215, 1.442695
        %v3217 = vpow.pop %v3216
        %v3218 = vadd.f32 %v3217, 1.0
        %v3219 = vrcp.pop %v3218
        %v3220 = vmul.f32 1.0, %v3219
        %vm3221 = vcmp.lt.s32.totalorder %v3213, 4
        %v3222 = vmul.f32 %v3207, 1.442695
        %v3223 = vpow.pop %v3222
        %v3224 = vsel %vm3221, %v3223, %v3207
        %v3225 = vsel %vm3214, %v3220, %v3224
        %3226 = vst [vmem:[%s302] sm:$0x1] %v3225
      $region56: #{transfer_inception_v3_forward.1} parent=47 // pred_fallthru
        _
      %p3227 = scmp.lt.s32.totalorder %s22, 1
      %s3228 = scalar_select %p3227, %s22, 1
      %s3229 = scalar_lea.vmem %s7, %s3228
      // Predicated region
      $region57: #{transfer_inception_v3_forward.1} parent=47 // pred_check
        %p3230 = pneg %p202
      $region58: #{transfer_inception_v3_forward.1} parent=47 // pred_check_branch
        %3232 = sbr.rel (%p3230) target = $region60
      $region59: #{transfer_inception_v3_forward.1} parent=47 // pred_region
        _
      $region60: #{transfer_inception_v3_forward.1} parent=47 // pred_fallthru
        _
    $region48: #{transfer_inception_v3_forward.1} parent=5 // pred_fallthru
      _
    %p3233 = scmp.le.s32.totalorder 2, %s13
    // Predicated region
    $region61: #{transfer_inception_v3_forward.1} parent=5 // pred_check
      %p3234 = pneg %p3233
    $region62: #{transfer_inception_v3_forward.1} parent=5 // pred_check_branch
      %3236 = sbr.rel (%p3234) target = $region64
    $region63: #{transfer_inception_v3_forward.1} parent=5 // pred_region
      %s3237 = ssub.s32 %s13, 2
      // Predicated region
      $region65: #{transfer_inception_v3_forward.1} parent=63 // pred_check
        %p3238 = pneg %p208
      $region66: #{transfer_inception_v3_forward.1} parent=63 // pred_check_branch
        %3240 = sbr.rel (%p3238) target = $region68
      $region67: #{transfer_inception_v3_forward.1} parent=63 // pred_region
        %p3241 = scmp.lt.s32.totalorder %s24, 1
        %s3242 = scalar_select %p3241, %s24, 1
        %s3243 = scalar_lea.vmem %s7, %s3242
      $region68: #{transfer_inception_v3_forward.1} parent=63 // pred_fallthru
        _
    $region64: #{transfer_inception_v3_forward.1} parent=5 // pred_fallthru
      _
  $region6: #{transfer_inception_v3_forward.1} parent=0 // loop_footer
    %s17 = sadd.s32 1, %s13
  $region7: #{transfer_inception_v3_forward.1} parent=0 // loop_footer_branch
    %12 = sbr.rel target = $region3
  $region8: #{transfer_inception_v3_forward.1} parent=0 // loop_exit
    _

</llo_original>
